<compile_context>
chip_gen: v6e
topology: v6e:2x2x1
jax: 0.10.0
libtpu: 0.0.40
codegen_flags: <defaults>
</compile_context>

<pallas_src>
import functools

import jax
import jax.numpy as jnp
from jax.experimental import pallas as pl
from jax.experimental.pallas import tpu as pltpu


def _round_up(x, m):
    return (x + m - 1) // m * m


def _pick_row_tile(H_pad, W, target=512):
    """Largest TH (multiple of 8, divides H_pad) with TH*W <= target; at least 8."""
    best = 8
    th = 8
    while th <= H_pad:
        if H_pad % th == 0 and th * W <= target:
            best = th
        th += 8
    return best


def _pick_cout_tile(C_p):
    """Output-channel tile TN (multiple of 128) that either spans whole subpixel
    blocks (TN = k*C_p) or divides one subpixel block (TN | C_p)."""
    if 4 * C_p <= 512:
        return 4 * C_p          # C_p == 128: the whole Cout fits one tile
    if C_p <= 512:
        return C_p              # one subpixel block per tile (C_p in {256,384,512})
    for cand in (512, 256, 128):
        if C_p % cand == 0:
            return cand         # several tiles per subpixel block
    return C_p                  # unreachable: C_p is always a multiple of 128


def _dc_up_kernel(xpad_ref, w_ref, b_ref, out_ref, slab_ref, *, TH, W, C_p, TN):
    # xpad_ref: (1, H_pad+2, W+2, C_p) bf16  zero-padded input, resident per batch
    # w_ref   : (9*C_p, TN)            bf16  im2col weight tile (subpixel-major cols)
    # b_ref   : (1, TN)                f32   bias tile
    # out_ref : (1, TH*W, TN)          f32   pre-pixel-shuffle output tile (lane dense)
    # slab_ref: (TH*W, 9*C_p)          bf16  staged im2col slab (built once per (b, t))
    t = pl.program_id(1)
    n = pl.program_id(2)
    THW = TH * W

    @pl.when(n == 0)
    def _build_slab():
        base = pl.multiple_of(t * TH, 8)
        for dy in range(3):
            rows = xpad_ref[0, pl.ds(base + dy, TH), :, :]          # (TH, W+2, C_p)
            for dx in range(3):
                tap = dy * 3 + dx
                slab_ref[:, tap * C_p:(tap + 1) * C_p] = (
                    rows[:, dx:dx + W, :].reshape(THW, C_p))

    # Single MXU matmul per (b, t, n): bf16 operands, f32 accumulation.
    acc = jnp.dot(slab_ref[...], w_ref[...],
                  preferred_element_type=jnp.float32)               # (THW, TN) f32
    acc = acc + b_ref[...]                                          # f32 bias

    # Shortcut: pixel_shuffle(repeat_interleave(x, 4)) puts x at every subpixel.
    # Add the centre tap (dy = dx = 1) in f32 -- not folded into the bf16 weights.
    center = 4 * C_p                       # lane offset of the centre tap in the slab
    if TN >= C_p:                          # tile spans TN // C_p whole subpixel blocks
        res = slab_ref[:, center:center + C_p]
        if TN > C_p:
            res = jnp.concatenate([res] * (TN // C_p), axis=-1)
    else:                                  # several tiles per subpixel block
        nc = C_p // TN
        c0 = pl.multiple_of(center + (n % nc) * TN, 128)
        res = slab_ref[:, pl.ds(c0, TN)]
    acc = acc + res.astype(jnp.float32)

    out_ref[0] = acc


def dc_up_block_2d(x, w_oihw, bias, factor=2):
    """x: (B, H, W, C) f32.  w_oihw: (C*factor^2, C, 3, 3).  bias: (C*factor^2,)."""
    B, H, W, C = x.shape
    Cout = w_oihw.shape[0]
    assert factor == 2 and Cout == C * 4

    C_p = _round_up(C, 128)           # lane-aligned input channels (also subpixel block width)
    H_pad = _round_up(H, 8)           # row-tileable height (extra rows sliced off below)
    TN = _pick_cout_tile(C_p)
    TH = _pick_row_tile(H_pad, W)
    THW = TH * W
    nT = H_pad // TH
    nN = (4 * C_p) // TN

    # ---- trace-time glue (runs once under jit) -------------------------------
    # TODO(synk): for very large images the resident padded block could be replaced
    # by a manual halo DMA (memory_space=pl.ANY) to bound VMEM.
    xpad = jnp.pad(x, ((0, 0), (1, 1 + H_pad - H), (1, 1), (0, C_p - C))
                   ).astype(jnp.bfloat16)                       # (B, H_pad+2, W+2, C_p)

    # Weight: OIHW -> (tap, Cin) x (subpixel k, Cout-channel c), both padded to C_p.
    # Column j = k*C_p + c corresponds to conv out-channel o = c*4 + k.
    w_k = jnp.transpose(w_oihw, (2, 3, 1, 0)).reshape(3, 3, C, C, 4)   # (dy,dx,ci,c,k)
    w_k = jnp.transpose(w_k, (0, 1, 2, 4, 3))                          # (dy,dx,ci,k,c)
    w_k = jnp.pad(w_k, ((0, 0), (0, 0), (0, C_p - C), (0, 0), (0, C_p - C)))
    w_big = w_k.reshape(9 * C_p, 4 * C_p).astype(jnp.bfloat16)

    b_k = jnp.transpose(bias.reshape(C, 4), (1, 0))                    # (k, c)
    b_big = jnp.pad(b_k, ((0, 0), (0, C_p - C))).reshape(1, 4 * C_p).astype(jnp.float32)

    kernel = functools.partial(_dc_up_kernel, TH=TH, W=W, C_p=C_p, TN=TN)

    out_bytes = B * H_pad * W * 4 * C_p * 4
    cost = pl.CostEstimate(
        flops=2 * B * H_pad * W * 9 * C_p * 4 * C_p,
        transcendentals=0,
        bytes_accessed=xpad.size * 2 + w_big.size * 2 + b_big.size * 4 + out_bytes)

    # VMEM budget: double-buffered image/weight/output tiles + slab scratch + slack,
    # capped below physical VMEM (64 MiB on v7x, 128 MiB on v5e/v6e).
    vmem_est = (2 * (H_pad + 2) * (W + 2) * C_p * 2
                + 2 * 9 * C_p * TN * 2
                + 2 * THW * TN * 4
                + THW * 9 * C_p * 2
                + (1 << 20))
    vmem_limit = int(min(max(vmem_est * 3 // 2, 32 << 20), 96 << 20))

    out_pre = pl.pallas_call(
        kernel,
        out_shape=jax.ShapeDtypeStruct((B, H_pad * W, 4 * C_p), jnp.float32),
        grid=(B, nT, nN),
        in_specs=[
            # padded image: resident per batch (constant block index along t and n)
            pl.BlockSpec((1, H_pad + 2, W + 2, C_p), lambda b, t, n: (b, 0, 0, 0)),
            pl.BlockSpec((9 * C_p, TN), lambda b, t, n: (0, n)),
            pl.BlockSpec((1, TN), lambda b, t, n: (0, n)),
        ],
        out_specs=pl.BlockSpec((1, THW, TN), lambda b, t, n: (b, t, n)),
        scratch_shapes=[pltpu.VMEM((THW, 9 * C_p), jnp.bfloat16)],
        compiler_params=pltpu.CompilerParams(
            dimension_semantics=("parallel", "parallel", "arbitrary"),
            vmem_limit_bytes=vmem_limit),
        cost_estimate=cost,
    )(xpad, w_big, b_big)

    # Layout glue: drop row/channel padding, then pixel-shuffle with the subpixel-major
    # channel order -> reshapes + one transpose that keeps the minor (rx, C) dims.
    out = out_pre.reshape(B, H_pad, W, 4, C_p)[:, :H, :, :, :C]
    out = out.reshape(B, H, W, 2, 2, C)                  # (b, h, w, ry, rx, c)
    out = jnp.transpose(out, (0, 1, 3, 2, 4, 5))         # (b, h, ry, w, rx, c)
    return out.reshape(B, 4 * H * W, C)


# ----------------- pure-JAX reference (mirrors the PyTorch forward) -----------
def _pixel_shuffle_nchw(x, r):
    B, Cr2, H, W = x.shape
    C = Cr2 // (r * r)
    x = x.reshape(B, C, r, r, H, W)
    x = jnp.transpose(x, (0, 1, 4, 2, 5, 3))
    return x.reshape(B, C, H * r, W * r)


def dc_up_block_2d_ref(x, w_oihw, bias, factor=2):
    h = jnp.transpose(x, (0, 3, 1, 2))                   # NCHW
    conv = jax.lax.conv_general_dilated(
        h, w_oihw, window_strides=(1, 1), padding=((1, 1), (1, 1)),
        dimension_numbers=('NCHW', 'OIHW', 'NCHW'),
        precision=jax.lax.Precision.HIGHEST)
    conv = conv + bias[None, :, None, None]
    xs = _pixel_shuffle_nchw(conv, factor)               # (B, C, 2H, 2W)
    y = jnp.repeat(h, factor * factor, axis=1)           # repeat_interleave dim=1
    ys = _pixel_shuffle_nchw(y, factor)
    out = xs + ys
    B, C, OH, OW = out.shape
    return jnp.transpose(out.reshape(B, C, OH * OW), (0, 2, 1))


if __name__ == "__main__":
    key = jax.random.PRNGKey(0)

    def run_case(B, H, W, dim, k):
        k1, k2, k3 = jax.random.split(k, 3)
        Cout = dim * 4
        x = jax.random.normal(k1, (B, H, W, dim), jnp.float32)
        w = jax.random.normal(k2, (Cout, dim, 3, 3), jnp.float32) * (9 * dim) ** -0.5
        b = jax.random.normal(k3, (Cout,), jnp.float32) * 0.1

        out = jax.block_until_ready(jax.jit(dc_up_block_2d)(x, w, b))
        ref = dc_up_block_2d_ref(x, w, b)
        assert out.shape == (B, 4 * H * W, dim), out.shape
        max_err = float(jnp.max(jnp.abs(out - ref)))
        scale = float(jnp.max(jnp.abs(ref))) + 1.0
        # bf16 MXU operands vs f32 HIGHEST reference.
        assert max_err < 2e-2 * scale, (max_err, scale)

    k_a, k_b = jax.random.split(key)
    # Small module-like shape (single row/channel tile).
    run_case(2, 16, 16, 8, k_a)
    # Exercises row tiling (nT = 2) and Cout tiling (nN = 4) with the slab scratch.
    run_case(1, 32, 32, 256, k_b)

    print("KERNEL_OK")
</pallas_src>

<mosaic_0001>
module attributes {stable_mosaic.version = 11 : i64} {
  func.func @_dc_up_kernel(%arg0: i32, %arg1: i32, %arg2: i32, %arg3: memref<1x18x18x128xbf16, #tpu.memory_space<vmem>>, %arg4: memref<1152x512xbf16, #tpu.memory_space<vmem>>, %arg5: memref<1x512xf32, #tpu.memory_space<vmem>>, %arg6: memref<1x256x512xf32, #tpu.memory_space<vmem>>, %arg7: memref<256x1152xbf16, #tpu.memory_space<vmem>>) attributes {dimension_semantics = [#tpu.dimension_semantics<parallel>, #tpu.dimension_semantics<parallel>, #tpu.dimension_semantics<arbitrary>], iteration_bounds = array<i64: 2, 1, 1>, scalar_prefetch = 0 : i64, scratch_operands = 1 : i64, tpu.core_type = #tpu.core_type<tc>, window_params = [{transform_indices = @transform_0, window_bounds = array<i64: 1, 18, 18, 128>}, {transform_indices = @transform_1, window_bounds = array<i64: 1152, 512>}, {transform_indices = @transform_2, window_bounds = array<i64: 1, 512>}, {transform_indices = @transform_3, window_bounds = array<i64: 1, 256, 512>}]} {
    %c0_i32 = arith.constant 0 : i32
    %0 = arith.cmpi eq, %arg2, %c0_i32 : i32
    %1 = arith.extui %0 : i1 to i32
    %c0_i32_0 = arith.constant 0 : i32
    %2 = arith.cmpi ne, %1, %c0_i32_0 : i32
    scf.if %2 {
      %c16_i32 = arith.constant 16 : i32
      %16 = arith.muli %arg1, %c16_i32 : i32
      %17 = tpu.assume_multiple %16, 8 : i32
      %c0_i32_10 = arith.constant 0 : i32
      %18 = arith.addi %17, %c0_i32_10 : i32
      %c0_11 = arith.constant 0 : index
      %19 = arith.index_cast %18 : i32 to index
      %c0_12 = arith.constant 0 : index
      %c0_13 = arith.constant 0 : index
      %20 = vector.load %arg3[%c0_11, %19, %c0_12, %c0_13] : memref<1x18x18x128xbf16, #tpu.memory_space<vmem>>, vector<1x16x18x128xbf16>
      %21 = vector.shape_cast %20 : vector<1x16x18x128xbf16> to vector<16x18x128xbf16>
      %22 = vector.extract_strided_slice %21 {offsets = [0, 0, 0], sizes = [16, 16, 128], strides = [1, 1, 1]} : vector<16x18x128xbf16> to vector<16x16x128xbf16>
      %23 = vector.shape_cast %22 : vector<16x16x128xbf16> to vector<256x128xbf16>
      %c0_14 = arith.constant 0 : index
      %c0_15 = arith.constant 0 : index
      %24 = vector.load %arg7[%c0_14, %c0_15] : memref<256x1152xbf16, #tpu.memory_space<vmem>>, vector<256x128xbf16>
      tpu.vector_store %arg7[%c0_14, %c0_15], %23 {strides = array<i32>} : memref<256x1152xbf16, #tpu.memory_space<vmem>>, vector<256x128xbf16>,
      %25 = vector.extract_strided_slice %21 {offsets = [0, 1, 0], sizes = [16, 16, 128], strides = [1, 1, 1]} : vector<16x18x128xbf16> to vector<16x16x128xbf16>
      %26 = vector.shape_cast %25 : vector<16x16x128xbf16> to vector<256x128xbf16>
      %c0_16 = arith.constant 0 : index
      %c128 = arith.constant 128 : index
      %27 = vector.load %arg7[%c0_16, %c128] : memref<256x1152xbf16, #tpu.memory_space<vmem>>, vector<256x128xbf16>
      tpu.vector_store %arg7[%c0_16, %c128], %26 {strides = array<i32>} : memref<256x1152xbf16, #tpu.memory_space<vmem>>, vector<256x128xbf16>,
      %28 = vector.extract_strided_slice %21 {offsets = [0, 2, 0], sizes = [16, 16, 128], strides = [1, 1, 1]} : vector<16x18x128xbf16> to vector<16x16x128xbf16>
      %29 = vector.shape_cast %28 : vector<16x16x128xbf16> to vector<256x128xbf16>
      %c0_17 = arith.constant 0 : index
      %c256 = arith.constant 256 : index
      %30 = vector.load %arg7[%c0_17, %c256] : memref<256x1152xbf16, #tpu.memory_space<vmem>>, vector<256x128xbf16>
      tpu.vector_store %arg7[%c0_17, %c256], %29 {strides = array<i32>} : memref<256x1152xbf16, #tpu.memory_space<vmem>>, vector<256x128xbf16>,
      %c1_i32 = arith.constant 1 : i32
      %31 = arith.addi %17, %c1_i32 : i32
      %c0_18 = arith.constant 0 : index
      %32 = arith.index_cast %31 : i32 to index
      %c0_19 = arith.constant 0 : index
      %c0_20 = arith.constant 0 : index
      %33 = vector.load %arg3[%c0_18, %32, %c0_19, %c0_20] : memref<1x18x18x128xbf16, #tpu.memory_space<vmem>>, vector<1x16x18x128xbf16>
      %34 = vector.shape_cast %33 : vector<1x16x18x128xbf16> to vector<16x18x128xbf16>
      %35 = vector.extract_strided_slice %34 {offsets = [0, 0, 0], sizes = [16, 16, 128], strides = [1, 1, 1]} : vector<16x18x128xbf16> to vector<16x16x128xbf16>
      %36 = vector.shape_cast %35 : vector<16x16x128xbf16> to vector<256x128xbf16>
      %c0_21 = arith.constant 0 : index
      %c384 = arith.constant 384 : index
      %37 = vector.load %arg7[%c0_21, %c384] : memref<256x1152xbf16, #tpu.memory_space<vmem>>, vector<256x128xbf16>
      tpu.vector_store %arg7[%c0_21, %c384], %36 {strides = array<i32>} : memref<256x1152xbf16, #tpu.memory_space<vmem>>, vector<256x128xbf16>,
      %38 = vector.extract_strided_slice %34 {offsets = [0, 1, 0], sizes = [16, 16, 128], strides = [1, 1, 1]} : vector<16x18x128xbf16> to vector<16x16x128xbf16>
      %39 = vector.shape_cast %38 : vector<16x16x128xbf16> to vector<256x128xbf16>
      %c0_22 = arith.constant 0 : index
      %c512_23 = arith.constant 512 : index
      %40 = vector.load %arg7[%c0_22, %c512_23] : memref<256x1152xbf16, #tpu.memory_space<vmem>>, vector<256x128xbf16>
      tpu.vector_store %arg7[%c0_22, %c512_23], %39 {strides = array<i32>} : memref<256x1152xbf16, #tpu.memory_space<vmem>>, vector<256x128xbf16>,
      %41 = vector.extract_strided_slice %34 {offsets = [0, 2, 0], sizes = [16, 16, 128], strides = [1, 1, 1]} : vector<16x18x128xbf16> to vector<16x16x128xbf16>
      %42 = vector.shape_cast %41 : vector<16x16x128xbf16> to vector<256x128xbf16>
      %c0_24 = arith.constant 0 : index
      %c640 = arith.constant 640 : index
      %43 = vector.load %arg7[%c0_24, %c640] : memref<256x1152xbf16, #tpu.memory_space<vmem>>, vector<256x128xbf16>
      tpu.vector_store %arg7[%c0_24, %c640], %42 {strides = array<i32>} : memref<256x1152xbf16, #tpu.memory_space<vmem>>, vector<256x128xbf16>,
      %c2_i32 = arith.constant 2 : i32
      %44 = arith.addi %17, %c2_i32 : i32
      %c0_25 = arith.constant 0 : index
      %45 = arith.index_cast %44 : i32 to index
      %c0_26 = arith.constant 0 : index
      %c0_27 = arith.constant 0 : index
      %46 = vector.load %arg3[%c0_25, %45, %c0_26, %c0_27] : memref<1x18x18x128xbf16, #tpu.memory_space<vmem>>, vector<1x16x18x128xbf16>
      %47 = vector.shape_cast %46 : vector<1x16x18x128xbf16> to vector<16x18x128xbf16>
      %48 = vector.extract_strided_slice %47 {offsets = [0, 0, 0], sizes = [16, 16, 128], strides = [1, 1, 1]} : vector<16x18x128xbf16> to vector<16x16x128xbf16>
      %49 = vector.shape_cast %48 : vector<16x16x128xbf16> to vector<256x128xbf16>
      %c0_28 = arith.constant 0 : index
      %c768 = arith.constant 768 : index
      %50 = vector.load %arg7[%c0_28, %c768] : memref<256x1152xbf16, #tpu.memory_space<vmem>>, vector<256x128xbf16>
      tpu.vector_store %arg7[%c0_28, %c768], %49 {strides = array<i32>} : memref<256x1152xbf16, #tpu.memory_space<vmem>>, vector<256x128xbf16>,
      %51 = vector.extract_strided_slice %47 {offsets = [0, 1, 0], sizes = [16, 16, 128], strides = [1, 1, 1]} : vector<16x18x128xbf16> to vector<16x16x128xbf16>
      %52 = vector.shape_cast %51 : vector<16x16x128xbf16> to vector<256x128xbf16>
      %c0_29 = arith.constant 0 : index
      %c896 = arith.constant 896 : index
      %53 = vector.load %arg7[%c0_29, %c896] : memref<256x1152xbf16, #tpu.memory_space<vmem>>, vector<256x128xbf16>
      tpu.vector_store %arg7[%c0_29, %c896], %52 {strides = array<i32>} : memref<256x1152xbf16, #tpu.memory_space<vmem>>, vector<256x128xbf16>,
      %54 = vector.extract_strided_slice %47 {offsets = [0, 2, 0], sizes = [16, 16, 128], strides = [1, 1, 1]} : vector<16x18x128xbf16> to vector<16x16x128xbf16>
      %55 = vector.shape_cast %54 : vector<16x16x128xbf16> to vector<256x128xbf16>
      %c0_30 = arith.constant 0 : index
      %c1024 = arith.constant 1024 : index
      %56 = vector.load %arg7[%c0_30, %c1024] : memref<256x1152xbf16, #tpu.memory_space<vmem>>, vector<256x128xbf16>
      tpu.vector_store %arg7[%c0_30, %c1024], %55 {strides = array<i32>} : memref<256x1152xbf16, #tpu.memory_space<vmem>>, vector<256x128xbf16>,
    } else {
    }
    %c0 = arith.constant 0 : index
    %c0_1 = arith.constant 0 : index
    %3 = vector.load %arg7[%c0, %c0_1] : memref<256x1152xbf16, #tpu.memory_space<vmem>>, vector<256x1152xbf16>
    %c0_2 = arith.constant 0 : index
    %c0_3 = arith.constant 0 : index
    %4 = vector.load %arg4[%c0_2, %c0_3] : memref<1152x512xbf16, #tpu.memory_space<vmem>>, vector<1152x512xbf16>
    %cst = arith.constant dense<0.000000e+00> : vector<256x512xf32>
    %5 = tpu.matmul %3, %4, %cst {dimension_numbers = #tpu.dot_dimension_numbers<[1], [0], [0], [1], [0, 0, 1, 1], [], []>} : vector<256x1152xbf16>, vector<1152x512xbf16>, vector<256x512xf32> -> vector<256x512xf32>
    %c0_4 = arith.constant 0 : index
    %c0_5 = arith.constant 0 : index
    %6 = vector.load %arg5[%c0_4, %c0_5] : memref<1x512xf32, #tpu.memory_space<vmem>>, vector<1x512xf32>
    %7 = vector.broadcast %6 : vector<1x512xf32> to vector<256x512xf32>
    %8 = arith.addf %5, %7 : vector<256x512xf32>
    %c0_6 = arith.constant 0 : index
    %c512 = arith.constant 512 : index
    %9 = vector.load %arg7[%c0_6, %c512] : memref<256x1152xbf16, #tpu.memory_space<vmem>>, vector<256x128xbf16>
    %10 = tpu.concatenate %9, %9, %9, %9 in 1 : vector<256x128xbf16>, vector<256x128xbf16>, vector<256x128xbf16>, vector<256x128xbf16> -> vector<256x512xbf16>
    %11 = arith.extf %10 : vector<256x512xbf16> to vector<256x512xf32>
    %12 = arith.addf %8, %11 : vector<256x512xf32>
    %c0_7 = arith.constant 0 : index
    %c0_8 = arith.constant 0 : index
    %c0_9 = arith.constant 0 : index
    %13 = vector.load %arg6[%c0_7, %c0_8, %c0_9] : memref<1x256x512xf32, #tpu.memory_space<vmem>>, vector<1x256x512xf32>
    %14 = vector.shape_cast %13 : vector<1x256x512xf32> to vector<256x512xf32>
    %15 = vector.shape_cast %12 : vector<256x512xf32> to vector<1x256x512xf32>
    tpu.vector_store %arg6[%c0_7, %c0_8, %c0_9], %15 {strides = array<i32>} : memref<1x256x512xf32, #tpu.memory_space<vmem>>, vector<1x256x512xf32>,
    return
  }
  func.func @transform_0(%arg0: i32, %arg1: i32, %arg2: i32) -> (i32, i32, i32, i32) {
    %c0_i32 = arith.constant 0 : i32
    %c0_i32_0 = arith.constant 0 : i32
    %c0_i32_1 = arith.constant 0 : i32
    %c0_i32_2 = arith.constant 0 : i32
    return %arg0, %c0_i32, %c0_i32_0, %c0_i32_1 : i32, i32, i32, i32
  }
  func.func @transform_1(%arg0: i32, %arg1: i32, %arg2: i32) -> (i32, i32) {
    %c0_i32 = arith.constant 0 : i32
    %c0_i32_0 = arith.constant 0 : i32
    return %c0_i32, %arg2 : i32, i32
  }
  func.func @transform_2(%arg0: i32, %arg1: i32, %arg2: i32) -> (i32, i32) {
    %c0_i32 = arith.constant 0 : i32
    %c0_i32_0 = arith.constant 0 : i32
    return %c0_i32, %arg2 : i32, i32
  }
  func.func @transform_3(%arg0: i32, %arg1: i32, %arg2: i32) -> (i32, i32, i32) {
    %c0_i32 = arith.constant 0 : i32
    return %arg0, %arg1, %arg2 : i32, i32, i32
  }
}

</mosaic_0001>

<llo_original>
// kernel: dc_up_block_2d.1
$region0: #{dc_up_block_2d.1}
  #allocation0 [shape = 'u32[]', space=smem, size = 0x4, offset = 0x4, fixed_abs, tag = 'smem constant byte address 0x4 - core index']
  #allocation1 [shape = 'u32[144,128]{1,0:T(1,128)}', space=vmem, size = 0x12000, scoped, tag = 'internal scratch']
  #allocation2 [shape = 'bf16[256,1152]{1,0:T(8,128)(2,1)}', space=vmem, size = 0x90000, scoped, tag = 'scratch operand']
  %s0 = inlined_call_operand.vmem [shape: bf16[2,18,18,128], index: 0, kind: input, shape index: {}]
  %s1 = inlined_call_operand.vmem [shape: bf16[1152,512], index: 1, kind: input, shape index: {}]
  %s2 = inlined_call_operand.vmem [shape: f32[1,512], index: 2, kind: input, shape index: {}]
  %s3 = inlined_call_operand.vmem [shape: f32[2,256,512], index: 3, kind: output, shape index: {}]
  %s4 = sld [smem:[#allocation0]]
  $region49: #{dc_up_block_2d.1} parent=0
    _
  %s6 = ssub.s32 1, %s4
  %s7 = scalar_select 0, %s6, %s4
  loop: start=0, step=1, limit=4
  $region2: #{dc_up_block_2d.1} parent=0 // loop_pre_header
    _
  $region3: #{dc_up_block_2d.1} parent=0 // loop_header
    %s9 = sphi 0, %s13
    %p10 = scmp.ge.s32.totalorder %s9, 4
    %s16 = sphi 0, %s35
    %s17 = sphi 0, %s31
    %s18 = sphi 0, %s27
    %s19 = sphi 0, %s16
    %s20 = sphi 0, %s17
    %s21 = sphi 0, %s18
    %s22 = sphi 0, %s19
    %s23 = sphi 0, %s20
    %s24 = sphi 0, %s21
    %s38 = sphi 0, %s40
    %s41 = sphi 0, %s38
    %s42 = sphi 0, %s41
    %s58 = sphi 0, %s42
    %s64 = sphi 0, %s66
    %s67 = sphi 0, %s64
    %s68 = sphi 0, %s67
    %s84 = sphi 0, %s68
    %s90 = sphi 0, %s92
    %s93 = sphi 0, %s90
    %s94 = sphi 0, %s93
    %s110 = sphi 0, %s94
    %s120 = sphi 0, %s122
    %s123 = sphi 0, %s120
    %s124 = sphi 0, %s123
    %s140 = sphi 0, %s124
  $region4: #{dc_up_block_2d.1} parent=0 // loop_header_branch
    %12 = sbr.rel (%p10) target = $region8
  $region5: #{dc_up_block_2d.1} parent=0 // loop_body
    %s14 = ssub.s32 %s9, 1
    %s15 = ssub.s32 %s9, 2
    %s25 = sadd.s32 1, %s18
    %p26 = scmp.ge.s32.totalorder %s25, 1
    %s27 = scalar_select %p26, 0, %s25
    %s28 = sadd.s32 1, %s17
    %s29 = scalar_select %p26, %s28, %s17
    %p30 = scmp.ge.s32.totalorder %s29, 1
    %s31 = scalar_select %p30, 0, %s29
    %s32 = sadd.s32 1, %s16
    %s33 = scalar_select %p30, %s32, %s16
    %p34 = scmp.ge.s32.totalorder %s33, 2
    %s35 = scalar_select %p34, 0, %s33
    %s36 = ssub.s32 %s16, %s35
    %p37 = scmp.eq.s32.totalorder %s36, 0
    %s39 = sadd.s32 %s38, 1
    %s40 = scalar_select %p37, %s38, %s39
    %p43 = pneg %p37
    %p44 = scmp.eq.s32.totalorder %s9, 1
    %p45 = por %p43, %p44
    %p46 = scmp.ne.s32.totalorder %s38, %s41
    %p47 = scmp.eq.s32.totalorder %s9, 0
    %p48 = por %p46, %p47
    %p49 = scmp.ne.s32.totalorder %s38, %s41
    %p50 = scmp.eq.s32.totalorder %s14, 1
    %p51 = por %p49, %p50
    %p52 = scmp.ne.s32.totalorder %s41, %s42
    %p53 = scmp.eq.s32.totalorder %s14, 0
    %p54 = por %p52, %p53
    %p55 = scmp.ne.s32.totalorder %s41, %s42
    %p56 = scmp.eq.s32.totalorder %s15, 1
    %p57 = por %p55, %p56
    %p59 = scmp.ne.s32.totalorder %s42, %s58
    %p60 = scmp.eq.s32.totalorder %s15, 0
    %p61 = por %p59, %p60
    %s62 = ssub.s32 %s18, %s27
    %p63 = scmp.eq.s32.totalorder %s62, 0
    %s65 = sadd.s32 %s64, 1
    %s66 = scalar_select %p63, %s64, %s65
    %p69 = pneg %p63
    %p70 = scmp.eq.s32.totalorder %s9, 1
    %p71 = por %p69, %p70
    %p72 = scmp.ne.s32.totalorder %s64, %s67
    %p73 = scmp.eq.s32.totalorder %s9, 0
    %p74 = por %p72, %p73
    %p75 = scmp.ne.s32.totalorder %s64, %s67
    %p76 = scmp.eq.s32.totalorder %s14, 1
    %p77 = por %p75, %p76
    %p78 = scmp.ne.s32.totalorder %s67, %s68
    %p79 = scmp.eq.s32.totalorder %s14, 0
    %p80 = por %p78, %p79
    %p81 = scmp.ne.s32.totalorder %s67, %s68
    %p82 = scmp.eq.s32.totalorder %s15, 1
    %p83 = por %p81, %p82
    %p85 = scmp.ne.s32.totalorder %s68, %s84
    %p86 = scmp.eq.s32.totalorder %s15, 0
    %p87 = por %p85, %p86
    %s88 = ssub.s32 %s18, %s27
    %p89 = scmp.eq.s32.totalorder %s88, 0
    %s91 = sadd.s32 %s90, 1
    %s92 = scalar_select %p89, %s90, %s91
    %p95 = pneg %p89
    %p96 = scmp.eq.s32.totalorder %s9, 1
    %p97 = por %p95, %p96
    %p98 = scmp.ne.s32.totalorder %s90, %s93
    %p99 = scmp.eq.s32.totalorder %s9, 0
    %p100 = por %p98, %p99
    %p101 = scmp.ne.s32.totalorder %s90, %s93
    %p102 = scmp.eq.s32.totalorder %s14, 1
    %p103 = por %p101, %p102
    %p104 = scmp.ne.s32.totalorder %s93, %s94
    %p105 = scmp.eq.s32.totalorder %s14, 0
    %p106 = por %p104, %p105
    %p107 = scmp.ne.s32.totalorder %s93, %s94
    %p108 = scmp.eq.s32.totalorder %s15, 1
    %p109 = por %p107, %p108
    %p111 = scmp.ne.s32.totalorder %s94, %s110
    %p112 = scmp.eq.s32.totalorder %s15, 0
    %p113 = por %p111, %p112
    %s114 = ssub.s32 %s16, %s35
    %s115 = ssub.s32 %s17, %s31
    %s116 = sor.u32 %s114, %s115
    %s117 = ssub.s32 %s18, %s27
    %s118 = sor.u32 %s116, %s117
    %p119 = scmp.eq.s32.totalorder %s118, 0
    %s121 = sadd.s32 %s120, 1
    %s122 = scalar_select %p119, %s120, %s121
    %p125 = pneg %p119
    %p126 = scmp.eq.s32.totalorder %s9, 1
    %p127 = por %p125, %p126
    %p128 = scmp.ne.s32.totalorder %s120, %s123
    %p129 = scmp.eq.s32.totalorder %s9, 0
    %p130 = por %p128, %p129
    %p131 = scmp.ne.s32.totalorder %s120, %s123
    %p132 = scmp.eq.s32.totalorder %s14, 1
    %p133 = por %p131, %p132
    %p134 = scmp.ne.s32.totalorder %s123, %s124
    %p135 = scmp.eq.s32.totalorder %s14, 0
    %p136 = por %p134, %p135
    %p137 = scmp.ne.s32.totalorder %s123, %s124
    %p138 = scmp.eq.s32.totalorder %s15, 1
    %p139 = por %p137, %p138
    %p141 = scmp.ne.s32.totalorder %s124, %s140
    %p142 = scmp.eq.s32.totalorder %s15, 0
    %p143 = por %p141, %p142
    %p144 = scmp.le.s32.totalorder 1, %s9
    %p145 = scmp.lt.s32.totalorder %s9, 3
    %p146 = pnand %p144, %p145
    %p147 = pneg %p146
    // Predicated region
    $region9: #{dc_up_block_2d.1} parent=5 // pred_check
      _
    $region10: #{dc_up_block_2d.1} parent=5 // pred_check_branch
      %149 = sbr.rel (%p146) target = $region12
    $region11: #{dc_up_block_2d.1} parent=5 // pred_region
      %s150 = ssub.s32 %s9, 1
      // Predicated region
      $region13: #{dc_up_block_2d.1} parent=11 // pred_check
        %p151 = pneg %p80
      $region14: #{dc_up_block_2d.1} parent=11 // pred_check_branch
        %153 = sbr.rel (%p151) target = $region16
      $region15: #{dc_up_block_2d.1} parent=11 // pred_region
        %s154 = smul.u32 4, %s21
        %p155 = scmp.lt.s32.totalorder %s154, 3
        %s156 = scalar_select %p155, %s154, 3
        %s157 = smul.addr %s156, 4
        %s158 = scalar_lea.vmem %s1, %s157
        %s159 = smul.u32 4, %s21
      $region16: #{dc_up_block_2d.1} parent=11 // pred_fallthru
        _
      // Predicated region
      $region17: #{dc_up_block_2d.1} parent=11 // pred_check
        %p160 = pneg %p106
      $region18: #{dc_up_block_2d.1} parent=11 // pred_check_branch
        %162 = sbr.rel (%p160) target = $region20
      $region19: #{dc_up_block_2d.1} parent=11 // pred_region
        %s163 = smul.u32 4, %s21
        %p164 = scmp.lt.s32.totalorder %s163, 3
        %s165 = scalar_select %p164, %s163, 3
        %s166 = scalar_lea.vmem %s2, %s165
        %s167 = smul.u32 4, %s21
      $region20: #{dc_up_block_2d.1} parent=11 // pred_fallthru
        _
    $region12: #{dc_up_block_2d.1} parent=5 // pred_fallthru
      _
    %p168 = scmp.lt.s32.totalorder %s9, 2
    // Predicated region
    $region21: #{dc_up_block_2d.1} parent=5 // pred_check
      %p169 = pneg %p168
    $region22: #{dc_up_block_2d.1} parent=5 // pred_check_branch
      %171 = sbr.rel (%p169) target = $region24
    $region23: #{dc_up_block_2d.1} parent=5 // pred_region
      // Predicated region
      $region25: #{dc_up_block_2d.1} parent=23 // pred_check
        %p172 = pneg %p48
      $region26: #{dc_up_block_2d.1} parent=23 // pred_check_branch
        %174 = sbr.rel (%p172) target = $region28
      $region27: #{dc_up_block_2d.1} parent=23 // pred_region
        %p175 = scmp.lt.s32.totalorder %s16, 1
        %s176 = scalar_select %p175, %s16, 1
        %s177 = smul.addr %s176, 54
        %s178 = smul.addr %s177, 4
        %s179 = scalar_lea.vmem %s0, %s178
      $region28: #{dc_up_block_2d.1} parent=23 // pred_fallthru
        _
    $region24: #{dc_up_block_2d.1} parent=5 // pred_fallthru
      _
    %p180 = scmp.le.s32.totalorder 1, %s9
    %p181 = scmp.lt.s32.totalorder %s9, 3
    %p182 = pnand %p180, %p181
    %p183 = pneg %p182
    // Predicated region
    $region29: #{dc_up_block_2d.1} parent=5 // pred_check
      _
    $region30: #{dc_up_block_2d.1} parent=5 // pred_check_branch
      %185 = sbr.rel (%p182) target = $region32
    $region31: #{dc_up_block_2d.1} parent=5 // pred_region
      %s186 = ssub.s32 %s9, 1
      %p187 = scmp.lt.s32.totalorder %s19, 1
      %s188 = scalar_select %p187, %s19, 1
      %s189 = smul.addr %s188, 54
      %s190 = smul.addr %s189, 4
      %s191 = scalar_lea.vmem %s0, %s190
      %p192 = pneg %p54
      %p193 = pneg %p51
      %s194 = smul.u32 4, %s21
      %p195 = scmp.lt.s32.totalorder %s194, 3
      %s196 = scalar_select %p195, %s194, 3
      %s197 = smul.addr %s196, 4
      %s198 = scalar_lea.vmem %s1, %s197
      %p199 = pneg %p80
      %p200 = pneg %p77
      %s201 = smul.u32 4, %s21
      %p202 = scmp.lt.s32.totalorder %s201, 3
      %s203 = scalar_select %p202, %s201, 3
      %s204 = scalar_lea.vmem %s2, %s203
      %p205 = pneg %p106
      %p206 = pneg %p103
      %p207 = pneg %p136
      %p208 = pneg %p133
      %s209 = smul.u32 32, %s20
      %s210 = smul.u32 4, %s21
      %p211 = scmp.lt.s32.totalorder %s19, 1
      %s212 = scalar_select %p211, %s19, 1
      %p213 = scmp.lt.s32.totalorder %s209, 31
      %s214 = scalar_select %p213, %s209, 31
      %p215 = scmp.lt.s32.totalorder %s210, 3
      %s216 = scalar_select %p215, %s210, 3
      %s217 = smul.addr %s214, 4
      %s218 = sadd.s32 %s216, %s217
      %s219 = smul.addr %s212, 128
      %s220 = sadd.s32 %s218, %s219
      %s221 = smul.addr %s220, 8
      %s222 = scalar_lea.vmem %s3, %s221
      %p223 = scmp.lt.s32.totalorder %s19, 1
      %s224 = scalar_select %p223, %s19, 1
      %s225 = smul.addr %s224, 54
      %s226 = smul.addr %s225, 4
      %s227 = scalar_lea.vmem %s0, %s226
      %s228 = smul.u32 4, %s21
      %p229 = scmp.lt.s32.totalorder %s228, 3
      %s230 = scalar_select %p229, %s228, 3
      %s231 = smul.addr %s230, 4
      %s232 = scalar_lea.vmem %s1, %s231
      %s233 = smul.u32 4, %s21
      %s234 = smul.u32 4, %s21
      %p235 = scmp.lt.s32.totalorder %s234, 3
      %s236 = scalar_select %p235, %s234, 3
      %s237 = scalar_lea.vmem %s2, %s236
      %s238 = smul.u32 4, %s21
      %s239 = smul.u32 32, %s20
      %s240 = smul.u32 4, %s21
      %p241 = scmp.lt.s32.totalorder %s19, 1
      %s242 = scalar_select %p241, %s19, 1
      %p243 = scmp.lt.s32.totalorder %s239, 31
      %s244 = scalar_select %p243, %s239, 31
      %p245 = scmp.lt.s32.totalorder %s240, 3
      %s246 = scalar_select %p245, %s240, 3
      %s247 = smul.addr %s244, 4
      %s248 = sadd.s32 %s246, %s247
      %s249 = smul.addr %s242, 128
      %s250 = sadd.s32 %s248, %s249
      %s251 = smul.addr %s250, 8
      %s252 = scalar_lea.vmem %s3, %s251
      %s253 = smul.u32 32, %s20
      %s254 = smul.u32 4, %s21
      %p256 = scmp.eq.s32.totalorder %s21, 0
      // Predicated region
      $region33: #{dc_up_block_2d.1} parent=31 // pred_check
        %p257 = pneg %p256
      $region34: #{dc_up_block_2d.1} parent=31 // pred_check_branch
        %259 = sbr.rel (%p257) target = $region36
      $region35: #{dc_up_block_2d.1} parent=31 // pred_region
        %s260 = smul.u32 %s20, 16
        %s261 = smul.u32 %s260, 3
        %s262 = smul.addr %s261, 4
        %s263 = scalar_lea.vmem %s227, %s262
        %v264 = vld [vmem:[%s263] sm:$0xf]
        %v265 = vld [vmem:[%s263 + $0x4] sm:$0xf]
        %v266 = vld [vmem:[%s263 + $0x8] sm:$0x1]
        %v267 = vld [vmem:[%s263 + $0xc] sm:$0xf]
        %v268 = vld [vmem:[%s263 + $0x10] sm:$0xf]
        %v269 = vld [vmem:[%s263 + $0x14] sm:$0x1]
        %v270 = vld [vmem:[%s263 + $0x18] sm:$0xf]
        %v271 = vld [vmem:[%s263 + $0x1c] sm:$0xf]
        %v272 = vld [vmem:[%s263 + $0x20] sm:$0x1]
        %v273 = vld [vmem:[%s263 + $0x24] sm:$0xf]
        %v274 = vld [vmem:[%s263 + $0x28] sm:$0xf]
        %v275 = vld [vmem:[%s263 + $0x2c] sm:$0x1]
        %v276 = vld [vmem:[%s263 + $0x30] sm:$0xf]
        %v277 = vld [vmem:[%s263 + $0x34] sm:$0xf]
        %v278 = vld [vmem:[%s263 + $0x38] sm:$0x1]
        %v279 = vld [vmem:[%s263 + $0x3c] sm:$0xf]
        %v280 = vld [vmem:[%s263 + $0x40] sm:$0xf]
        %v281 = vld [vmem:[%s263 + $0x44] sm:$0x1]
        %v282 = vld [vmem:[%s263 + $0x48] sm:$0xf]
        %v283 = vld [vmem:[%s263 + $0x4c] sm:$0xf]
        %v284 = vld [vmem:[%s263 + $0x50] sm:$0x1]
        %v285 = vld [vmem:[%s263 + $0x54] sm:$0xf]
        %v286 = vld [vmem:[%s263 + $0x58] sm:$0xf]
        %v287 = vld [vmem:[%s263 + $0x5c] sm:$0x1]
        %v288 = vld [vmem:[%s263 + $0x60] sm:$0xf]
        %v289 = vld [vmem:[%s263 + $0x64] sm:$0xf]
        %v290 = vld [vmem:[%s263 + $0x68] sm:$0x1]
        %v291 = vld [vmem:[%s263 + $0x6c] sm:$0xf]
        %v292 = vld [vmem:[%s263 + $0x70] sm:$0xf]
        %v293 = vld [vmem:[%s263 + $0x74] sm:$0x1]
        %v294 = vld [vmem:[%s263 + $0x78] sm:$0xf]
        %v295 = vld [vmem:[%s263 + $0x7c] sm:$0xf]
        %v296 = vld [vmem:[%s263 + $0x80] sm:$0x1]
        %v297 = vld [vmem:[%s263 + $0x84] sm:$0xf]
        %v298 = vld [vmem:[%s263 + $0x88] sm:$0xf]
        %v299 = vld [vmem:[%s263 + $0x8c] sm:$0x1]
        %v300 = vld [vmem:[%s263 + $0x90] sm:$0xf]
        %v301 = vld [vmem:[%s263 + $0x94] sm:$0xf]
        %v302 = vld [vmem:[%s263 + $0x98] sm:$0x1]
        %v303 = vld [vmem:[%s263 + $0x9c] sm:$0xf]
        %v304 = vld [vmem:[%s263 + $0xa0] sm:$0xf]
        %v305 = vld [vmem:[%s263 + $0xa4] sm:$0x1]
        %v306 = vld [vmem:[%s263 + $0xa8] sm:$0xf]
        %v307 = vld [vmem:[%s263 + $0xac] sm:$0xf]
        %v308 = vld [vmem:[%s263 + $0xb0] sm:$0x1]
        %v309 = vld [vmem:[%s263 + $0xb4] sm:$0xf]
        %v310 = vld [vmem:[%s263 + $0xb8] sm:$0xf]
        %v311 = vld [vmem:[%s263 + $0xbc] sm:$0x1]
        %312 = vst [vmem:[#allocation2] sm:$0xf] %v264
        %313 = vst [vmem:[#allocation2 + $0x24] sm:$0xf] %v265
        %314 = vst [vmem:[#allocation2 + $0x48] sm:$0xf] %v267
        %315 = vst [vmem:[#allocation2 + $0x6c] sm:$0xf] %v268
        %316 = vst [vmem:[#allocation2 + $0x90] sm:$0xf] %v270
        %317 = vst [vmem:[#allocation2 + $0xb4] sm:$0xf] %v271
        %318 = vst [vmem:[#allocation2 + $0xd8] sm:$0xf] %v273
        %319 = vst [vmem:[#allocation2 + $0xfc] sm:$0xf] %v274
        %320 = vst [vmem:[#allocation2 + $0x120] sm:$0xf] %v276
        %321 = vst [vmem:[#allocation2 + $0x144] sm:$0xf] %v277
        %322 = vst [vmem:[#allocation2 + $0x168] sm:$0xf] %v279
        %323 = vst [vmem:[#allocation2 + $0x18c] sm:$0xf] %v280
        %324 = vst [vmem:[#allocation2 + $0x1b0] sm:$0xf] %v282
        %325 = vst [vmem:[#allocation2 + $0x1d4] sm:$0xf] %v283
        %326 = vst [vmem:[#allocation2 + $0x1f8] sm:$0xf] %v285
        %327 = vst [vmem:[#allocation2 + $0x21c] sm:$0xf] %v286
        %328 = vst [vmem:[#allocation2 + $0x240] sm:$0xf] %v288
        %329 = vst [vmem:[#allocation2 + $0x264] sm:$0xf] %v289
        %330 = vst [vmem:[#allocation2 + $0x288] sm:$0xf] %v291
        %331 = vst [vmem:[#allocation2 + $0x2ac] sm:$0xf] %v292
        %332 = vst [vmem:[#allocation2 + $0x2d0] sm:$0xf] %v294
        %333 = vst [vmem:[#allocation2 + $0x2f4] sm:$0xf] %v295
        %334 = vst [vmem:[#allocation2 + $0x318] sm:$0xf] %v297
        %335 = vst [vmem:[#allocation2 + $0x33c] sm:$0xf] %v298
        %336 = vst [vmem:[#allocation2 + $0x360] sm:$0xf] %v300
        %337 = vst [vmem:[#allocation2 + $0x384] sm:$0xf] %v301
        %338 = vst [vmem:[#allocation2 + $0x3a8] sm:$0xf] %v303
        %339 = vst [vmem:[#allocation2 + $0x3cc] sm:$0xf] %v304
        %340 = vst [vmem:[#allocation2 + $0x3f0] sm:$0xf] %v306
        %341 = vst [vmem:[#allocation2 + $0x414] sm:$0xf] %v307
        %342 = vst [vmem:[#allocation2 + $0x438] sm:$0xf] %v309
        %343 = vst [vmem:[#allocation2 + $0x45c] sm:$0xf] %v310
        %vm344 = vsmask.f32 3328
        %vm345 = vsmask.f32 7440
        %vm346 = vmor %vm344, %vm345
        %v348 = vshrl.u32 %v264, 16
        %v350 = vrot.slane %v348, 4
        %v351 = vshll.u32 %v264, 16
        %v353 = vrot.slane %v351, 5
        %v354 = vor.u32 %v350, %v353
        %v355 = vrot.slane %v354, 4
        %v357 = vshll.u32 %v265, 16
        %v359 = vrot.slane %v357, 5
        %v360 = vsel %vm346, %v355, %v359
        %v361 = vshrl.u32 %v265, 16
        %v363 = vrot.slane %v361, 4
        %v364 = vor.u32 %v363, %v359
        %v365 = vrot.slane %v364, 4
        %v367 = vshll.u32 %v266, 16
        %v369 = vrot.slane %v367, 5
        %v370 = vsel %vm346, %v365, %v369
        %v372 = vshrl.u32 %v267, 16
        %v374 = vrot.slane %v372, 4
        %v375 = vshll.u32 %v267, 16
        %v377 = vrot.slane %v375, 5
        %v378 = vor.u32 %v374, %v377
        %v379 = vrot.slane %v378, 4
        %v381 = vshll.u32 %v268, 16
        %v383 = vrot.slane %v381, 5
        %v384 = vsel %vm346, %v379, %v383
        %v385 = vshrl.u32 %v268, 16
        %v387 = vrot.slane %v385, 4
        %v388 = vor.u32 %v387, %v383
        %v389 = vrot.slane %v388, 4
        %v391 = vshll.u32 %v269, 16
        %v393 = vrot.slane %v391, 5
        %v394 = vsel %vm346, %v389, %v393
        %v396 = vshrl.u32 %v270, 16
        %v398 = vrot.slane %v396, 4
        %v399 = vshll.u32 %v270, 16
        %v401 = vrot.slane %v399, 5
        %v402 = vor.u32 %v398, %v401
        %v403 = vrot.slane %v402, 4
        %v405 = vshll.u32 %v271, 16
        %v407 = vrot.slane %v405, 5
        %v408 = vsel %vm346, %v403, %v407
        %v409 = vshrl.u32 %v271, 16
        %v411 = vrot.slane %v409, 4
        %v412 = vor.u32 %v411, %v407
        %v413 = vrot.slane %v412, 4
        %v415 = vshll.u32 %v272, 16
        %v417 = vrot.slane %v415, 5
        %v418 = vsel %vm346, %v413, %v417
        %v420 = vshrl.u32 %v273, 16
        %v422 = vrot.slane %v420, 4
        %v423 = vshll.u32 %v273, 16
        %v425 = vrot.slane %v423, 5
        %v426 = vor.u32 %v422, %v425
        %v427 = vrot.slane %v426, 4
        %v429 = vshll.u32 %v274, 16
        %v431 = vrot.slane %v429, 5
        %v432 = vsel %vm346, %v427, %v431
        %v433 = vshrl.u32 %v274, 16
        %v435 = vrot.slane %v433, 4
        %v436 = vor.u32 %v435, %v431
        %v437 = vrot.slane %v436, 4
        %v439 = vshll.u32 %v275, 16
        %v441 = vrot.slane %v439, 5
        %v442 = vsel %vm346, %v437, %v441
        %v444 = vshrl.u32 %v276, 16
        %v446 = vrot.slane %v444, 4
        %v447 = vshll.u32 %v276, 16
        %v449 = vrot.slane %v447, 5
        %v450 = vor.u32 %v446, %v449
        %v451 = vrot.slane %v450, 4
        %v453 = vshll.u32 %v277, 16
        %v455 = vrot.slane %v453, 5
        %v456 = vsel %vm346, %v451, %v455
        %v457 = vshrl.u32 %v277, 16
        %v459 = vrot.slane %v457, 4
        %v460 = vor.u32 %v459, %v455
        %v461 = vrot.slane %v460, 4
        %v463 = vshll.u32 %v278, 16
        %v465 = vrot.slane %v463, 5
        %v466 = vsel %vm346, %v461, %v465
        %v468 = vshrl.u32 %v279, 16
        %v470 = vrot.slane %v468, 4
        %v471 = vshll.u32 %v279, 16
        %v473 = vrot.slane %v471, 5
        %v474 = vor.u32 %v470, %v473
        %v475 = vrot.slane %v474, 4
        %v477 = vshll.u32 %v280, 16
        %v479 = vrot.slane %v477, 5
        %v480 = vsel %vm346, %v475, %v479
        %v481 = vshrl.u32 %v280, 16
        %v483 = vrot.slane %v481, 4
        %v484 = vor.u32 %v483, %v479
        %v485 = vrot.slane %v484, 4
        %v487 = vshll.u32 %v281, 16
        %v489 = vrot.slane %v487, 5
        %v490 = vsel %vm346, %v485, %v489
        %v492 = vshrl.u32 %v282, 16
        %v494 = vrot.slane %v492, 4
        %v495 = vshll.u32 %v282, 16
        %v497 = vrot.slane %v495, 5
        %v498 = vor.u32 %v494, %v497
        %v499 = vrot.slane %v498, 4
        %v501 = vshll.u32 %v283, 16
        %v503 = vrot.slane %v501, 5
        %v504 = vsel %vm346, %v499, %v503
        %v505 = vshrl.u32 %v283, 16
        %v507 = vrot.slane %v505, 4
        %v508 = vor.u32 %v507, %v503
        %v509 = vrot.slane %v508, 4
        %v511 = vshll.u32 %v284, 16
        %v513 = vrot.slane %v511, 5
        %v514 = vsel %vm346, %v509, %v513
        %v516 = vshrl.u32 %v285, 16
        %v518 = vrot.slane %v516, 4
        %v519 = vshll.u32 %v285, 16
        %v521 = vrot.slane %v519, 5
        %v522 = vor.u32 %v518, %v521
        %v523 = vrot.slane %v522, 4
        %v525 = vshll.u32 %v286, 16
        %v527 = vrot.slane %v525, 5
        %v528 = vsel %vm346, %v523, %v527
        %v529 = vshrl.u32 %v286, 16
        %v531 = vrot.slane %v529, 4
        %v532 = vor.u32 %v531, %v527
        %v533 = vrot.slane %v532, 4
        %v535 = vshll.u32 %v287, 16
        %v537 = vrot.slane %v535, 5
        %v538 = vsel %vm346, %v533, %v537
        %v540 = vshrl.u32 %v288, 16
        %v542 = vrot.slane %v540, 4
        %v543 = vshll.u32 %v288, 16
        %v545 = vrot.slane %v543, 5
        %v546 = vor.u32 %v542, %v545
        %v547 = vrot.slane %v546, 4
        %v549 = vshll.u32 %v289, 16
        %v551 = vrot.slane %v549, 5
        %v552 = vsel %vm346, %v547, %v551
        %v553 = vshrl.u32 %v289, 16
        %v555 = vrot.slane %v553, 4
        %v556 = vor.u32 %v555, %v551
        %v557 = vrot.slane %v556, 4
        %v559 = vshll.u32 %v290, 16
        %v561 = vrot.slane %v559, 5
        %v562 = vsel %vm346, %v557, %v561
        %v564 = vshrl.u32 %v291, 16
        %v566 = vrot.slane %v564, 4
        %v567 = vshll.u32 %v291, 16
        %v569 = vrot.slane %v567, 5
        %v570 = vor.u32 %v566, %v569
        %v571 = vrot.slane %v570, 4
        %v573 = vshll.u32 %v292, 16
        %v575 = vrot.slane %v573, 5
        %v576 = vsel %vm346, %v571, %v575
        %v577 = vshrl.u32 %v292, 16
        %v579 = vrot.slane %v577, 4
        %v580 = vor.u32 %v579, %v575
        %v581 = vrot.slane %v580, 4
        %v583 = vshll.u32 %v293, 16
        %v585 = vrot.slane %v583, 5
        %v586 = vsel %vm346, %v581, %v585
        %v588 = vshrl.u32 %v294, 16
        %v590 = vrot.slane %v588, 4
        %v591 = vshll.u32 %v294, 16
        %v593 = vrot.slane %v591, 5
        %v594 = vor.u32 %v590, %v593
        %v595 = vrot.slane %v594, 4
        %v597 = vshll.u32 %v295, 16
        %v599 = vrot.slane %v597, 5
        %v600 = vsel %vm346, %v595, %v599
        %v601 = vshrl.u32 %v295, 16
        %v603 = vrot.slane %v601, 4
        %v604 = vor.u32 %v603, %v599
        %v605 = vrot.slane %v604, 4
        %v607 = vshll.u32 %v296, 16
        %v609 = vrot.slane %v607, 5
        %v610 = vsel %vm346, %v605, %v609
        %v612 = vshrl.u32 %v297, 16
        %v614 = vrot.slane %v612, 4
        %v615 = vshll.u32 %v297, 16
        %v617 = vrot.slane %v615, 5
        %v618 = vor.u32 %v614, %v617
        %v619 = vrot.slane %v618, 4
        %v621 = vshll.u32 %v298, 16
        %v623 = vrot.slane %v621, 5
        %v624 = vsel %vm346, %v619, %v623
        %v625 = vshrl.u32 %v298, 16
        %v627 = vrot.slane %v625, 4
        %v628 = vor.u32 %v627, %v623
        %v629 = vrot.slane %v628, 4
        %v631 = vshll.u32 %v299, 16
        %v633 = vrot.slane %v631, 5
        %v634 = vsel %vm346, %v629, %v633
        %v636 = vshrl.u32 %v300, 16
        %v638 = vrot.slane %v636, 4
        %v639 = vshll.u32 %v300, 16
        %v641 = vrot.slane %v639, 5
        %v642 = vor.u32 %v638, %v641
        %v643 = vrot.slane %v642, 4
        %v645 = vshll.u32 %v301, 16
        %v647 = vrot.slane %v645, 5
        %v648 = vsel %vm346, %v643, %v647
        %v649 = vshrl.u32 %v301, 16
        %v651 = vrot.slane %v649, 4
        %v652 = vor.u32 %v651, %v647
        %v653 = vrot.slane %v652, 4
        %v655 = vshll.u32 %v302, 16
        %v657 = vrot.slane %v655, 5
        %v658 = vsel %vm346, %v653, %v657
        %v660 = vshrl.u32 %v303, 16
        %v662 = vrot.slane %v660, 4
        %v663 = vshll.u32 %v303, 16
        %v665 = vrot.slane %v663, 5
        %v666 = vor.u32 %v662, %v665
        %v667 = vrot.slane %v666, 4
        %v669 = vshll.u32 %v304, 16
        %v671 = vrot.slane %v669, 5
        %v672 = vsel %vm346, %v667, %v671
        %v673 = vshrl.u32 %v304, 16
        %v675 = vrot.slane %v673, 4
        %v676 = vor.u32 %v675, %v671
        %v677 = vrot.slane %v676, 4
        %v679 = vshll.u32 %v305, 16
        %v681 = vrot.slane %v679, 5
        %v682 = vsel %vm346, %v677, %v681
        %v684 = vshrl.u32 %v306, 16
        %v686 = vrot.slane %v684, 4
        %v687 = vshll.u32 %v306, 16
        %v689 = vrot.slane %v687, 5
        %v690 = vor.u32 %v686, %v689
        %v691 = vrot.slane %v690, 4
        %v693 = vshll.u32 %v307, 16
        %v695 = vrot.slane %v693, 5
        %v696 = vsel %vm346, %v691, %v695
        %v697 = vshrl.u32 %v307, 16
        %v699 = vrot.slane %v697, 4
        %v700 = vor.u32 %v699, %v695
        %v701 = vrot.slane %v700, 4
        %v703 = vshll.u32 %v308, 16
        %v705 = vrot.slane %v703, 5
        %v706 = vsel %vm346, %v701, %v705
        %v708 = vshrl.u32 %v309, 16
        %v710 = vrot.slane %v708, 4
        %v711 = vshll.u32 %v309, 16
        %v713 = vrot.slane %v711, 5
        %v714 = vor.u32 %v710, %v713
        %v715 = vrot.slane %v714, 4
        %v717 = vshll.u32 %v310, 16
        %v719 = vrot.slane %v717, 5
        %v720 = vsel %vm346, %v715, %v719
        %v721 = vshrl.u32 %v310, 16
        %v723 = vrot.slane %v721, 4
        %v724 = vor.u32 %v723, %v719
        %v725 = vrot.slane %v724, 4
        %v727 = vshll.u32 %v311, 16
        %v729 = vrot.slane %v727, 5
        %v730 = vsel %vm346, %v725, %v729
        %763 = vst [vmem:[#allocation2 + $0x4] sm:$0xf] %v360
        %764 = vst [vmem:[#allocation2 + $0x28] sm:$0xf] %v370
        %765 = vst [vmem:[#allocation2 + $0x4c] sm:$0xf] %v384
        %766 = vst [vmem:[#allocation2 + $0x70] sm:$0xf] %v394
        %767 = vst [vmem:[#allocation2 + $0x94] sm:$0xf] %v408
        %768 = vst [vmem:[#allocation2 + $0xb8] sm:$0xf] %v418
        %769 = vst [vmem:[#allocation2 + $0xdc] sm:$0xf] %v432
        %770 = vst [vmem:[#allocation2 + $0x100] sm:$0xf] %v442
        %771 = vst [vmem:[#allocation2 + $0x124] sm:$0xf] %v456
        %772 = vst [vmem:[#allocation2 + $0x148] sm:$0xf] %v466
        %773 = vst [vmem:[#allocation2 + $0x16c] sm:$0xf] %v480
        %774 = vst [vmem:[#allocation2 + $0x190] sm:$0xf] %v490
        %775 = vst [vmem:[#allocation2 + $0x1b4] sm:$0xf] %v504
        %776 = vst [vmem:[#allocation2 + $0x1d8] sm:$0xf] %v514
        %777 = vst [vmem:[#allocation2 + $0x1fc] sm:$0xf] %v528
        %778 = vst [vmem:[#allocation2 + $0x220] sm:$0xf] %v538
        %779 = vst [vmem:[#allocation2 + $0x244] sm:$0xf] %v552
        %780 = vst [vmem:[#allocation2 + $0x268] sm:$0xf] %v562
        %781 = vst [vmem:[#allocation2 + $0x28c] sm:$0xf] %v576
        %782 = vst [vmem:[#allocation2 + $0x2b0] sm:$0xf] %v586
        %783 = vst [vmem:[#allocation2 + $0x2d4] sm:$0xf] %v600
        %784 = vst [vmem:[#allocation2 + $0x2f8] sm:$0xf] %v610
        %785 = vst [vmem:[#allocation2 + $0x31c] sm:$0xf] %v624
        %786 = vst [vmem:[#allocation2 + $0x340] sm:$0xf] %v634
        %787 = vst [vmem:[#allocation2 + $0x364] sm:$0xf] %v648
        %788 = vst [vmem:[#allocation2 + $0x388] sm:$0xf] %v658
        %789 = vst [vmem:[#allocation2 + $0x3ac] sm:$0xf] %v672
        %790 = vst [vmem:[#allocation2 + $0x3d0] sm:$0xf] %v682
        %791 = vst [vmem:[#allocation2 + $0x3f4] sm:$0xf] %v696
        %792 = vst [vmem:[#allocation2 + $0x418] sm:$0xf] %v706
        %793 = vst [vmem:[#allocation2 + $0x43c] sm:$0xf] %v720
        %794 = vst [vmem:[#allocation2 + $0x460] sm:$0xf] %v730
        %vm843 = vcmask 1042432
        %vm844 = vcmask 1046532
        %vm845 = vmor %vm843, %vm844
        %v846 = vrot.slane %v264, 5
        %v847 = vrot.slane %v846, 4
        %v848 = vrot.slane %v265, 5
        %v849 = vsel %vm845, %v847, %v848
        %v850 = vrot.slane %v848, 4
        %v851 = vrot.slane %v266, 5
        %v852 = vsel %vm845, %v850, %v851
        %v853 = vrot.slane %v267, 5
        %v854 = vrot.slane %v853, 4
        %v855 = vrot.slane %v268, 5
        %v856 = vsel %vm845, %v854, %v855
        %v857 = vrot.slane %v855, 4
        %v858 = vrot.slane %v269, 5
        %v859 = vsel %vm845, %v857, %v858
        %v860 = vrot.slane %v270, 5
        %v861 = vrot.slane %v860, 4
        %v862 = vrot.slane %v271, 5
        %v863 = vsel %vm845, %v861, %v862
        %v864 = vrot.slane %v862, 4
        %v865 = vrot.slane %v272, 5
        %v866 = vsel %vm845, %v864, %v865
        %v867 = vrot.slane %v273, 5
        %v868 = vrot.slane %v867, 4
        %v869 = vrot.slane %v274, 5
        %v870 = vsel %vm845, %v868, %v869
        %v871 = vrot.slane %v869, 4
        %v872 = vrot.slane %v275, 5
        %v873 = vsel %vm845, %v871, %v872
        %v874 = vrot.slane %v276, 5
        %v875 = vrot.slane %v874, 4
        %v876 = vrot.slane %v277, 5
        %v877 = vsel %vm845, %v875, %v876
        %v878 = vrot.slane %v876, 4
        %v879 = vrot.slane %v278, 5
        %v880 = vsel %vm845, %v878, %v879
        %v881 = vrot.slane %v279, 5
        %v882 = vrot.slane %v881, 4
        %v883 = vrot.slane %v280, 5
        %v884 = vsel %vm845, %v882, %v883
        %v885 = vrot.slane %v883, 4
        %v886 = vrot.slane %v281, 5
        %v887 = vsel %vm845, %v885, %v886
        %v888 = vrot.slane %v282, 5
        %v889 = vrot.slane %v888, 4
        %v890 = vrot.slane %v283, 5
        %v891 = vsel %vm845, %v889, %v890
        %v892 = vrot.slane %v890, 4
        %v893 = vrot.slane %v284, 5
        %v894 = vsel %vm845, %v892, %v893
        %v895 = vrot.slane %v285, 5
        %v896 = vrot.slane %v895, 4
        %v897 = vrot.slane %v286, 5
        %v898 = vsel %vm845, %v896, %v897
        %v899 = vrot.slane %v897, 4
        %v900 = vrot.slane %v287, 5
        %v901 = vsel %vm845, %v899, %v900
        %v902 = vrot.slane %v288, 5
        %v903 = vrot.slane %v902, 4
        %v904 = vrot.slane %v289, 5
        %v905 = vsel %vm845, %v903, %v904
        %v906 = vrot.slane %v904, 4
        %v907 = vrot.slane %v290, 5
        %v908 = vsel %vm845, %v906, %v907
        %v909 = vrot.slane %v291, 5
        %v910 = vrot.slane %v909, 4
        %v911 = vrot.slane %v292, 5
        %v912 = vsel %vm845, %v910, %v911
        %v913 = vrot.slane %v911, 4
        %v914 = vrot.slane %v293, 5
        %v915 = vsel %vm845, %v913, %v914
        %v916 = vrot.slane %v294, 5
        %v917 = vrot.slane %v916, 4
        %v918 = vrot.slane %v295, 5
        %v919 = vsel %vm845, %v917, %v918
        %v920 = vrot.slane %v918, 4
        %v921 = vrot.slane %v296, 5
        %v922 = vsel %vm845, %v920, %v921
        %v923 = vrot.slane %v297, 5
        %v924 = vrot.slane %v923, 4
        %v925 = vrot.slane %v298, 5
        %v926 = vsel %vm845, %v924, %v925
        %v927 = vrot.slane %v925, 4
        %v928 = vrot.slane %v299, 5
        %v929 = vsel %vm845, %v927, %v928
        %v930 = vrot.slane %v300, 5
        %v931 = vrot.slane %v930, 4
        %v932 = vrot.slane %v301, 5
        %v933 = vsel %vm845, %v931, %v932
        %v934 = vrot.slane %v932, 4
        %v935 = vrot.slane %v302, 5
        %v936 = vsel %vm845, %v934, %v935
        %v937 = vrot.slane %v303, 5
        %v938 = vrot.slane %v937, 4
        %v939 = vrot.slane %v304, 5
        %v940 = vsel %vm845, %v938, %v939
        %v941 = vrot.slane %v939, 4
        %v942 = vrot.slane %v305, 5
        %v943 = vsel %vm845, %v941, %v942
        %v944 = vrot.slane %v306, 5
        %v945 = vrot.slane %v944, 4
        %v946 = vrot.slane %v307, 5
        %v947 = vsel %vm845, %v945, %v946
        %v948 = vrot.slane %v946, 4
        %v949 = vrot.slane %v308, 5
        %v950 = vsel %vm845, %v948, %v949
        %v951 = vrot.slane %v309, 5
        %v952 = vrot.slane %v951, 4
        %v953 = vrot.slane %v310, 5
        %v954 = vsel %vm845, %v952, %v953
        %v955 = vrot.slane %v953, 4
        %v956 = vrot.slane %v311, 5
        %v957 = vsel %vm845, %v955, %v956
        %990 = vst [vmem:[#allocation2 + $0x8] sm:$0xf] %v849
        %991 = vst [vmem:[#allocation2 + $0x2c] sm:$0xf] %v852
        %992 = vst [vmem:[#allocation2 + $0x50] sm:$0xf] %v856
        %993 = vst [vmem:[#allocation2 + $0x74] sm:$0xf] %v859
        %994 = vst [vmem:[#allocation2 + $0x98] sm:$0xf] %v863
        %995 = vst [vmem:[#allocation2 + $0xbc] sm:$0xf] %v866
        %996 = vst [vmem:[#allocation2 + $0xe0] sm:$0xf] %v870
        %997 = vst [vmem:[#allocation2 + $0x104] sm:$0xf] %v873
        %998 = vst [vmem:[#allocation2 + $0x128] sm:$0xf] %v877
        %999 = vst [vmem:[#allocation2 + $0x14c] sm:$0xf] %v880
        %1000 = vst [vmem:[#allocation2 + $0x170] sm:$0xf] %v884
        %1001 = vst [vmem:[#allocation2 + $0x194] sm:$0xf] %v887
        %1002 = vst [vmem:[#allocation2 + $0x1b8] sm:$0xf] %v891
        %1003 = vst [vmem:[#allocation2 + $0x1dc] sm:$0xf] %v894
        %1004 = vst [vmem:[#allocation2 + $0x200] sm:$0xf] %v898
        %1005 = vst [vmem:[#allocation2 + $0x224] sm:$0xf] %v901
        %1006 = vst [vmem:[#allocation2 + $0x248] sm:$0xf] %v905
        %1007 = vst [vmem:[#allocation2 + $0x26c] sm:$0xf] %v908
        %1008 = vst [vmem:[#allocation2 + $0x290] sm:$0xf] %v912
        %1009 = vst [vmem:[#allocation2 + $0x2b4] sm:$0xf] %v915
        %1010 = vst [vmem:[#allocation2 + $0x2d8] sm:$0xf] %v919
        %1011 = vst [vmem:[#allocation2 + $0x2fc] sm:$0xf] %v922
        %1012 = vst [vmem:[#allocation2 + $0x320] sm:$0xf] %v926
        %1013 = vst [vmem:[#allocation2 + $0x344] sm:$0xf] %v929
        %1014 = vst [vmem:[#allocation2 + $0x368] sm:$0xf] %v933
        %1015 = vst [vmem:[#allocation2 + $0x38c] sm:$0xf] %v936
        %1016 = vst [vmem:[#allocation2 + $0x3b0] sm:$0xf] %v940
        %1017 = vst [vmem:[#allocation2 + $0x3d4] sm:$0xf] %v943
        %1018 = vst [vmem:[#allocation2 + $0x3f8] sm:$0xf] %v947
        %1019 = vst [vmem:[#allocation2 + $0x41c] sm:$0xf] %v950
        %1020 = vst [vmem:[#allocation2 + $0x440] sm:$0xf] %v954
        %1021 = vst [vmem:[#allocation2 + $0x464] sm:$0xf] %v957
        %s1022 = sadd.s32 %s260, 1
        %s1023 = smul.u32 %s1022, 3
        %s1024 = smul.addr %s1023, 4
        %s1025 = scalar_lea.vmem %s227, %s1024
        %v1026 = vld [vmem:[%s1025] sm:$0xf]
        %v1027 = vld [vmem:[%s1025 + $0x4] sm:$0xf]
        %v1028 = vld [vmem:[%s1025 + $0x8] sm:$0x1]
        %v1029 = vld [vmem:[%s1025 + $0xc] sm:$0xf]
        %v1030 = vld [vmem:[%s1025 + $0x10] sm:$0xf]
        %v1031 = vld [vmem:[%s1025 + $0x14] sm:$0x1]
        %v1032 = vld [vmem:[%s1025 + $0x18] sm:$0xf]
        %v1033 = vld [vmem:[%s1025 + $0x1c] sm:$0xf]
        %v1034 = vld [vmem:[%s1025 + $0x20] sm:$0x1]
        %v1035 = vld [vmem:[%s1025 + $0x24] sm:$0xf]
        %v1036 = vld [vmem:[%s1025 + $0x28] sm:$0xf]
        %v1037 = vld [vmem:[%s1025 + $0x2c] sm:$0x1]
        %v1038 = vld [vmem:[%s1025 + $0x30] sm:$0xf]
        %v1039 = vld [vmem:[%s1025 + $0x34] sm:$0xf]
        %v1040 = vld [vmem:[%s1025 + $0x38] sm:$0x1]
        %v1041 = vld [vmem:[%s1025 + $0x3c] sm:$0xf]
        %v1042 = vld [vmem:[%s1025 + $0x40] sm:$0xf]
        %v1043 = vld [vmem:[%s1025 + $0x44] sm:$0x1]
        %v1044 = vld [vmem:[%s1025 + $0x48] sm:$0xf]
        %v1045 = vld [vmem:[%s1025 + $0x4c] sm:$0xf]
        %v1046 = vld [vmem:[%s1025 + $0x50] sm:$0x1]
        %v1047 = vld [vmem:[%s1025 + $0x54] sm:$0xf]
        %v1048 = vld [vmem:[%s1025 + $0x58] sm:$0xf]
        %v1049 = vld [vmem:[%s1025 + $0x5c] sm:$0x1]
        %v1050 = vld [vmem:[%s1025 + $0x60] sm:$0xf]
        %v1051 = vld [vmem:[%s1025 + $0x64] sm:$0xf]
        %v1052 = vld [vmem:[%s1025 + $0x68] sm:$0x1]
        %v1053 = vld [vmem:[%s1025 + $0x6c] sm:$0xf]
        %v1054 = vld [vmem:[%s1025 + $0x70] sm:$0xf]
        %v1055 = vld [vmem:[%s1025 + $0x74] sm:$0x1]
        %v1056 = vld [vmem:[%s1025 + $0x78] sm:$0xf]
        %v1057 = vld [vmem:[%s1025 + $0x7c] sm:$0xf]
        %v1058 = vld [vmem:[%s1025 + $0x80] sm:$0x1]
        %v1059 = vld [vmem:[%s1025 + $0x84] sm:$0xf]
        %v1060 = vld [vmem:[%s1025 + $0x88] sm:$0xf]
        %v1061 = vld [vmem:[%s1025 + $0x8c] sm:$0x1]
        %v1062 = vld [vmem:[%s1025 + $0x90] sm:$0xf]
        %v1063 = vld [vmem:[%s1025 + $0x94] sm:$0xf]
        %v1064 = vld [vmem:[%s1025 + $0x98] sm:$0x1]
        %v1065 = vld [vmem:[%s1025 + $0x9c] sm:$0xf]
        %v1066 = vld [vmem:[%s1025 + $0xa0] sm:$0xf]
        %v1067 = vld [vmem:[%s1025 + $0xa4] sm:$0x1]
        %v1068 = vld [vmem:[%s1025 + $0xa8] sm:$0xf]
        %v1069 = vld [vmem:[%s1025 + $0xac] sm:$0xf]
        %v1070 = vld [vmem:[%s1025 + $0xb0] sm:$0x1]
        %v1071 = vld [vmem:[%s1025 + $0xb4] sm:$0xf]
        %v1072 = vld [vmem:[%s1025 + $0xb8] sm:$0xf]
        %v1073 = vld [vmem:[%s1025 + $0xbc] sm:$0x1]
        %1074 = vst [vmem:[#allocation2 + $0xc] sm:$0xf] %v1026
        %1075 = vst [vmem:[#allocation2 + $0x30] sm:$0xf] %v1027
        %1076 = vst [vmem:[#allocation2 + $0x54] sm:$0xf] %v1029
        %1077 = vst [vmem:[#allocation2 + $0x78] sm:$0xf] %v1030
        %1078 = vst [vmem:[#allocation2 + $0x9c] sm:$0xf] %v1032
        %1079 = vst [vmem:[#allocation2 + $0xc0] sm:$0xf] %v1033
        %1080 = vst [vmem:[#allocation2 + $0xe4] sm:$0xf] %v1035
        %1081 = vst [vmem:[#allocation2 + $0x108] sm:$0xf] %v1036
        %1082 = vst [vmem:[#allocation2 + $0x12c] sm:$0xf] %v1038
        %1083 = vst [vmem:[#allocation2 + $0x150] sm:$0xf] %v1039
        %1084 = vst [vmem:[#allocation2 + $0x174] sm:$0xf] %v1041
        %1085 = vst [vmem:[#allocation2 + $0x198] sm:$0xf] %v1042
        %1086 = vst [vmem:[#allocation2 + $0x1bc] sm:$0xf] %v1044
        %1087 = vst [vmem:[#allocation2 + $0x1e0] sm:$0xf] %v1045
        %1088 = vst [vmem:[#allocation2 + $0x204] sm:$0xf] %v1047
        %1089 = vst [vmem:[#allocation2 + $0x228] sm:$0xf] %v1048
        %1090 = vst [vmem:[#allocation2 + $0x24c] sm:$0xf] %v1050
        %1091 = vst [vmem:[#allocation2 + $0x270] sm:$0xf] %v1051
        %1092 = vst [vmem:[#allocation2 + $0x294] sm:$0xf] %v1053
        %1093 = vst [vmem:[#allocation2 + $0x2b8] sm:$0xf] %v1054
        %1094 = vst [vmem:[#allocation2 + $0x2dc] sm:$0xf] %v1056
        %1095 = vst [vmem:[#allocation2 + $0x300] sm:$0xf] %v1057
        %1096 = vst [vmem:[#allocation2 + $0x324] sm:$0xf] %v1059
        %1097 = vst [vmem:[#allocation2 + $0x348] sm:$0xf] %v1060
        %1098 = vst [vmem:[#allocation2 + $0x36c] sm:$0xf] %v1062
        %1099 = vst [vmem:[#allocation2 + $0x390] sm:$0xf] %v1063
        %1100 = vst [vmem:[#allocation2 + $0x3b4] sm:$0xf] %v1065
        %1101 = vst [vmem:[#allocation2 + $0x3d8] sm:$0xf] %v1066
        %1102 = vst [vmem:[#allocation2 + $0x3fc] sm:$0xf] %v1068
        %1103 = vst [vmem:[#allocation2 + $0x420] sm:$0xf] %v1069
        %1104 = vst [vmem:[#allocation2 + $0x444] sm:$0xf] %v1071
        %1105 = vst [vmem:[#allocation2 + $0x468] sm:$0xf] %v1072
        %v1107 = vshrl.u32 %v1026, 16
        %v1109 = vrot.slane %v1107, 4
        %v1110 = vshll.u32 %v1026, 16
        %v1112 = vrot.slane %v1110, 5
        %v1113 = vor.u32 %v1109, %v1112
        %v1114 = vrot.slane %v1113, 4
        %v1116 = vshll.u32 %v1027, 16
        %v1118 = vrot.slane %v1116, 5
        %v1119 = vsel %vm346, %v1114, %v1118
        %v1120 = vshrl.u32 %v1027, 16
        %v1122 = vrot.slane %v1120, 4
        %v1123 = vor.u32 %v1122, %v1118
        %v1124 = vrot.slane %v1123, 4
        %v1126 = vshll.u32 %v1028, 16
        %v1128 = vrot.slane %v1126, 5
        %v1129 = vsel %vm346, %v1124, %v1128
        %v1131 = vshrl.u32 %v1029, 16
        %v1133 = vrot.slane %v1131, 4
        %v1134 = vshll.u32 %v1029, 16
        %v1136 = vrot.slane %v1134, 5
        %v1137 = vor.u32 %v1133, %v1136
        %v1138 = vrot.slane %v1137, 4
        %v1140 = vshll.u32 %v1030, 16
        %v1142 = vrot.slane %v1140, 5
        %v1143 = vsel %vm346, %v1138, %v1142
        %v1144 = vshrl.u32 %v1030, 16
        %v1146 = vrot.slane %v1144, 4
        %v1147 = vor.u32 %v1146, %v1142
        %v1148 = vrot.slane %v1147, 4
        %v1150 = vshll.u32 %v1031, 16
        %v1152 = vrot.slane %v1150, 5
        %v1153 = vsel %vm346, %v1148, %v1152
        %v1155 = vshrl.u32 %v1032, 16
        %v1157 = vrot.slane %v1155, 4
        %v1158 = vshll.u32 %v1032, 16
        %v1160 = vrot.slane %v1158, 5
        %v1161 = vor.u32 %v1157, %v1160
        %v1162 = vrot.slane %v1161, 4
        %v1164 = vshll.u32 %v1033, 16
        %v1166 = vrot.slane %v1164, 5
        %v1167 = vsel %vm346, %v1162, %v1166
        %v1168 = vshrl.u32 %v1033, 16
        %v1170 = vrot.slane %v1168, 4
        %v1171 = vor.u32 %v1170, %v1166
        %v1172 = vrot.slane %v1171, 4
        %v1174 = vshll.u32 %v1034, 16
        %v1176 = vrot.slane %v1174, 5
        %v1177 = vsel %vm346, %v1172, %v1176
        %v1179 = vshrl.u32 %v1035, 16
        %v1181 = vrot.slane %v1179, 4
        %v1182 = vshll.u32 %v1035, 16
        %v1184 = vrot.slane %v1182, 5
        %v1185 = vor.u32 %v1181, %v1184
        %v1186 = vrot.slane %v1185, 4
        %v1188 = vshll.u32 %v1036, 16
        %v1190 = vrot.slane %v1188, 5
        %v1191 = vsel %vm346, %v1186, %v1190
        %v1192 = vshrl.u32 %v1036, 16
        %v1194 = vrot.slane %v1192, 4
        %v1195 = vor.u32 %v1194, %v1190
        %v1196 = vrot.slane %v1195, 4
        %v1198 = vshll.u32 %v1037, 16
        %v1200 = vrot.slane %v1198, 5
        %v1201 = vsel %vm346, %v1196, %v1200
        %v1203 = vshrl.u32 %v1038, 16
        %v1205 = vrot.slane %v1203, 4
        %v1206 = vshll.u32 %v1038, 16
        %v1208 = vrot.slane %v1206, 5
        %v1209 = vor.u32 %v1205, %v1208
        %v1210 = vrot.slane %v1209, 4
        %v1212 = vshll.u32 %v1039, 16
        %v1214 = vrot.slane %v1212, 5
        %v1215 = vsel %vm346, %v1210, %v1214
        %v1216 = vshrl.u32 %v1039, 16
        %v1218 = vrot.slane %v1216, 4
        %v1219 = vor.u32 %v1218, %v1214
        %v1220 = vrot.slane %v1219, 4
        %v1222 = vshll.u32 %v1040, 16
        %v1224 = vrot.slane %v1222, 5
        %v1225 = vsel %vm346, %v1220, %v1224
        %v1227 = vshrl.u32 %v1041, 16
        %v1229 = vrot.slane %v1227, 4
        %v1230 = vshll.u32 %v1041, 16
        %v1232 = vrot.slane %v1230, 5
        %v1233 = vor.u32 %v1229, %v1232
        %v1234 = vrot.slane %v1233, 4
        %v1236 = vshll.u32 %v1042, 16
        %v1238 = vrot.slane %v1236, 5
        %v1239 = vsel %vm346, %v1234, %v1238
        %v1240 = vshrl.u32 %v1042, 16
        %v1242 = vrot.slane %v1240, 4
        %v1243 = vor.u32 %v1242, %v1238
        %v1244 = vrot.slane %v1243, 4
        %v1246 = vshll.u32 %v1043, 16
        %v1248 = vrot.slane %v1246, 5
        %v1249 = vsel %vm346, %v1244, %v1248
        %v1251 = vshrl.u32 %v1044, 16
        %v1253 = vrot.slane %v1251, 4
        %v1254 = vshll.u32 %v1044, 16
        %v1256 = vrot.slane %v1254, 5
        %v1257 = vor.u32 %v1253, %v1256
        %v1258 = vrot.slane %v1257, 4
        %v1260 = vshll.u32 %v1045, 16
        %v1262 = vrot.slane %v1260, 5
        %v1263 = vsel %vm346, %v1258, %v1262
        %v1264 = vshrl.u32 %v1045, 16
        %v1266 = vrot.slane %v1264, 4
        %v1267 = vor.u32 %v1266, %v1262
        %v1268 = vrot.slane %v1267, 4
        %v1270 = vshll.u32 %v1046, 16
        %v1272 = vrot.slane %v1270, 5
        %v1273 = vsel %vm346, %v1268, %v1272
        %v1275 = vshrl.u32 %v1047, 16
        %v1277 = vrot.slane %v1275, 4
        %v1278 = vshll.u32 %v1047, 16
        %v1280 = vrot.slane %v1278, 5
        %v1281 = vor.u32 %v1277, %v1280
        %v1282 = vrot.slane %v1281, 4
        %v1284 = vshll.u32 %v1048, 16
        %v1286 = vrot.slane %v1284, 5
        %v1287 = vsel %vm346, %v1282, %v1286
        %v1288 = vshrl.u32 %v1048, 16
        %v1290 = vrot.slane %v1288, 4
        %v1291 = vor.u32 %v1290, %v1286
        %v1292 = vrot.slane %v1291, 4
        %v1294 = vshll.u32 %v1049, 16
        %v1296 = vrot.slane %v1294, 5
        %v1297 = vsel %vm346, %v1292, %v1296
        %v1299 = vshrl.u32 %v1050, 16
        %v1301 = vrot.slane %v1299, 4
        %v1302 = vshll.u32 %v1050, 16
        %v1304 = vrot.slane %v1302, 5
        %v1305 = vor.u32 %v1301, %v1304
        %v1306 = vrot.slane %v1305, 4
        %v1308 = vshll.u32 %v1051, 16
        %v1310 = vrot.slane %v1308, 5
        %v1311 = vsel %vm346, %v1306, %v1310
        %v1312 = vshrl.u32 %v1051, 16
        %v1314 = vrot.slane %v1312, 4
        %v1315 = vor.u32 %v1314, %v1310
        %v1316 = vrot.slane %v1315, 4
        %v1318 = vshll.u32 %v1052, 16
        %v1320 = vrot.slane %v1318, 5
        %v1321 = vsel %vm346, %v1316, %v1320
        %v1323 = vshrl.u32 %v1053, 16
        %v1325 = vrot.slane %v1323, 4
        %v1326 = vshll.u32 %v1053, 16
        %v1328 = vrot.slane %v1326, 5
        %v1329 = vor.u32 %v1325, %v1328
        %v1330 = vrot.slane %v1329, 4
        %v1332 = vshll.u32 %v1054, 16
        %v1334 = vrot.slane %v1332, 5
        %v1335 = vsel %vm346, %v1330, %v1334
        %v1336 = vshrl.u32 %v1054, 16
        %v1338 = vrot.slane %v1336, 4
        %v1339 = vor.u32 %v1338, %v1334
        %v1340 = vrot.slane %v1339, 4
        %v1342 = vshll.u32 %v1055, 16
        %v1344 = vrot.slane %v1342, 5
        %v1345 = vsel %vm346, %v1340, %v1344
        %v1347 = vshrl.u32 %v1056, 16
        %v1349 = vrot.slane %v1347, 4
        %v1350 = vshll.u32 %v1056, 16
        %v1352 = vrot.slane %v1350, 5
        %v1353 = vor.u32 %v1349, %v1352
        %v1354 = vrot.slane %v1353, 4
        %v1356 = vshll.u32 %v1057, 16
        %v1358 = vrot.slane %v1356, 5
        %v1359 = vsel %vm346, %v1354, %v1358
        %v1360 = vshrl.u32 %v1057, 16
        %v1362 = vrot.slane %v1360, 4
        %v1363 = vor.u32 %v1362, %v1358
        %v1364 = vrot.slane %v1363, 4
        %v1366 = vshll.u32 %v1058, 16
        %v1368 = vrot.slane %v1366, 5
        %v1369 = vsel %vm346, %v1364, %v1368
        %v1371 = vshrl.u32 %v1059, 16
        %v1373 = vrot.slane %v1371, 4
        %v1374 = vshll.u32 %v1059, 16
        %v1376 = vrot.slane %v1374, 5
        %v1377 = vor.u32 %v1373, %v1376
        %v1378 = vrot.slane %v1377, 4
        %v1380 = vshll.u32 %v1060, 16
        %v1382 = vrot.slane %v1380, 5
        %v1383 = vsel %vm346, %v1378, %v1382
        %v1384 = vshrl.u32 %v1060, 16
        %v1386 = vrot.slane %v1384, 4
        %v1387 = vor.u32 %v1386, %v1382
        %v1388 = vrot.slane %v1387, 4
        %v1390 = vshll.u32 %v1061, 16
        %v1392 = vrot.slane %v1390, 5
        %v1393 = vsel %vm346, %v1388, %v1392
        %v1395 = vshrl.u32 %v1062, 16
        %v1397 = vrot.slane %v1395, 4
        %v1398 = vshll.u32 %v1062, 16
        %v1400 = vrot.slane %v1398, 5
        %v1401 = vor.u32 %v1397, %v1400
        %v1402 = vrot.slane %v1401, 4
        %v1404 = vshll.u32 %v1063, 16
        %v1406 = vrot.slane %v1404, 5
        %v1407 = vsel %vm346, %v1402, %v1406
        %v1408 = vshrl.u32 %v1063, 16
        %v1410 = vrot.slane %v1408, 4
        %v1411 = vor.u32 %v1410, %v1406
        %v1412 = vrot.slane %v1411, 4
        %v1414 = vshll.u32 %v1064, 16
        %v1416 = vrot.slane %v1414, 5
        %v1417 = vsel %vm346, %v1412, %v1416
        %v1419 = vshrl.u32 %v1065, 16
        %v1421 = vrot.slane %v1419, 4
        %v1422 = vshll.u32 %v1065, 16
        %v1424 = vrot.slane %v1422, 5
        %v1425 = vor.u32 %v1421, %v1424
        %v1426 = vrot.slane %v1425, 4
        %v1428 = vshll.u32 %v1066, 16
        %v1430 = vrot.slane %v1428, 5
        %v1431 = vsel %vm346, %v1426, %v1430
        %v1432 = vshrl.u32 %v1066, 16
        %v1434 = vrot.slane %v1432, 4
        %v1435 = vor.u32 %v1434, %v1430
        %v1436 = vrot.slane %v1435, 4
        %v1438 = vshll.u32 %v1067, 16
        %v1440 = vrot.slane %v1438, 5
        %v1441 = vsel %vm346, %v1436, %v1440
        %v1443 = vshrl.u32 %v1068, 16
        %v1445 = vrot.slane %v1443, 4
        %v1446 = vshll.u32 %v1068, 16
        %v1448 = vrot.slane %v1446, 5
        %v1449 = vor.u32 %v1445, %v1448
        %v1450 = vrot.slane %v1449, 4
        %v1452 = vshll.u32 %v1069, 16
        %v1454 = vrot.slane %v1452, 5
        %v1455 = vsel %vm346, %v1450, %v1454
        %v1456 = vshrl.u32 %v1069, 16
        %v1458 = vrot.slane %v1456, 4
        %v1459 = vor.u32 %v1458, %v1454
        %v1460 = vrot.slane %v1459, 4
        %v1462 = vshll.u32 %v1070, 16
        %v1464 = vrot.slane %v1462, 5
        %v1465 = vsel %vm346, %v1460, %v1464
        %v1467 = vshrl.u32 %v1071, 16
        %v1469 = vrot.slane %v1467, 4
        %v1470 = vshll.u32 %v1071, 16
        %v1472 = vrot.slane %v1470, 5
        %v1473 = vor.u32 %v1469, %v1472
        %v1474 = vrot.slane %v1473, 4
        %v1476 = vshll.u32 %v1072, 16
        %v1478 = vrot.slane %v1476, 5
        %v1479 = vsel %vm346, %v1474, %v1478
        %v1480 = vshrl.u32 %v1072, 16
        %v1482 = vrot.slane %v1480, 4
        %v1483 = vor.u32 %v1482, %v1478
        %v1484 = vrot.slane %v1483, 4
        %v1486 = vshll.u32 %v1073, 16
        %v1488 = vrot.slane %v1486, 5
        %v1489 = vsel %vm346, %v1484, %v1488
        %1522 = vst [vmem:[#allocation2 + $0x10] sm:$0xf] %v1119
        %1523 = vst [vmem:[#allocation2 + $0x34] sm:$0xf] %v1129
        %1524 = vst [vmem:[#allocation2 + $0x58] sm:$0xf] %v1143
        %1525 = vst [vmem:[#allocation2 + $0x7c] sm:$0xf] %v1153
        %1526 = vst [vmem:[#allocation2 + $0xa0] sm:$0xf] %v1167
        %1527 = vst [vmem:[#allocation2 + $0xc4] sm:$0xf] %v1177
        %1528 = vst [vmem:[#allocation2 + $0xe8] sm:$0xf] %v1191
        %1529 = vst [vmem:[#allocation2 + $0x10c] sm:$0xf] %v1201
        %1530 = vst [vmem:[#allocation2 + $0x130] sm:$0xf] %v1215
        %1531 = vst [vmem:[#allocation2 + $0x154] sm:$0xf] %v1225
        %1532 = vst [vmem:[#allocation2 + $0x178] sm:$0xf] %v1239
        %1533 = vst [vmem:[#allocation2 + $0x19c] sm:$0xf] %v1249
        %1534 = vst [vmem:[#allocation2 + $0x1c0] sm:$0xf] %v1263
        %1535 = vst [vmem:[#allocation2 + $0x1e4] sm:$0xf] %v1273
        %1536 = vst [vmem:[#allocation2 + $0x208] sm:$0xf] %v1287
        %1537 = vst [vmem:[#allocation2 + $0x22c] sm:$0xf] %v1297
        %1538 = vst [vmem:[#allocation2 + $0x250] sm:$0xf] %v1311
        %1539 = vst [vmem:[#allocation2 + $0x274] sm:$0xf] %v1321
        %1540 = vst [vmem:[#allocation2 + $0x298] sm:$0xf] %v1335
        %1541 = vst [vmem:[#allocation2 + $0x2bc] sm:$0xf] %v1345
        %1542 = vst [vmem:[#allocation2 + $0x2e0] sm:$0xf] %v1359
        %1543 = vst [vmem:[#allocation2 + $0x304] sm:$0xf] %v1369
        %1544 = vst [vmem:[#allocation2 + $0x328] sm:$0xf] %v1383
        %1545 = vst [vmem:[#allocation2 + $0x34c] sm:$0xf] %v1393
        %1546 = vst [vmem:[#allocation2 + $0x370] sm:$0xf] %v1407
        %1547 = vst [vmem:[#allocation2 + $0x394] sm:$0xf] %v1417
        %1548 = vst [vmem:[#allocation2 + $0x3b8] sm:$0xf] %v1431
        %1549 = vst [vmem:[#allocation2 + $0x3dc] sm:$0xf] %v1441
        %1550 = vst [vmem:[#allocation2 + $0x400] sm:$0xf] %v1455
        %1551 = vst [vmem:[#allocation2 + $0x424] sm:$0xf] %v1465
        %1552 = vst [vmem:[#allocation2 + $0x448] sm:$0xf] %v1479
        %1553 = vst [vmem:[#allocation2 + $0x46c] sm:$0xf] %v1489
        %v1602 = vrot.slane %v1026, 5
        %v1603 = vrot.slane %v1602, 4
        %v1604 = vrot.slane %v1027, 5
        %v1605 = vsel %vm845, %v1603, %v1604
        %v1606 = vrot.slane %v1604, 4
        %v1607 = vrot.slane %v1028, 5
        %v1608 = vsel %vm845, %v1606, %v1607
        %v1609 = vrot.slane %v1029, 5
        %v1610 = vrot.slane %v1609, 4
        %v1611 = vrot.slane %v1030, 5
        %v1612 = vsel %vm845, %v1610, %v1611
        %v1613 = vrot.slane %v1611, 4
        %v1614 = vrot.slane %v1031, 5
        %v1615 = vsel %vm845, %v1613, %v1614
        %v1616 = vrot.slane %v1032, 5
        %v1617 = vrot.slane %v1616, 4
        %v1618 = vrot.slane %v1033, 5
        %v1619 = vsel %vm845, %v1617, %v1618
        %v1620 = vrot.slane %v1618, 4
        %v1621 = vrot.slane %v1034, 5
        %v1622 = vsel %vm845, %v1620, %v1621
        %v1623 = vrot.slane %v1035, 5
        %v1624 = vrot.slane %v1623, 4
        %v1625 = vrot.slane %v1036, 5
        %v1626 = vsel %vm845, %v1624, %v1625
        %v1627 = vrot.slane %v1625, 4
        %v1628 = vrot.slane %v1037, 5
        %v1629 = vsel %vm845, %v1627, %v1628
        %v1630 = vrot.slane %v1038, 5
        %v1631 = vrot.slane %v1630, 4
        %v1632 = vrot.slane %v1039, 5
        %v1633 = vsel %vm845, %v1631, %v1632
        %v1634 = vrot.slane %v1632, 4
        %v1635 = vrot.slane %v1040, 5
        %v1636 = vsel %vm845, %v1634, %v1635
        %v1637 = vrot.slane %v1041, 5
        %v1638 = vrot.slane %v1637, 4
        %v1639 = vrot.slane %v1042, 5
        %v1640 = vsel %vm845, %v1638, %v1639
        %v1641 = vrot.slane %v1639, 4
        %v1642 = vrot.slane %v1043, 5
        %v1643 = vsel %vm845, %v1641, %v1642
        %v1644 = vrot.slane %v1044, 5
        %v1645 = vrot.slane %v1644, 4
        %v1646 = vrot.slane %v1045, 5
        %v1647 = vsel %vm845, %v1645, %v1646
        %v1648 = vrot.slane %v1646, 4
        %v1649 = vrot.slane %v1046, 5
        %v1650 = vsel %vm845, %v1648, %v1649
        %v1651 = vrot.slane %v1047, 5
        %v1652 = vrot.slane %v1651, 4
        %v1653 = vrot.slane %v1048, 5
        %v1654 = vsel %vm845, %v1652, %v1653
        %v1655 = vrot.slane %v1653, 4
        %v1656 = vrot.slane %v1049, 5
        %v1657 = vsel %vm845, %v1655, %v1656
        %v1658 = vrot.slane %v1050, 5
        %v1659 = vrot.slane %v1658, 4
        %v1660 = vrot.slane %v1051, 5
        %v1661 = vsel %vm845, %v1659, %v1660
        %v1662 = vrot.slane %v1660, 4
        %v1663 = vrot.slane %v1052, 5
        %v1664 = vsel %vm845, %v1662, %v1663
        %v1665 = vrot.slane %v1053, 5
        %v1666 = vrot.slane %v1665, 4
        %v1667 = vrot.slane %v1054, 5
        %v1668 = vsel %vm845, %v1666, %v1667
        %v1669 = vrot.slane %v1667, 4
        %v1670 = vrot.slane %v1055, 5
        %v1671 = vsel %vm845, %v1669, %v1670
        %v1672 = vrot.slane %v1056, 5
        %v1673 = vrot.slane %v1672, 4
        %v1674 = vrot.slane %v1057, 5
        %v1675 = vsel %vm845, %v1673, %v1674
        %v1676 = vrot.slane %v1674, 4
        %v1677 = vrot.slane %v1058, 5
        %v1678 = vsel %vm845, %v1676, %v1677
        %v1679 = vrot.slane %v1059, 5
        %v1680 = vrot.slane %v1679, 4
        %v1681 = vrot.slane %v1060, 5
        %v1682 = vsel %vm845, %v1680, %v1681
        %v1683 = vrot.slane %v1681, 4
        %v1684 = vrot.slane %v1061, 5
        %v1685 = vsel %vm845, %v1683, %v1684
        %v1686 = vrot.slane %v1062, 5
        %v1687 = vrot.slane %v1686, 4
        %v1688 = vrot.slane %v1063, 5
        %v1689 = vsel %vm845, %v1687, %v1688
        %v1690 = vrot.slane %v1688, 4
        %v1691 = vrot.slane %v1064, 5
        %v1692 = vsel %vm845, %v1690, %v1691
        %v1693 = vrot.slane %v1065, 5
        %v1694 = vrot.slane %v1693, 4
        %v1695 = vrot.slane %v1066, 5
        %v1696 = vsel %vm845, %v1694, %v1695
        %v1697 = vrot.slane %v1695, 4
        %v1698 = vrot.slane %v1067, 5
        %v1699 = vsel %vm845, %v1697, %v1698
        %v1700 = vrot.slane %v1068, 5
        %v1701 = vrot.slane %v1700, 4
        %v1702 = vrot.slane %v1069, 5
        %v1703 = vsel %vm845, %v1701, %v1702
        %v1704 = vrot.slane %v1702, 4
        %v1705 = vrot.slane %v1070, 5
        %v1706 = vsel %vm845, %v1704, %v1705
        %v1707 = vrot.slane %v1071, 5
        %v1708 = vrot.slane %v1707, 4
        %v1709 = vrot.slane %v1072, 5
        %v1710 = vsel %vm845, %v1708, %v1709
        %v1711 = vrot.slane %v1709, 4
        %v1712 = vrot.slane %v1073, 5
        %v1713 = vsel %vm845, %v1711, %v1712
        %1746 = vst [vmem:[#allocation2 + $0x14] sm:$0xf] %v1605
        %1747 = vst [vmem:[#allocation2 + $0x38] sm:$0xf] %v1608
        %1748 = vst [vmem:[#allocation2 + $0x5c] sm:$0xf] %v1612
        %1749 = vst [vmem:[#allocation2 + $0x80] sm:$0xf] %v1615
        %1750 = vst [vmem:[#allocation2 + $0xa4] sm:$0xf] %v1619
        %1751 = vst [vmem:[#allocation2 + $0xc8] sm:$0xf] %v1622
        %1752 = vst [vmem:[#allocation2 + $0xec] sm:$0xf] %v1626
        %1753 = vst [vmem:[#allocation2 + $0x110] sm:$0xf] %v1629
        %1754 = vst [vmem:[#allocation2 + $0x134] sm:$0xf] %v1633
        %1755 = vst [vmem:[#allocation2 + $0x158] sm:$0xf] %v1636
        %1756 = vst [vmem:[#allocation2 + $0x17c] sm:$0xf] %v1640
        %1757 = vst [vmem:[#allocation2 + $0x1a0] sm:$0xf] %v1643
        %1758 = vst [vmem:[#allocation2 + $0x1c4] sm:$0xf] %v1647
        %1759 = vst [vmem:[#allocation2 + $0x1e8] sm:$0xf] %v1650
        %1760 = vst [vmem:[#allocation2 + $0x20c] sm:$0xf] %v1654
        %1761 = vst [vmem:[#allocation2 + $0x230] sm:$0xf] %v1657
        %1762 = vst [vmem:[#allocation2 + $0x254] sm:$0xf] %v1661
        %1763 = vst [vmem:[#allocation2 + $0x278] sm:$0xf] %v1664
        %1764 = vst [vmem:[#allocation2 + $0x29c] sm:$0xf] %v1668
        %1765 = vst [vmem:[#allocation2 + $0x2c0] sm:$0xf] %v1671
        %1766 = vst [vmem:[#allocation2 + $0x2e4] sm:$0xf] %v1675
        %1767 = vst [vmem:[#allocation2 + $0x308] sm:$0xf] %v1678
        %1768 = vst [vmem:[#allocation2 + $0x32c] sm:$0xf] %v1682
        %1769 = vst [vmem:[#allocation2 + $0x350] sm:$0xf] %v1685
        %1770 = vst [vmem:[#allocation2 + $0x374] sm:$0xf] %v1689
        %1771 = vst [vmem:[#allocation2 + $0x398] sm:$0xf] %v1692
        %1772 = vst [vmem:[#allocation2 + $0x3bc] sm:$0xf] %v1696
        %1773 = vst [vmem:[#allocation2 + $0x3e0] sm:$0xf] %v1699
        %1774 = vst [vmem:[#allocation2 + $0x404] sm:$0xf] %v1703
        %1775 = vst [vmem:[#allocation2 + $0x428] sm:$0xf] %v1706
        %1776 = vst [vmem:[#allocation2 + $0x44c] sm:$0xf] %v1710
        %1777 = vst [vmem:[#allocation2 + $0x470] sm:$0xf] %v1713
        %s1778 = sadd.s32 %s260, 2
        %s1779 = smul.u32 %s1778, 3
        %s1780 = smul.addr %s1779, 4
        %s1781 = scalar_lea.vmem %s227, %s1780
        %v1782 = vld [vmem:[%s1781] sm:$0xf]
        %v1783 = vld [vmem:[%s1781 + $0x4] sm:$0xf]
        %v1784 = vld [vmem:[%s1781 + $0x8] sm:$0x1]
        %v1785 = vld [vmem:[%s1781 + $0xc] sm:$0xf]
        %v1786 = vld [vmem:[%s1781 + $0x10] sm:$0xf]
        %v1787 = vld [vmem:[%s1781 + $0x14] sm:$0x1]
        %v1788 = vld [vmem:[%s1781 + $0x18] sm:$0xf]
        %v1789 = vld [vmem:[%s1781 + $0x1c] sm:$0xf]
        %v1790 = vld [vmem:[%s1781 + $0x20] sm:$0x1]
        %v1791 = vld [vmem:[%s1781 + $0x24] sm:$0xf]
        %v1792 = vld [vmem:[%s1781 + $0x28] sm:$0xf]
        %v1793 = vld [vmem:[%s1781 + $0x2c] sm:$0x1]
        %v1794 = vld [vmem:[%s1781 + $0x30] sm:$0xf]
        %v1795 = vld [vmem:[%s1781 + $0x34] sm:$0xf]
        %v1796 = vld [vmem:[%s1781 + $0x38] sm:$0x1]
        %v1797 = vld [vmem:[%s1781 + $0x3c] sm:$0xf]
        %v1798 = vld [vmem:[%s1781 + $0x40] sm:$0xf]
        %v1799 = vld [vmem:[%s1781 + $0x44] sm:$0x1]
        %v1800 = vld [vmem:[%s1781 + $0x48] sm:$0xf]
        %v1801 = vld [vmem:[%s1781 + $0x4c] sm:$0xf]
        %v1802 = vld [vmem:[%s1781 + $0x50] sm:$0x1]
        %v1803 = vld [vmem:[%s1781 + $0x54] sm:$0xf]
        %v1804 = vld [vmem:[%s1781 + $0x58] sm:$0xf]
        %v1805 = vld [vmem:[%s1781 + $0x5c] sm:$0x1]
        %v1806 = vld [vmem:[%s1781 + $0x60] sm:$0xf]
        %v1807 = vld [vmem:[%s1781 + $0x64] sm:$0xf]
        %v1808 = vld [vmem:[%s1781 + $0x68] sm:$0x1]
        %v1809 = vld [vmem:[%s1781 + $0x6c] sm:$0xf]
        %v1810 = vld [vmem:[%s1781 + $0x70] sm:$0xf]
        %v1811 = vld [vmem:[%s1781 + $0x74] sm:$0x1]
        %v1812 = vld [vmem:[%s1781 + $0x78] sm:$0xf]
        %v1813 = vld [vmem:[%s1781 + $0x7c] sm:$0xf]
        %v1814 = vld [vmem:[%s1781 + $0x80] sm:$0x1]
        %v1815 = vld [vmem:[%s1781 + $0x84] sm:$0xf]
        %v1816 = vld [vmem:[%s1781 + $0x88] sm:$0xf]
        %v1817 = vld [vmem:[%s1781 + $0x8c] sm:$0x1]
        %v1818 = vld [vmem:[%s1781 + $0x90] sm:$0xf]
        %v1819 = vld [vmem:[%s1781 + $0x94] sm:$0xf]
        %v1820 = vld [vmem:[%s1781 + $0x98] sm:$0x1]
        %v1821 = vld [vmem:[%s1781 + $0x9c] sm:$0xf]
        %v1822 = vld [vmem:[%s1781 + $0xa0] sm:$0xf]
        %v1823 = vld [vmem:[%s1781 + $0xa4] sm:$0x1]
        %v1824 = vld [vmem:[%s1781 + $0xa8] sm:$0xf]
        %v1825 = vld [vmem:[%s1781 + $0xac] sm:$0xf]
        %v1826 = vld [vmem:[%s1781 + $0xb0] sm:$0x1]
        %v1827 = vld [vmem:[%s1781 + $0xb4] sm:$0xf]
        %v1828 = vld [vmem:[%s1781 + $0xb8] sm:$0xf]
        %v1829 = vld [vmem:[%s1781 + $0xbc] sm:$0x1]
        %1830 = vst [vmem:[#allocation2 + $0x18] sm:$0xf] %v1782
        %1831 = vst [vmem:[#allocation2 + $0x3c] sm:$0xf] %v1783
        %1832 = vst [vmem:[#allocation2 + $0x60] sm:$0xf] %v1785
        %1833 = vst [vmem:[#allocation2 + $0x84] sm:$0xf] %v1786
        %1834 = vst [vmem:[#allocation2 + $0xa8] sm:$0xf] %v1788
        %1835 = vst [vmem:[#allocation2 + $0xcc] sm:$0xf] %v1789
        %1836 = vst [vmem:[#allocation2 + $0xf0] sm:$0xf] %v1791
        %1837 = vst [vmem:[#allocation2 + $0x114] sm:$0xf] %v1792
        %1838 = vst [vmem:[#allocation2 + $0x138] sm:$0xf] %v1794
        %1839 = vst [vmem:[#allocation2 + $0x15c] sm:$0xf] %v1795
        %1840 = vst [vmem:[#allocation2 + $0x180] sm:$0xf] %v1797
        %1841 = vst [vmem:[#allocation2 + $0x1a4] sm:$0xf] %v1798
        %1842 = vst [vmem:[#allocation2 + $0x1c8] sm:$0xf] %v1800
        %1843 = vst [vmem:[#allocation2 + $0x1ec] sm:$0xf] %v1801
        %1844 = vst [vmem:[#allocation2 + $0x210] sm:$0xf] %v1803
        %1845 = vst [vmem:[#allocation2 + $0x234] sm:$0xf] %v1804
        %1846 = vst [vmem:[#allocation2 + $0x258] sm:$0xf] %v1806
        %1847 = vst [vmem:[#allocation2 + $0x27c] sm:$0xf] %v1807
        %1848 = vst [vmem:[#allocation2 + $0x2a0] sm:$0xf] %v1809
        %1849 = vst [vmem:[#allocation2 + $0x2c4] sm:$0xf] %v1810
        %1850 = vst [vmem:[#allocation2 + $0x2e8] sm:$0xf] %v1812
        %1851 = vst [vmem:[#allocation2 + $0x30c] sm:$0xf] %v1813
        %1852 = vst [vmem:[#allocation2 + $0x330] sm:$0xf] %v1815
        %1853 = vst [vmem:[#allocation2 + $0x354] sm:$0xf] %v1816
        %1854 = vst [vmem:[#allocation2 + $0x378] sm:$0xf] %v1818
        %1855 = vst [vmem:[#allocation2 + $0x39c] sm:$0xf] %v1819
        %1856 = vst [vmem:[#allocation2 + $0x3c0] sm:$0xf] %v1821
        %1857 = vst [vmem:[#allocation2 + $0x3e4] sm:$0xf] %v1822
        %1858 = vst [vmem:[#allocation2 + $0x408] sm:$0xf] %v1824
        %1859 = vst [vmem:[#allocation2 + $0x42c] sm:$0xf] %v1825
        %1860 = vst [vmem:[#allocation2 + $0x450] sm:$0xf] %v1827
        %1861 = vst [vmem:[#allocation2 + $0x474] sm:$0xf] %v1828
        %v1863 = vshrl.u32 %v1782, 16
        %v1865 = vrot.slane %v1863, 4
        %v1866 = vshll.u32 %v1782, 16
        %v1868 = vrot.slane %v1866, 5
        %v1869 = vor.u32 %v1865, %v1868
        %v1870 = vrot.slane %v1869, 4
        %v1872 = vshll.u32 %v1783, 16
        %v1874 = vrot.slane %v1872, 5
        %v1875 = vsel %vm346, %v1870, %v1874
        %v1876 = vshrl.u32 %v1783, 16
        %v1878 = vrot.slane %v1876, 4
        %v1879 = vor.u32 %v1878, %v1874
        %v1880 = vrot.slane %v1879, 4
        %v1882 = vshll.u32 %v1784, 16
        %v1884 = vrot.slane %v1882, 5
        %v1885 = vsel %vm346, %v1880, %v1884
        %v1887 = vshrl.u32 %v1785, 16
        %v1889 = vrot.slane %v1887, 4
        %v1890 = vshll.u32 %v1785, 16
        %v1892 = vrot.slane %v1890, 5
        %v1893 = vor.u32 %v1889, %v1892
        %v1894 = vrot.slane %v1893, 4
        %v1896 = vshll.u32 %v1786, 16
        %v1898 = vrot.slane %v1896, 5
        %v1899 = vsel %vm346, %v1894, %v1898
        %v1900 = vshrl.u32 %v1786, 16
        %v1902 = vrot.slane %v1900, 4
        %v1903 = vor.u32 %v1902, %v1898
        %v1904 = vrot.slane %v1903, 4
        %v1906 = vshll.u32 %v1787, 16
        %v1908 = vrot.slane %v1906, 5
        %v1909 = vsel %vm346, %v1904, %v1908
        %v1911 = vshrl.u32 %v1788, 16
        %v1913 = vrot.slane %v1911, 4
        %v1914 = vshll.u32 %v1788, 16
        %v1916 = vrot.slane %v1914, 5
        %v1917 = vor.u32 %v1913, %v1916
        %v1918 = vrot.slane %v1917, 4
        %v1920 = vshll.u32 %v1789, 16
        %v1922 = vrot.slane %v1920, 5
        %v1923 = vsel %vm346, %v1918, %v1922
        %v1924 = vshrl.u32 %v1789, 16
        %v1926 = vrot.slane %v1924, 4
        %v1927 = vor.u32 %v1926, %v1922
        %v1928 = vrot.slane %v1927, 4
        %v1930 = vshll.u32 %v1790, 16
        %v1932 = vrot.slane %v1930, 5
        %v1933 = vsel %vm346, %v1928, %v1932
        %v1935 = vshrl.u32 %v1791, 16
        %v1937 = vrot.slane %v1935, 4
        %v1938 = vshll.u32 %v1791, 16
        %v1940 = vrot.slane %v1938, 5
        %v1941 = vor.u32 %v1937, %v1940
        %v1942 = vrot.slane %v1941, 4
        %v1944 = vshll.u32 %v1792, 16
        %v1946 = vrot.slane %v1944, 5
        %v1947 = vsel %vm346, %v1942, %v1946
        %v1948 = vshrl.u32 %v1792, 16
        %v1950 = vrot.slane %v1948, 4
        %v1951 = vor.u32 %v1950, %v1946
        %v1952 = vrot.slane %v1951, 4
        %v1954 = vshll.u32 %v1793, 16
        %v1956 = vrot.slane %v1954, 5
        %v1957 = vsel %vm346, %v1952, %v1956
        %v1959 = vshrl.u32 %v1794, 16
        %v1961 = vrot.slane %v1959, 4
        %v1962 = vshll.u32 %v1794, 16
        %v1964 = vrot.slane %v1962, 5
        %v1965 = vor.u32 %v1961, %v1964
        %v1966 = vrot.slane %v1965, 4
        %v1968 = vshll.u32 %v1795, 16
        %v1970 = vrot.slane %v1968, 5
        %v1971 = vsel %vm346, %v1966, %v1970
        %v1972 = vshrl.u32 %v1795, 16
        %v1974 = vrot.slane %v1972, 4
        %v1975 = vor.u32 %v1974, %v1970
        %v1976 = vrot.slane %v1975, 4
        %v1978 = vshll.u32 %v1796, 16
        %v1980 = vrot.slane %v1978, 5
        %v1981 = vsel %vm346, %v1976, %v1980
        %v1983 = vshrl.u32 %v1797, 16
        %v1985 = vrot.slane %v1983, 4
        %v1986 = vshll.u32 %v1797, 16
        %v1988 = vrot.slane %v1986, 5
        %v1989 = vor.u32 %v1985, %v1988
        %v1990 = vrot.slane %v1989, 4
        %v1992 = vshll.u32 %v1798, 16
        %v1994 = vrot.slane %v1992, 5
        %v1995 = vsel %vm346, %v1990, %v1994
        %v1996 = vshrl.u32 %v1798, 16
        %v1998 = vrot.slane %v1996, 4
        %v1999 = vor.u32 %v1998, %v1994
        %v2000 = vrot.slane %v1999, 4
        %v2002 = vshll.u32 %v1799, 16
        %v2004 = vrot.slane %v2002, 5
        %v2005 = vsel %vm346, %v2000, %v2004
        %v2007 = vshrl.u32 %v1800, 16
        %v2009 = vrot.slane %v2007, 4
        %v2010 = vshll.u32 %v1800, 16
        %v2012 = vrot.slane %v2010, 5
        %v2013 = vor.u32 %v2009, %v2012
        %v2014 = vrot.slane %v2013, 4
        %v2016 = vshll.u32 %v1801, 16
        %v2018 = vrot.slane %v2016, 5
        %v2019 = vsel %vm346, %v2014, %v2018
        %v2020 = vshrl.u32 %v1801, 16
        %v2022 = vrot.slane %v2020, 4
        %v2023 = vor.u32 %v2022, %v2018
        %v2024 = vrot.slane %v2023, 4
        %v2026 = vshll.u32 %v1802, 16
        %v2028 = vrot.slane %v2026, 5
        %v2029 = vsel %vm346, %v2024, %v2028
        %v2031 = vshrl.u32 %v1803, 16
        %v2033 = vrot.slane %v2031, 4
        %v2034 = vshll.u32 %v1803, 16
        %v2036 = vrot.slane %v2034, 5
        %v2037 = vor.u32 %v2033, %v2036
        %v2038 = vrot.slane %v2037, 4
        %v2040 = vshll.u32 %v1804, 16
        %v2042 = vrot.slane %v2040, 5
        %v2043 = vsel %vm346, %v2038, %v2042
        %v2044 = vshrl.u32 %v1804, 16
        %v2046 = vrot.slane %v2044, 4
        %v2047 = vor.u32 %v2046, %v2042
        %v2048 = vrot.slane %v2047, 4
        %v2050 = vshll.u32 %v1805, 16
        %v2052 = vrot.slane %v2050, 5
        %v2053 = vsel %vm346, %v2048, %v2052
        %v2055 = vshrl.u32 %v1806, 16
        %v2057 = vrot.slane %v2055, 4
        %v2058 = vshll.u32 %v1806, 16
        %v2060 = vrot.slane %v2058, 5
        %v2061 = vor.u32 %v2057, %v2060
        %v2062 = vrot.slane %v2061, 4
        %v2064 = vshll.u32 %v1807, 16
        %v2066 = vrot.slane %v2064, 5
        %v2067 = vsel %vm346, %v2062, %v2066
        %v2068 = vshrl.u32 %v1807, 16
        %v2070 = vrot.slane %v2068, 4
        %v2071 = vor.u32 %v2070, %v2066
        %v2072 = vrot.slane %v2071, 4
        %v2074 = vshll.u32 %v1808, 16
        %v2076 = vrot.slane %v2074, 5
        %v2077 = vsel %vm346, %v2072, %v2076
        %v2079 = vshrl.u32 %v1809, 16
        %v2081 = vrot.slane %v2079, 4
        %v2082 = vshll.u32 %v1809, 16
        %v2084 = vrot.slane %v2082, 5
        %v2085 = vor.u32 %v2081, %v2084
        %v2086 = vrot.slane %v2085, 4
        %v2088 = vshll.u32 %v1810, 16
        %v2090 = vrot.slane %v2088, 5
        %v2091 = vsel %vm346, %v2086, %v2090
        %v2092 = vshrl.u32 %v1810, 16
        %v2094 = vrot.slane %v2092, 4
        %v2095 = vor.u32 %v2094, %v2090
        %v2096 = vrot.slane %v2095, 4
        %v2098 = vshll.u32 %v1811, 16
        %v2100 = vrot.slane %v2098, 5
        %v2101 = vsel %vm346, %v2096, %v2100
        %v2103 = vshrl.u32 %v1812, 16
        %v2105 = vrot.slane %v2103, 4
        %v2106 = vshll.u32 %v1812, 16
        %v2108 = vrot.slane %v2106, 5
        %v2109 = vor.u32 %v2105, %v2108
        %v2110 = vrot.slane %v2109, 4
        %v2112 = vshll.u32 %v1813, 16
        %v2114 = vrot.slane %v2112, 5
        %v2115 = vsel %vm346, %v2110, %v2114
        %v2116 = vshrl.u32 %v1813, 16
        %v2118 = vrot.slane %v2116, 4
        %v2119 = vor.u32 %v2118, %v2114
        %v2120 = vrot.slane %v2119, 4
        %v2122 = vshll.u32 %v1814, 16
        %v2124 = vrot.slane %v2122, 5
        %v2125 = vsel %vm346, %v2120, %v2124
        %v2127 = vshrl.u32 %v1815, 16
        %v2129 = vrot.slane %v2127, 4
        %v2130 = vshll.u32 %v1815, 16
        %v2132 = vrot.slane %v2130, 5
        %v2133 = vor.u32 %v2129, %v2132
        %v2134 = vrot.slane %v2133, 4
        %v2136 = vshll.u32 %v1816, 16
        %v2138 = vrot.slane %v2136, 5
        %v2139 = vsel %vm346, %v2134, %v2138
        %v2140 = vshrl.u32 %v1816, 16
        %v2142 = vrot.slane %v2140, 4
        %v2143 = vor.u32 %v2142, %v2138
        %v2144 = vrot.slane %v2143, 4
        %v2146 = vshll.u32 %v1817, 16
        %v2148 = vrot.slane %v2146, 5
        %v2149 = vsel %vm346, %v2144, %v2148
        %v2151 = vshrl.u32 %v1818, 16
        %v2153 = vrot.slane %v2151, 4
        %v2154 = vshll.u32 %v1818, 16
        %v2156 = vrot.slane %v2154, 5
        %v2157 = vor.u32 %v2153, %v2156
        %v2158 = vrot.slane %v2157, 4
        %v2160 = vshll.u32 %v1819, 16
        %v2162 = vrot.slane %v2160, 5
        %v2163 = vsel %vm346, %v2158, %v2162
        %v2164 = vshrl.u32 %v1819, 16
        %v2166 = vrot.slane %v2164, 4
        %v2167 = vor.u32 %v2166, %v2162
        %v2168 = vrot.slane %v2167, 4
        %v2170 = vshll.u32 %v1820, 16
        %v2172 = vrot.slane %v2170, 5
        %v2173 = vsel %vm346, %v2168, %v2172
        %v2175 = vshrl.u32 %v1821, 16
        %v2177 = vrot.slane %v2175, 4
        %v2178 = vshll.u32 %v1821, 16
        %v2180 = vrot.slane %v2178, 5
        %v2181 = vor.u32 %v2177, %v2180
        %v2182 = vrot.slane %v2181, 4
        %v2184 = vshll.u32 %v1822, 16
        %v2186 = vrot.slane %v2184, 5
        %v2187 = vsel %vm346, %v2182, %v2186
        %v2188 = vshrl.u32 %v1822, 16
        %v2190 = vrot.slane %v2188, 4
        %v2191 = vor.u32 %v2190, %v2186
        %v2192 = vrot.slane %v2191, 4
        %v2194 = vshll.u32 %v1823, 16
        %v2196 = vrot.slane %v2194, 5
        %v2197 = vsel %vm346, %v2192, %v2196
        %v2199 = vshrl.u32 %v1824, 16
        %v2201 = vrot.slane %v2199, 4
        %v2202 = vshll.u32 %v1824, 16
        %v2204 = vrot.slane %v2202, 5
        %v2205 = vor.u32 %v2201, %v2204
        %v2206 = vrot.slane %v2205, 4
        %v2208 = vshll.u32 %v1825, 16
        %v2210 = vrot.slane %v2208, 5
        %v2211 = vsel %vm346, %v2206, %v2210
        %v2212 = vshrl.u32 %v1825, 16
        %v2214 = vrot.slane %v2212, 4
        %v2215 = vor.u32 %v2214, %v2210
        %v2216 = vrot.slane %v2215, 4
        %v2218 = vshll.u32 %v1826, 16
        %v2220 = vrot.slane %v2218, 5
        %v2221 = vsel %vm346, %v2216, %v2220
        %v2223 = vshrl.u32 %v1827, 16
        %v2225 = vrot.slane %v2223, 4
        %v2226 = vshll.u32 %v1827, 16
        %v2228 = vrot.slane %v2226, 5
        %v2229 = vor.u32 %v2225, %v2228
        %v2230 = vrot.slane %v2229, 4
        %v2232 = vshll.u32 %v1828, 16
        %v2234 = vrot.slane %v2232, 5
        %v2235 = vsel %vm346, %v2230, %v2234
        %v2236 = vshrl.u32 %v1828, 16
        %v2238 = vrot.slane %v2236, 4
        %v2239 = vor.u32 %v2238, %v2234
        %v2240 = vrot.slane %v2239, 4
        %v2242 = vshll.u32 %v1829, 16
        %v2244 = vrot.slane %v2242, 5
        %v2245 = vsel %vm346, %v2240, %v2244
        %2278 = vst [vmem:[#allocation2 + $0x1c] sm:$0xf] %v1875
        %2279 = vst [vmem:[#allocation2 + $0x40] sm:$0xf] %v1885
        %2280 = vst [vmem:[#allocation2 + $0x64] sm:$0xf] %v1899
        %2281 = vst [vmem:[#allocation2 + $0x88] sm:$0xf] %v1909
        %2282 = vst [vmem:[#allocation2 + $0xac] sm:$0xf] %v1923
        %2283 = vst [vmem:[#allocation2 + $0xd0] sm:$0xf] %v1933
        %2284 = vst [vmem:[#allocation2 + $0xf4] sm:$0xf] %v1947
        %2285 = vst [vmem:[#allocation2 + $0x118] sm:$0xf] %v1957
        %2286 = vst [vmem:[#allocation2 + $0x13c] sm:$0xf] %v1971
        %2287 = vst [vmem:[#allocation2 + $0x160] sm:$0xf] %v1981
        %2288 = vst [vmem:[#allocation2 + $0x184] sm:$0xf] %v1995
        %2289 = vst [vmem:[#allocation2 + $0x1a8] sm:$0xf] %v2005
        %2290 = vst [vmem:[#allocation2 + $0x1cc] sm:$0xf] %v2019
        %2291 = vst [vmem:[#allocation2 + $0x1f0] sm:$0xf] %v2029
        %2292 = vst [vmem:[#allocation2 + $0x214] sm:$0xf] %v2043
        %2293 = vst [vmem:[#allocation2 + $0x238] sm:$0xf] %v2053
        %2294 = vst [vmem:[#allocation2 + $0x25c] sm:$0xf] %v2067
        %2295 = vst [vmem:[#allocation2 + $0x280] sm:$0xf] %v2077
        %2296 = vst [vmem:[#allocation2 + $0x2a4] sm:$0xf] %v2091
        %2297 = vst [vmem:[#allocation2 + $0x2c8] sm:$0xf] %v2101
        %2298 = vst [vmem:[#allocation2 + $0x2ec] sm:$0xf] %v2115
        %2299 = vst [vmem:[#allocation2 + $0x310] sm:$0xf] %v2125
        %2300 = vst [vmem:[#allocation2 + $0x334] sm:$0xf] %v2139
        %2301 = vst [vmem:[#allocation2 + $0x358] sm:$0xf] %v2149
        %2302 = vst [vmem:[#allocation2 + $0x37c] sm:$0xf] %v2163
        %2303 = vst [vmem:[#allocation2 + $0x3a0] sm:$0xf] %v2173
        %2304 = vst [vmem:[#allocation2 + $0x3c4] sm:$0xf] %v2187
        %2305 = vst [vmem:[#allocation2 + $0x3e8] sm:$0xf] %v2197
        %2306 = vst [vmem:[#allocation2 + $0x40c] sm:$0xf] %v2211
        %2307 = vst [vmem:[#allocation2 + $0x430] sm:$0xf] %v2221
        %2308 = vst [vmem:[#allocation2 + $0x454] sm:$0xf] %v2235
        %2309 = vst [vmem:[#allocation2 + $0x478] sm:$0xf] %v2245
        %v2358 = vrot.slane %v1782, 5
        %v2359 = vrot.slane %v2358, 4
        %v2360 = vrot.slane %v1783, 5
        %v2361 = vsel %vm845, %v2359, %v2360
        %v2362 = vrot.slane %v2360, 4
        %v2363 = vrot.slane %v1784, 5
        %v2364 = vsel %vm845, %v2362, %v2363
        %v2365 = vrot.slane %v1785, 5
        %v2366 = vrot.slane %v2365, 4
        %v2367 = vrot.slane %v1786, 5
        %v2368 = vsel %vm845, %v2366, %v2367
        %v2369 = vrot.slane %v2367, 4
        %v2370 = vrot.slane %v1787, 5
        %v2371 = vsel %vm845, %v2369, %v2370
        %v2372 = vrot.slane %v1788, 5
        %v2373 = vrot.slane %v2372, 4
        %v2374 = vrot.slane %v1789, 5
        %v2375 = vsel %vm845, %v2373, %v2374
        %v2376 = vrot.slane %v2374, 4
        %v2377 = vrot.slane %v1790, 5
        %v2378 = vsel %vm845, %v2376, %v2377
        %v2379 = vrot.slane %v1791, 5
        %v2380 = vrot.slane %v2379, 4
        %v2381 = vrot.slane %v1792, 5
        %v2382 = vsel %vm845, %v2380, %v2381
        %v2383 = vrot.slane %v2381, 4
        %v2384 = vrot.slane %v1793, 5
        %v2385 = vsel %vm845, %v2383, %v2384
        %v2386 = vrot.slane %v1794, 5
        %v2387 = vrot.slane %v2386, 4
        %v2388 = vrot.slane %v1795, 5
        %v2389 = vsel %vm845, %v2387, %v2388
        %v2390 = vrot.slane %v2388, 4
        %v2391 = vrot.slane %v1796, 5
        %v2392 = vsel %vm845, %v2390, %v2391
        %v2393 = vrot.slane %v1797, 5
        %v2394 = vrot.slane %v2393, 4
        %v2395 = vrot.slane %v1798, 5
        %v2396 = vsel %vm845, %v2394, %v2395
        %v2397 = vrot.slane %v2395, 4
        %v2398 = vrot.slane %v1799, 5
        %v2399 = vsel %vm845, %v2397, %v2398
        %v2400 = vrot.slane %v1800, 5
        %v2401 = vrot.slane %v2400, 4
        %v2402 = vrot.slane %v1801, 5
        %v2403 = vsel %vm845, %v2401, %v2402
        %v2404 = vrot.slane %v2402, 4
        %v2405 = vrot.slane %v1802, 5
        %v2406 = vsel %vm845, %v2404, %v2405
        %v2407 = vrot.slane %v1803, 5
        %v2408 = vrot.slane %v2407, 4
        %v2409 = vrot.slane %v1804, 5
        %v2410 = vsel %vm845, %v2408, %v2409
        %v2411 = vrot.slane %v2409, 4
        %v2412 = vrot.slane %v1805, 5
        %v2413 = vsel %vm845, %v2411, %v2412
        %v2414 = vrot.slane %v1806, 5
        %v2415 = vrot.slane %v2414, 4
        %v2416 = vrot.slane %v1807, 5
        %v2417 = vsel %vm845, %v2415, %v2416
        %v2418 = vrot.slane %v2416, 4
        %v2419 = vrot.slane %v1808, 5
        %v2420 = vsel %vm845, %v2418, %v2419
        %v2421 = vrot.slane %v1809, 5
        %v2422 = vrot.slane %v2421, 4
        %v2423 = vrot.slane %v1810, 5
        %v2424 = vsel %vm845, %v2422, %v2423
        %v2425 = vrot.slane %v2423, 4
        %v2426 = vrot.slane %v1811, 5
        %v2427 = vsel %vm845, %v2425, %v2426
        %v2428 = vrot.slane %v1812, 5
        %v2429 = vrot.slane %v2428, 4
        %v2430 = vrot.slane %v1813, 5
        %v2431 = vsel %vm845, %v2429, %v2430
        %v2432 = vrot.slane %v2430, 4
        %v2433 = vrot.slane %v1814, 5
        %v2434 = vsel %vm845, %v2432, %v2433
        %v2435 = vrot.slane %v1815, 5
        %v2436 = vrot.slane %v2435, 4
        %v2437 = vrot.slane %v1816, 5
        %v2438 = vsel %vm845, %v2436, %v2437
        %v2439 = vrot.slane %v2437, 4
        %v2440 = vrot.slane %v1817, 5
        %v2441 = vsel %vm845, %v2439, %v2440
        %v2442 = vrot.slane %v1818, 5
        %v2443 = vrot.slane %v2442, 4
        %v2444 = vrot.slane %v1819, 5
        %v2445 = vsel %vm845, %v2443, %v2444
        %v2446 = vrot.slane %v2444, 4
        %v2447 = vrot.slane %v1820, 5
        %v2448 = vsel %vm845, %v2446, %v2447
        %v2449 = vrot.slane %v1821, 5
        %v2450 = vrot.slane %v2449, 4
        %v2451 = vrot.slane %v1822, 5
        %v2452 = vsel %vm845, %v2450, %v2451
        %v2453 = vrot.slane %v2451, 4
        %v2454 = vrot.slane %v1823, 5
        %v2455 = vsel %vm845, %v2453, %v2454
        %v2456 = vrot.slane %v1824, 5
        %v2457 = vrot.slane %v2456, 4
        %v2458 = vrot.slane %v1825, 5
        %v2459 = vsel %vm845, %v2457, %v2458
        %v2460 = vrot.slane %v2458, 4
        %v2461 = vrot.slane %v1826, 5
        %v2462 = vsel %vm845, %v2460, %v2461
        %v2463 = vrot.slane %v1827, 5
        %v2464 = vrot.slane %v2463, 4
        %v2465 = vrot.slane %v1828, 5
        %v2466 = vsel %vm845, %v2464, %v2465
        %v2467 = vrot.slane %v2465, 4
        %v2468 = vrot.slane %v1829, 5
        %v2469 = vsel %vm845, %v2467, %v2468
        %2502 = vst [vmem:[#allocation2 + $0x20] sm:$0xf] %v2361
        %2503 = vst [vmem:[#allocation2 + $0x44] sm:$0xf] %v2364
        %2504 = vst [vmem:[#allocation2 + $0x68] sm:$0xf] %v2368
        %2505 = vst [vmem:[#allocation2 + $0x8c] sm:$0xf] %v2371
        %2506 = vst [vmem:[#allocation2 + $0xb0] sm:$0xf] %v2375
        %2507 = vst [vmem:[#allocation2 + $0xd4] sm:$0xf] %v2378
        %2508 = vst [vmem:[#allocation2 + $0xf8] sm:$0xf] %v2382
        %2509 = vst [vmem:[#allocation2 + $0x11c] sm:$0xf] %v2385
        %2510 = vst [vmem:[#allocation2 + $0x140] sm:$0xf] %v2389
        %2511 = vst [vmem:[#allocation2 + $0x164] sm:$0xf] %v2392
        %2512 = vst [vmem:[#allocation2 + $0x188] sm:$0xf] %v2396
        %2513 = vst [vmem:[#allocation2 + $0x1ac] sm:$0xf] %v2399
        %2514 = vst [vmem:[#allocation2 + $0x1d0] sm:$0xf] %v2403
        %2515 = vst [vmem:[#allocation2 + $0x1f4] sm:$0xf] %v2406
        %2516 = vst [vmem:[#allocation2 + $0x218] sm:$0xf] %v2410
        %2517 = vst [vmem:[#allocation2 + $0x23c] sm:$0xf] %v2413
        %2518 = vst [vmem:[#allocation2 + $0x260] sm:$0xf] %v2417
        %2519 = vst [vmem:[#allocation2 + $0x284] sm:$0xf] %v2420
        %2520 = vst [vmem:[#allocation2 + $0x2a8] sm:$0xf] %v2424
        %2521 = vst [vmem:[#allocation2 + $0x2cc] sm:$0xf] %v2427
        %2522 = vst [vmem:[#allocation2 + $0x2f0] sm:$0xf] %v2431
        %2523 = vst [vmem:[#allocation2 + $0x314] sm:$0xf] %v2434
        %2524 = vst [vmem:[#allocation2 + $0x338] sm:$0xf] %v2438
        %2525 = vst [vmem:[#allocation2 + $0x35c] sm:$0xf] %v2441
        %2526 = vst [vmem:[#allocation2 + $0x380] sm:$0xf] %v2445
        %2527 = vst [vmem:[#allocation2 + $0x3a4] sm:$0xf] %v2448
        %2528 = vst [vmem:[#allocation2 + $0x3c8] sm:$0xf] %v2452
        %2529 = vst [vmem:[#allocation2 + $0x3ec] sm:$0xf] %v2455
        %2530 = vst [vmem:[#allocation2 + $0x410] sm:$0xf] %v2459
        %2531 = vst [vmem:[#allocation2 + $0x434] sm:$0xf] %v2462
        %2532 = vst [vmem:[#allocation2 + $0x458] sm:$0xf] %v2466
        %2533 = vst [vmem:[#allocation2 + $0x47c] sm:$0xf] %v2469
      $region36: #{dc_up_block_2d.1} parent=31 // pred_fallthru
        _
      %v2534 = vld [vmem:[#allocation2] sm:$0xff]
      %v2535 = vld [vmem:[#allocation2 + $0x8] sm:$0xff]
      %v2536 = vld [vmem:[#allocation2 + $0x10] sm:$0xff]
      %v2537 = vld [vmem:[#allocation2 + $0x18] sm:$0xff]
      %v2538 = vld [vmem:[#allocation2 + $0x20] sm:$0xf]
      %v2539 = vld [vmem:[#allocation2 + $0x24] sm:$0xff]
      %v2540 = vld [vmem:[#allocation2 + $0x2c] sm:$0xff]
      %v2541 = vld [vmem:[#allocation2 + $0x34] sm:$0xff]
      %v2542 = vld [vmem:[#allocation2 + $0x3c] sm:$0xff]
      %v2543 = vld [vmem:[#allocation2 + $0x44] sm:$0xf]
      %v2544 = vld [vmem:[#allocation2 + $0x48] sm:$0xff]
      %v2545 = vld [vmem:[#allocation2 + $0x50] sm:$0xff]
      %v2546 = vld [vmem:[#allocation2 + $0x58] sm:$0xff]
      %v2547 = vld [vmem:[#allocation2 + $0x60] sm:$0xff]
      %v2548 = vld [vmem:[#allocation2 + $0x68] sm:$0xf]
      %v2549 = vld [vmem:[#allocation2 + $0x6c] sm:$0xff]
      %v2550 = vld [vmem:[#allocation2 + $0x74] sm:$0xff]
      %v2551 = vld [vmem:[#allocation2 + $0x7c] sm:$0xff]
      %v2552 = vld [vmem:[#allocation2 + $0x84] sm:$0xff]
      %v2553 = vld [vmem:[#allocation2 + $0x8c] sm:$0xf]
      %v2554 = vld [vmem:[#allocation2 + $0x90] sm:$0xff]
      %v2555 = vld [vmem:[#allocation2 + $0x98] sm:$0xff]
      %v2556 = vld [vmem:[#allocation2 + $0xa0] sm:$0xff]
      %v2557 = vld [vmem:[#allocation2 + $0xa8] sm:$0xff]
      %v2558 = vld [vmem:[#allocation2 + $0xb0] sm:$0xf]
      %v2559 = vld [vmem:[#allocation2 + $0xb4] sm:$0xff]
      %v2560 = vld [vmem:[#allocation2 + $0xbc] sm:$0xff]
      %v2561 = vld [vmem:[#allocation2 + $0xc4] sm:$0xff]
      %v2562 = vld [vmem:[#allocation2 + $0xcc] sm:$0xff]
      %v2563 = vld [vmem:[#allocation2 + $0xd4] sm:$0xf]
      %v2564 = vld [vmem:[#allocation2 + $0xd8] sm:$0xff]
      %v2565 = vld [vmem:[#allocation2 + $0xe0] sm:$0xff]
      %v2566 = vld [vmem:[#allocation2 + $0xe8] sm:$0xff]
      %v2567 = vld [vmem:[#allocation2 + $0xf0] sm:$0xff]
      %v2568 = vld [vmem:[#allocation2 + $0xf8] sm:$0xf]
      %v2569 = vld [vmem:[#allocation2 + $0xfc] sm:$0xff]
      %v2570 = vld [vmem:[#allocation2 + $0x104] sm:$0xff]
      %v2571 = vld [vmem:[#allocation2 + $0x10c] sm:$0xff]
      %v2572 = vld [vmem:[#allocation2 + $0x114] sm:$0xff]
      %v2573 = vld [vmem:[#allocation2 + $0x11c] sm:$0xf]
      %v2574 = vld [vmem:[#allocation2 + $0x120] sm:$0xff]
      %v2575 = vld [vmem:[#allocation2 + $0x128] sm:$0xff]
      %v2576 = vld [vmem:[#allocation2 + $0x130] sm:$0xff]
      %v2577 = vld [vmem:[#allocation2 + $0x138] sm:$0xff]
      %v2578 = vld [vmem:[#allocation2 + $0x140] sm:$0xf]
      %v2579 = vld [vmem:[#allocation2 + $0x144] sm:$0xff]
      %v2580 = vld [vmem:[#allocation2 + $0x14c] sm:$0xff]
      %v2581 = vld [vmem:[#allocation2 + $0x154] sm:$0xff]
      %v2582 = vld [vmem:[#allocation2 + $0x15c] sm:$0xff]
      %v2583 = vld [vmem:[#allocation2 + $0x164] sm:$0xf]
      %v2584 = vld [vmem:[#allocation2 + $0x168] sm:$0xff]
      %v2585 = vld [vmem:[#allocation2 + $0x170] sm:$0xff]
      %v2586 = vld [vmem:[#allocation2 + $0x178] sm:$0xff]
      %v2587 = vld [vmem:[#allocation2 + $0x180] sm:$0xff]
      %v2588 = vld [vmem:[#allocation2 + $0x188] sm:$0xf]
      %v2589 = vld [vmem:[#allocation2 + $0x18c] sm:$0xff]
      %v2590 = vld [vmem:[#allocation2 + $0x194] sm:$0xff]
      %v2591 = vld [vmem:[#allocation2 + $0x19c] sm:$0xff]
      %v2592 = vld [vmem:[#allocation2 + $0x1a4] sm:$0xff]
      %v2593 = vld [vmem:[#allocation2 + $0x1ac] sm:$0xf]
      %v2594 = vld [vmem:[#allocation2 + $0x1b0] sm:$0xff]
      %v2595 = vld [vmem:[#allocation2 + $0x1b8] sm:$0xff]
      %v2596 = vld [vmem:[#allocation2 + $0x1c0] sm:$0xff]
      %v2597 = vld [vmem:[#allocation2 + $0x1c8] sm:$0xff]
      %v2598 = vld [vmem:[#allocation2 + $0x1d0] sm:$0xf]
      %v2599 = vld [vmem:[#allocation2 + $0x1d4] sm:$0xff]
      %v2600 = vld [vmem:[#allocation2 + $0x1dc] sm:$0xff]
      %v2601 = vld [vmem:[#allocation2 + $0x1e4] sm:$0xff]
      %v2602 = vld [vmem:[#allocation2 + $0x1ec] sm:$0xff]
      %v2603 = vld [vmem:[#allocation2 + $0x1f4] sm:$0xf]
      %v2604 = vld [vmem:[#allocation2 + $0x1f8] sm:$0xff]
      %v2605 = vld [vmem:[#allocation2 + $0x200] sm:$0xff]
      %v2606 = vld [vmem:[#allocation2 + $0x208] sm:$0xff]
      %v2607 = vld [vmem:[#allocation2 + $0x210] sm:$0xff]
      %v2608 = vld [vmem:[#allocation2 + $0x218] sm:$0xf]
      %v2609 = vld [vmem:[#allocation2 + $0x21c] sm:$0xff]
      %v2610 = vld [vmem:[#allocation2 + $0x224] sm:$0xff]
      %v2611 = vld [vmem:[#allocation2 + $0x22c] sm:$0xff]
      %v2612 = vld [vmem:[#allocation2 + $0x234] sm:$0xff]
      %v2613 = vld [vmem:[#allocation2 + $0x23c] sm:$0xf]
      %v2614 = vld [vmem:[#allocation2 + $0x240] sm:$0xff]
      %v2615 = vld [vmem:[#allocation2 + $0x248] sm:$0xff]
      %v2616 = vld [vmem:[#allocation2 + $0x250] sm:$0xff]
      %v2617 = vld [vmem:[#allocation2 + $0x258] sm:$0xff]
      %v2618 = vld [vmem:[#allocation2 + $0x260] sm:$0xf]
      %v2619 = vld [vmem:[#allocation2 + $0x264] sm:$0xff]
      %v2620 = vld [vmem:[#allocation2 + $0x26c] sm:$0xff]
      %v2621 = vld [vmem:[#allocation2 + $0x274] sm:$0xff]
      %v2622 = vld [vmem:[#allocation2 + $0x27c] sm:$0xff]
      %v2623 = vld [vmem:[#allocation2 + $0x284] sm:$0xf]
      %v2624 = vld [vmem:[#allocation2 + $0x288] sm:$0xff]
      %v2625 = vld [vmem:[#allocation2 + $0x290] sm:$0xff]
      %v2626 = vld [vmem:[#allocation2 + $0x298] sm:$0xff]
      %v2627 = vld [vmem:[#allocation2 + $0x2a0] sm:$0xff]
      %v2628 = vld [vmem:[#allocation2 + $0x2a8] sm:$0xf]
      %v2629 = vld [vmem:[#allocation2 + $0x2ac] sm:$0xff]
      %v2630 = vld [vmem:[#allocation2 + $0x2b4] sm:$0xff]
      %v2631 = vld [vmem:[#allocation2 + $0x2bc] sm:$0xff]
      %v2632 = vld [vmem:[#allocation2 + $0x2c4] sm:$0xff]
      %v2633 = vld [vmem:[#allocation2 + $0x2cc] sm:$0xf]
      %v2634 = vld [vmem:[#allocation2 + $0x2d0] sm:$0xff]
      %v2635 = vld [vmem:[#allocation2 + $0x2d8] sm:$0xff]
      %v2636 = vld [vmem:[#allocation2 + $0x2e0] sm:$0xff]
      %v2637 = vld [vmem:[#allocation2 + $0x2e8] sm:$0xff]
      %v2638 = vld [vmem:[#allocation2 + $0x2f0] sm:$0xf]
      %v2639 = vld [vmem:[#allocation2 + $0x2f4] sm:$0xff]
      %v2640 = vld [vmem:[#allocation2 + $0x2fc] sm:$0xff]
      %v2641 = vld [vmem:[#allocation2 + $0x304] sm:$0xff]
      %v2642 = vld [vmem:[#allocation2 + $0x30c] sm:$0xff]
      %v2643 = vld [vmem:[#allocation2 + $0x314] sm:$0xf]
      %v2644 = vld [vmem:[#allocation2 + $0x318] sm:$0xff]
      %v2645 = vld [vmem:[#allocation2 + $0x320] sm:$0xff]
      %v2646 = vld [vmem:[#allocation2 + $0x328] sm:$0xff]
      %v2647 = vld [vmem:[#allocation2 + $0x330] sm:$0xff]
      %v2648 = vld [vmem:[#allocation2 + $0x338] sm:$0xf]
      %v2649 = vld [vmem:[#allocation2 + $0x33c] sm:$0xff]
      %v2650 = vld [vmem:[#allocation2 + $0x344] sm:$0xff]
      %v2651 = vld [vmem:[#allocation2 + $0x34c] sm:$0xff]
      %v2652 = vld [vmem:[#allocation2 + $0x354] sm:$0xff]
      %v2653 = vld [vmem:[#allocation2 + $0x35c] sm:$0xf]
      %v2654 = vld [vmem:[#allocation2 + $0x360] sm:$0xff]
      %v2655 = vld [vmem:[#allocation2 + $0x368] sm:$0xff]
      %v2656 = vld [vmem:[#allocation2 + $0x370] sm:$0xff]
      %v2657 = vld [vmem:[#allocation2 + $0x378] sm:$0xff]
      %v2658 = vld [vmem:[#allocation2 + $0x380] sm:$0xf]
      %v2659 = vld [vmem:[#allocation2 + $0x384] sm:$0xff]
      %v2660 = vld [vmem:[#allocation2 + $0x38c] sm:$0xff]
      %v2661 = vld [vmem:[#allocation2 + $0x394] sm:$0xff]
      %v2662 = vld [vmem:[#allocation2 + $0x39c] sm:$0xff]
      %v2663 = vld [vmem:[#allocation2 + $0x3a4] sm:$0xf]
      %v2664 = vld [vmem:[#allocation2 + $0x3a8] sm:$0xff]
      %v2665 = vld [vmem:[#allocation2 + $0x3b0] sm:$0xff]
      %v2666 = vld [vmem:[#allocation2 + $0x3b8] sm:$0xff]
      %v2667 = vld [vmem:[#allocation2 + $0x3c0] sm:$0xff]
      %v2668 = vld [vmem:[#allocation2 + $0x3c8] sm:$0xf]
      %v2669 = vld [vmem:[#allocation2 + $0x3cc] sm:$0xff]
      %v2670 = vld [vmem:[#allocation2 + $0x3d4] sm:$0xff]
      %v2671 = vld [vmem:[#allocation2 + $0x3dc] sm:$0xff]
      %v2672 = vld [vmem:[#allocation2 + $0x3e4] sm:$0xff]
      %v2673 = vld [vmem:[#allocation2 + $0x3ec] sm:$0xf]
      %v2674 = vld [vmem:[#allocation2 + $0x3f0] sm:$0xff]
      %v2675 = vld [vmem:[#allocation2 + $0x3f8] sm:$0xff]
      %v2676 = vld [vmem:[#allocation2 + $0x400] sm:$0xff]
      %v2677 = vld [vmem:[#allocation2 + $0x408] sm:$0xff]
      %v2678 = vld [vmem:[#allocation2 + $0x410] sm:$0xf]
      %v2679 = vld [vmem:[#allocation2 + $0x414] sm:$0xff]
      %v2680 = vld [vmem:[#allocation2 + $0x41c] sm:$0xff]
      %v2681 = vld [vmem:[#allocation2 + $0x424] sm:$0xff]
      %v2682 = vld [vmem:[#allocation2 + $0x42c] sm:$0xff]
      %v2683 = vld [vmem:[#allocation2 + $0x434] sm:$0xf]
      %v2684 = vld [vmem:[#allocation2 + $0x438] sm:$0xff]
      %v2685 = vld [vmem:[#allocation2 + $0x440] sm:$0xff]
      %v2686 = vld [vmem:[#allocation2 + $0x448] sm:$0xff]
      %v2687 = vld [vmem:[#allocation2 + $0x450] sm:$0xff]
      %v2688 = vld [vmem:[#allocation2 + $0x458] sm:$0xf]
      %v2689 = vld [vmem:[#allocation2 + $0x45c] sm:$0xff]
      %v2690 = vld [vmem:[#allocation2 + $0x464] sm:$0xff]
      %v2691 = vld [vmem:[#allocation2 + $0x46c] sm:$0xff]
      %v2692 = vld [vmem:[#allocation2 + $0x474] sm:$0xff]
      %v2693 = vld [vmem:[#allocation2 + $0x47c] sm:$0xf]
      %v2694 = vld [vmem:[%s232] sm:$0xff]
      %v2695 = vld [vmem:[%s232 + $0x8] sm:$0xff]
      %v2696 = vld [vmem:[%s232 + $0x10] sm:$0xff]
      %v2697 = vld [vmem:[%s232 + $0x18] sm:$0xff]
      %v2698 = vld [vmem:[%s232 + $0x20] sm:$0xff]
      %v2699 = vld [vmem:[%s232 + $0x28] sm:$0xff]
      %v2700 = vld [vmem:[%s232 + $0x30] sm:$0xff]
      %v2701 = vld [vmem:[%s232 + $0x38] sm:$0xff]
      %v2702 = vld [vmem:[%s232 + $0x40] sm:$0xff]
      %v2703 = vld [vmem:[%s232 + $0x48] sm:$0xff]
      %v2704 = vld [vmem:[%s232 + $0x50] sm:$0xff]
      %v2705 = vld [vmem:[%s232 + $0x58] sm:$0xff]
      %v2706 = vld [vmem:[%s232 + $0x60] sm:$0xff]
      %v2707 = vld [vmem:[%s232 + $0x68] sm:$0xff]
      %v2708 = vld [vmem:[%s232 + $0x70] sm:$0xff]
      %v2709 = vld [vmem:[%s232 + $0x78] sm:$0xff]
      %v2710 = vld [vmem:[%s232 + $0x80] sm:$0xff]
      %v2711 = vld [vmem:[%s232 + $0x88] sm:$0xff]
      %v2712 = vld [vmem:[%s232 + $0x90] sm:$0xff]
      %v2713 = vld [vmem:[%s232 + $0x98] sm:$0xff]
      %v2714 = vld [vmem:[%s232 + $0xa0] sm:$0xff]
      %v2715 = vld [vmem:[%s232 + $0xa8] sm:$0xff]
      %v2716 = vld [vmem:[%s232 + $0xb0] sm:$0xff]
      %v2717 = vld [vmem:[%s232 + $0xb8] sm:$0xff]
      %v2718 = vld [vmem:[%s232 + $0xc0] sm:$0xff]
      %v2719 = vld [vmem:[%s232 + $0xc8] sm:$0xff]
      %v2720 = vld [vmem:[%s232 + $0xd0] sm:$0xff]
      %v2721 = vld [vmem:[%s232 + $0xd8] sm:$0xff]
      %v2722 = vld [vmem:[%s232 + $0xe0] sm:$0xff]
      %v2723 = vld [vmem:[%s232 + $0xe8] sm:$0xff]
      %v2724 = vld [vmem:[%s232 + $0xf0] sm:$0xff]
      %v2725 = vld [vmem:[%s232 + $0xf8] sm:$0xff]
      %v2726 = vld [vmem:[%s232 + $0x100] sm:$0xff]
      %v2727 = vld [vmem:[%s232 + $0x108] sm:$0xff]
      %v2728 = vld [vmem:[%s232 + $0x110] sm:$0xff]
      %v2729 = vld [vmem:[%s232 + $0x118] sm:$0xff]
      %v2730 = vld [vmem:[%s232 + $0x120] sm:$0xff]
      %v2731 = vld [vmem:[%s232 + $0x128] sm:$0xff]
      %v2732 = vld [vmem:[%s232 + $0x130] sm:$0xff]
      %v2733 = vld [vmem:[%s232 + $0x138] sm:$0xff]
      %v2734 = vld [vmem:[%s232 + $0x140] sm:$0xff]
      %v2735 = vld [vmem:[%s232 + $0x148] sm:$0xff]
      %v2736 = vld [vmem:[%s232 + $0x150] sm:$0xff]
      %v2737 = vld [vmem:[%s232 + $0x158] sm:$0xff]
      %v2738 = vld [vmem:[%s232 + $0x160] sm:$0xff]
      %v2739 = vld [vmem:[%s232 + $0x168] sm:$0xff]
      %v2740 = vld [vmem:[%s232 + $0x170] sm:$0xff]
      %v2741 = vld [vmem:[%s232 + $0x178] sm:$0xff]
      %v2742 = vld [vmem:[%s232 + $0x180] sm:$0xff]
      %v2743 = vld [vmem:[%s232 + $0x188] sm:$0xff]
      %v2744 = vld [vmem:[%s232 + $0x190] sm:$0xff]
      %v2745 = vld [vmem:[%s232 + $0x198] sm:$0xff]
      %v2746 = vld [vmem:[%s232 + $0x1a0] sm:$0xff]
      %v2747 = vld [vmem:[%s232 + $0x1a8] sm:$0xff]
      %v2748 = vld [vmem:[%s232 + $0x1b0] sm:$0xff]
      %v2749 = vld [vmem:[%s232 + $0x1b8] sm:$0xff]
      %v2750 = vld [vmem:[%s232 + $0x1c0] sm:$0xff]
      %v2751 = vld [vmem:[%s232 + $0x1c8] sm:$0xff]
      %v2752 = vld [vmem:[%s232 + $0x1d0] sm:$0xff]
      %v2753 = vld [vmem:[%s232 + $0x1d8] sm:$0xff]
      %v2754 = vld [vmem:[%s232 + $0x1e0] sm:$0xff]
      %v2755 = vld [vmem:[%s232 + $0x1e8] sm:$0xff]
      %v2756 = vld [vmem:[%s232 + $0x1f0] sm:$0xff]
      %v2757 = vld [vmem:[%s232 + $0x1f8] sm:$0xff]
      %v2758 = vld [vmem:[%s232 + $0x200] sm:$0xff]
      %v2759 = vld [vmem:[%s232 + $0x208] sm:$0xff]
      %v2760 = vld [vmem:[%s232 + $0x210] sm:$0xff]
      %v2761 = vld [vmem:[%s232 + $0x218] sm:$0xff]
      %v2762 = vld [vmem:[%s232 + $0x220] sm:$0xff]
      %v2763 = vld [vmem:[%s232 + $0x228] sm:$0xff]
      %v2764 = vld [vmem:[%s232 + $0x230] sm:$0xff]
      %v2765 = vld [vmem:[%s232 + $0x238] sm:$0xff]
      %v2766 = vld [vmem:[%s232 + $0x240] sm:$0xff]
      %v2767 = vld [vmem:[%s232 + $0x248] sm:$0xff]
      %v2768 = vld [vmem:[%s232 + $0x250] sm:$0xff]
      %v2769 = vld [vmem:[%s232 + $0x258] sm:$0xff]
      %v2770 = vld [vmem:[%s232 + $0x260] sm:$0xff]
      %v2771 = vld [vmem:[%s232 + $0x268] sm:$0xff]
      %v2772 = vld [vmem:[%s232 + $0x270] sm:$0xff]
      %v2773 = vld [vmem:[%s232 + $0x278] sm:$0xff]
      %v2774 = vld [vmem:[%s232 + $0x280] sm:$0xff]
      %v2775 = vld [vmem:[%s232 + $0x288] sm:$0xff]
      %v2776 = vld [vmem:[%s232 + $0x290] sm:$0xff]
      %v2777 = vld [vmem:[%s232 + $0x298] sm:$0xff]
      %v2778 = vld [vmem:[%s232 + $0x2a0] sm:$0xff]
      %v2779 = vld [vmem:[%s232 + $0x2a8] sm:$0xff]
      %v2780 = vld [vmem:[%s232 + $0x2b0] sm:$0xff]
      %v2781 = vld [vmem:[%s232 + $0x2b8] sm:$0xff]
      %v2782 = vld [vmem:[%s232 + $0x2c0] sm:$0xff]
      %v2783 = vld [vmem:[%s232 + $0x2c8] sm:$0xff]
      %v2784 = vld [vmem:[%s232 + $0x2d0] sm:$0xff]
      %v2785 = vld [vmem:[%s232 + $0x2d8] sm:$0xff]
      %v2786 = vld [vmem:[%s232 + $0x2e0] sm:$0xff]
      %v2787 = vld [vmem:[%s232 + $0x2e8] sm:$0xff]
      %v2788 = vld [vmem:[%s232 + $0x2f0] sm:$0xff]
      %v2789 = vld [vmem:[%s232 + $0x2f8] sm:$0xff]
      %v2790 = vld [vmem:[%s232 + $0x300] sm:$0xff]
      %v2791 = vld [vmem:[%s232 + $0x308] sm:$0xff]
      %v2792 = vld [vmem:[%s232 + $0x310] sm:$0xff]
      %v2793 = vld [vmem:[%s232 + $0x318] sm:$0xff]
      %v2794 = vld [vmem:[%s232 + $0x320] sm:$0xff]
      %v2795 = vld [vmem:[%s232 + $0x328] sm:$0xff]
      %v2796 = vld [vmem:[%s232 + $0x330] sm:$0xff]
      %v2797 = vld [vmem:[%s232 + $0x338] sm:$0xff]
      %v2798 = vld [vmem:[%s232 + $0x340] sm:$0xff]
      %v2799 = vld [vmem:[%s232 + $0x348] sm:$0xff]
      %v2800 = vld [vmem:[%s232 + $0x350] sm:$0xff]
      %v2801 = vld [vmem:[%s232 + $0x358] sm:$0xff]
      %v2802 = vld [vmem:[%s232 + $0x360] sm:$0xff]
      %v2803 = vld [vmem:[%s232 + $0x368] sm:$0xff]
      %v2804 = vld [vmem:[%s232 + $0x370] sm:$0xff]
      %v2805 = vld [vmem:[%s232 + $0x378] sm:$0xff]
      %v2806 = vld [vmem:[%s232 + $0x380] sm:$0xff]
      %v2807 = vld [vmem:[%s232 + $0x388] sm:$0xff]
      %v2808 = vld [vmem:[%s232 + $0x390] sm:$0xff]
      %v2809 = vld [vmem:[%s232 + $0x398] sm:$0xff]
      %v2810 = vld [vmem:[%s232 + $0x3a0] sm:$0xff]
      %v2811 = vld [vmem:[%s232 + $0x3a8] sm:$0xff]
      %v2812 = vld [vmem:[%s232 + $0x3b0] sm:$0xff]
      %v2813 = vld [vmem:[%s232 + $0x3b8] sm:$0xff]
      %v2814 = vld [vmem:[%s232 + $0x3c0] sm:$0xff]
      %v2815 = vld [vmem:[%s232 + $0x3c8] sm:$0xff]
      %v2816 = vld [vmem:[%s232 + $0x3d0] sm:$0xff]
      %v2817 = vld [vmem:[%s232 + $0x3d8] sm:$0xff]
      %v2818 = vld [vmem:[%s232 + $0x3e0] sm:$0xff]
      %v2819 = vld [vmem:[%s232 + $0x3e8] sm:$0xff]
      %v2820 = vld [vmem:[%s232 + $0x3f0] sm:$0xff]
      %v2821 = vld [vmem:[%s232 + $0x3f8] sm:$0xff]
      %v2822 = vld [vmem:[%s232 + $0x400] sm:$0xff]
      %v2823 = vld [vmem:[%s232 + $0x408] sm:$0xff]
      %v2824 = vld [vmem:[%s232 + $0x410] sm:$0xff]
      %v2825 = vld [vmem:[%s232 + $0x418] sm:$0xff]
      %v2826 = vld [vmem:[%s232 + $0x420] sm:$0xff]
      %v2827 = vld [vmem:[%s232 + $0x428] sm:$0xff]
      %v2828 = vld [vmem:[%s232 + $0x430] sm:$0xff]
      %v2829 = vld [vmem:[%s232 + $0x438] sm:$0xff]
      %v2830 = vld [vmem:[%s232 + $0x440] sm:$0xff]
      %v2831 = vld [vmem:[%s232 + $0x448] sm:$0xff]
      %v2832 = vld [vmem:[%s232 + $0x450] sm:$0xff]
      %v2833 = vld [vmem:[%s232 + $0x458] sm:$0xff]
      %v2834 = vld [vmem:[%s232 + $0x460] sm:$0xff]
      %v2835 = vld [vmem:[%s232 + $0x468] sm:$0xff]
      %v2836 = vld [vmem:[%s232 + $0x470] sm:$0xff]
      %v2837 = vld [vmem:[%s232 + $0x478] sm:$0xff]
      %v2838 = vld [vmem:[%s232 + $0x480] sm:$0xff]
      %v2839 = vld [vmem:[%s232 + $0x488] sm:$0xff]
      %v2840 = vld [vmem:[%s232 + $0x490] sm:$0xff]
      %v2841 = vld [vmem:[%s232 + $0x498] sm:$0xff]
      %v2842 = vld [vmem:[%s232 + $0x4a0] sm:$0xff]
      %v2843 = vld [vmem:[%s232 + $0x4a8] sm:$0xff]
      %v2844 = vld [vmem:[%s232 + $0x4b0] sm:$0xff]
      %v2845 = vld [vmem:[%s232 + $0x4b8] sm:$0xff]
      %v2846 = vld [vmem:[%s232 + $0x4c0] sm:$0xff]
      %v2847 = vld [vmem:[%s232 + $0x4c8] sm:$0xff]
      %v2848 = vld [vmem:[%s232 + $0x4d0] sm:$0xff]
      %v2849 = vld [vmem:[%s232 + $0x4d8] sm:$0xff]
      %v2850 = vld [vmem:[%s232 + $0x4e0] sm:$0xff]
      %v2851 = vld [vmem:[%s232 + $0x4e8] sm:$0xff]
      %v2852 = vld [vmem:[%s232 + $0x4f0] sm:$0xff]
      %v2853 = vld [vmem:[%s232 + $0x4f8] sm:$0xff]
      %v2854 = vld [vmem:[%s232 + $0x500] sm:$0xff]
      %v2855 = vld [vmem:[%s232 + $0x508] sm:$0xff]
      %v2856 = vld [vmem:[%s232 + $0x510] sm:$0xff]
      %v2857 = vld [vmem:[%s232 + $0x518] sm:$0xff]
      %v2858 = vld [vmem:[%s232 + $0x520] sm:$0xff]
      %v2859 = vld [vmem:[%s232 + $0x528] sm:$0xff]
      %v2860 = vld [vmem:[%s232 + $0x530] sm:$0xff]
      %v2861 = vld [vmem:[%s232 + $0x538] sm:$0xff]
      %v2862 = vld [vmem:[%s232 + $0x540] sm:$0xff]
      %v2863 = vld [vmem:[%s232 + $0x548] sm:$0xff]
      %v2864 = vld [vmem:[%s232 + $0x550] sm:$0xff]
      %v2865 = vld [vmem:[%s232 + $0x558] sm:$0xff]
      %v2866 = vld [vmem:[%s232 + $0x560] sm:$0xff]
      %v2867 = vld [vmem:[%s232 + $0x568] sm:$0xff]
      %v2868 = vld [vmem:[%s232 + $0x570] sm:$0xff]
      %v2869 = vld [vmem:[%s232 + $0x578] sm:$0xff]
      %v2870 = vld [vmem:[%s232 + $0x580] sm:$0xff]
      %v2871 = vld [vmem:[%s232 + $0x588] sm:$0xff]
      %v2872 = vld [vmem:[%s232 + $0x590] sm:$0xff]
      %v2873 = vld [vmem:[%s232 + $0x598] sm:$0xff]
      %v2874 = vld [vmem:[%s232 + $0x5a0] sm:$0xff]
      %v2875 = vld [vmem:[%s232 + $0x5a8] sm:$0xff]
      %v2876 = vld [vmem:[%s232 + $0x5b0] sm:$0xff]
      %v2877 = vld [vmem:[%s232 + $0x5b8] sm:$0xff]
      %v2878 = vld [vmem:[%s232 + $0x5c0] sm:$0xff]
      %v2879 = vld [vmem:[%s232 + $0x5c8] sm:$0xff]
      %v2880 = vld [vmem:[%s232 + $0x5d0] sm:$0xff]
      %v2881 = vld [vmem:[%s232 + $0x5d8] sm:$0xff]
      %v2882 = vld [vmem:[%s232 + $0x5e0] sm:$0xff]
      %v2883 = vld [vmem:[%s232 + $0x5e8] sm:$0xff]
      %v2884 = vld [vmem:[%s232 + $0x5f0] sm:$0xff]
      %v2885 = vld [vmem:[%s232 + $0x5f8] sm:$0xff]
      %v2886 = vld [vmem:[%s232 + $0x600] sm:$0xff]
      %v2887 = vld [vmem:[%s232 + $0x608] sm:$0xff]
      %v2888 = vld [vmem:[%s232 + $0x610] sm:$0xff]
      %v2889 = vld [vmem:[%s232 + $0x618] sm:$0xff]
      %v2890 = vld [vmem:[%s232 + $0x620] sm:$0xff]
      %v2891 = vld [vmem:[%s232 + $0x628] sm:$0xff]
      %v2892 = vld [vmem:[%s232 + $0x630] sm:$0xff]
      %v2893 = vld [vmem:[%s232 + $0x638] sm:$0xff]
      %v2894 = vld [vmem:[%s232 + $0x640] sm:$0xff]
      %v2895 = vld [vmem:[%s232 + $0x648] sm:$0xff]
      %v2896 = vld [vmem:[%s232 + $0x650] sm:$0xff]
      %v2897 = vld [vmem:[%s232 + $0x658] sm:$0xff]
      %v2898 = vld [vmem:[%s232 + $0x660] sm:$0xff]
      %v2899 = vld [vmem:[%s232 + $0x668] sm:$0xff]
      %v2900 = vld [vmem:[%s232 + $0x670] sm:$0xff]
      %v2901 = vld [vmem:[%s232 + $0x678] sm:$0xff]
      %v2902 = vld [vmem:[%s232 + $0x680] sm:$0xff]
      %v2903 = vld [vmem:[%s232 + $0x688] sm:$0xff]
      %v2904 = vld [vmem:[%s232 + $0x690] sm:$0xff]
      %v2905 = vld [vmem:[%s232 + $0x698] sm:$0xff]
      %v2906 = vld [vmem:[%s232 + $0x6a0] sm:$0xff]
      %v2907 = vld [vmem:[%s232 + $0x6a8] sm:$0xff]
      %v2908 = vld [vmem:[%s232 + $0x6b0] sm:$0xff]
      %v2909 = vld [vmem:[%s232 + $0x6b8] sm:$0xff]
      %v2910 = vld [vmem:[%s232 + $0x6c0] sm:$0xff]
      %v2911 = vld [vmem:[%s232 + $0x6c8] sm:$0xff]
      %v2912 = vld [vmem:[%s232 + $0x6d0] sm:$0xff]
      %v2913 = vld [vmem:[%s232 + $0x6d8] sm:$0xff]
      %v2914 = vld [vmem:[%s232 + $0x6e0] sm:$0xff]
      %v2915 = vld [vmem:[%s232 + $0x6e8] sm:$0xff]
      %v2916 = vld [vmem:[%s232 + $0x6f0] sm:$0xff]
      %v2917 = vld [vmem:[%s232 + $0x6f8] sm:$0xff]
      %v2918 = vld [vmem:[%s232 + $0x700] sm:$0xff]
      %v2919 = vld [vmem:[%s232 + $0x708] sm:$0xff]
      %v2920 = vld [vmem:[%s232 + $0x710] sm:$0xff]
      %v2921 = vld [vmem:[%s232 + $0x718] sm:$0xff]
      %v2922 = vld [vmem:[%s232 + $0x720] sm:$0xff]
      %v2923 = vld [vmem:[%s232 + $0x728] sm:$0xff]
      %v2924 = vld [vmem:[%s232 + $0x730] sm:$0xff]
      %v2925 = vld [vmem:[%s232 + $0x738] sm:$0xff]
      %v2926 = vld [vmem:[%s232 + $0x740] sm:$0xff]
      %v2927 = vld [vmem:[%s232 + $0x748] sm:$0xff]
      %v2928 = vld [vmem:[%s232 + $0x750] sm:$0xff]
      %v2929 = vld [vmem:[%s232 + $0x758] sm:$0xff]
      %v2930 = vld [vmem:[%s232 + $0x760] sm:$0xff]
      %v2931 = vld [vmem:[%s232 + $0x768] sm:$0xff]
      %v2932 = vld [vmem:[%s232 + $0x770] sm:$0xff]
      %v2933 = vld [vmem:[%s232 + $0x778] sm:$0xff]
      %v2934 = vld [vmem:[%s232 + $0x780] sm:$0xff]
      %v2935 = vld [vmem:[%s232 + $0x788] sm:$0xff]
      %v2936 = vld [vmem:[%s232 + $0x790] sm:$0xff]
      %v2937 = vld [vmem:[%s232 + $0x798] sm:$0xff]
      %v2938 = vld [vmem:[%s232 + $0x7a0] sm:$0xff]
      %v2939 = vld [vmem:[%s232 + $0x7a8] sm:$0xff]
      %v2940 = vld [vmem:[%s232 + $0x7b0] sm:$0xff]
      %v2941 = vld [vmem:[%s232 + $0x7b8] sm:$0xff]
      %v2942 = vld [vmem:[%s232 + $0x7c0] sm:$0xff]
      %v2943 = vld [vmem:[%s232 + $0x7c8] sm:$0xff]
      %v2944 = vld [vmem:[%s232 + $0x7d0] sm:$0xff]
      %v2945 = vld [vmem:[%s232 + $0x7d8] sm:$0xff]
      %v2946 = vld [vmem:[%s232 + $0x7e0] sm:$0xff]
      %v2947 = vld [vmem:[%s232 + $0x7e8] sm:$0xff]
      %v2948 = vld [vmem:[%s232 + $0x7f0] sm:$0xff]
      %v2949 = vld [vmem:[%s232 + $0x7f8] sm:$0xff]
      %v2950 = vld [vmem:[%s232 + $0x800] sm:$0xff]
      %v2951 = vld [vmem:[%s232 + $0x808] sm:$0xff]
      %v2952 = vld [vmem:[%s232 + $0x810] sm:$0xff]
      %v2953 = vld [vmem:[%s232 + $0x818] sm:$0xff]
      %v2954 = vld [vmem:[%s232 + $0x820] sm:$0xff]
      %v2955 = vld [vmem:[%s232 + $0x828] sm:$0xff]
      %v2956 = vld [vmem:[%s232 + $0x830] sm:$0xff]
      %v2957 = vld [vmem:[%s232 + $0x838] sm:$0xff]
      %v2958 = vld [vmem:[%s232 + $0x840] sm:$0xff]
      %v2959 = vld [vmem:[%s232 + $0x848] sm:$0xff]
      %v2960 = vld [vmem:[%s232 + $0x850] sm:$0xff]
      %v2961 = vld [vmem:[%s232 + $0x858] sm:$0xff]
      %v2962 = vld [vmem:[%s232 + $0x860] sm:$0xff]
      %v2963 = vld [vmem:[%s232 + $0x868] sm:$0xff]
      %v2964 = vld [vmem:[%s232 + $0x870] sm:$0xff]
      %v2965 = vld [vmem:[%s232 + $0x878] sm:$0xff]
      %v2966 = vld [vmem:[%s232 + $0x880] sm:$0xff]
      %v2967 = vld [vmem:[%s232 + $0x888] sm:$0xff]
      %v2968 = vld [vmem:[%s232 + $0x890] sm:$0xff]
      %v2969 = vld [vmem:[%s232 + $0x898] sm:$0xff]
      %v2970 = vld [vmem:[%s232 + $0x8a0] sm:$0xff]
      %v2971 = vld [vmem:[%s232 + $0x8a8] sm:$0xff]
      %v2972 = vld [vmem:[%s232 + $0x8b0] sm:$0xff]
      %v2973 = vld [vmem:[%s232 + $0x8b8] sm:$0xff]
      %v2974 = vld [vmem:[%s232 + $0x8c0] sm:$0xff]
      %v2975 = vld [vmem:[%s232 + $0x8c8] sm:$0xff]
      %v2976 = vld [vmem:[%s232 + $0x8d0] sm:$0xff]
      %v2977 = vld [vmem:[%s232 + $0x8d8] sm:$0xff]
      %v2978 = vld [vmem:[%s232 + $0x8e0] sm:$0xff]
      %v2979 = vld [vmem:[%s232 + $0x8e8] sm:$0xff]
      %v2980 = vld [vmem:[%s232 + $0x8f0] sm:$0xff]
      %v2981 = vld [vmem:[%s232 + $0x8f8] sm:$0xff]
      %v2982 = vld [vmem:[%s237] sm:$0xf]
      %v2984 = vlaneseq
      %v2985 = vshrl.u32 %v2984, 7
      %v2986 = vsub.s32 0, %v2985
      %v2987 = vrot.slane %v2982, %v2986
      %v2988 = vlaneseq
      %v2989 = vshrl.u32 %v2988, 7
      %v2990 = vsub.s32 1, %v2989
      %v2991 = vrot.slane %v2982, %v2990
      %v2992 = vlaneseq
      %v2993 = vshrl.u32 %v2992, 7
      %v2994 = vsub.s32 2, %v2993
      %v2995 = vrot.slane %v2982, %v2994
      %v2996 = vlaneseq
      %v2997 = vshrl.u32 %v2996, 7
      %v2998 = vsub.s32 3, %v2997
      %v2999 = vrot.slane %v2982, %v2998
      %v3164 = vunpack.c.l.b16 %v2534
      %v3165 = vunpack.c.h.b16 %v2534
      %v3166 = vunpack.c.l.b16 %v2535
      %v3167 = vunpack.c.h.b16 %v2535
      %v3168 = vunpack.c.l.b16 %v2536
      %v3169 = vunpack.c.h.b16 %v2536
      %v3170 = vunpack.c.l.b16 %v2537
      %v3171 = vunpack.c.h.b16 %v2537
      %v3172 = vunpack.c.l.b16 %v2538
      %v3173 = vunpack.c.l.b16 %v2539
      %v3174 = vunpack.c.h.b16 %v2539
      %v3175 = vunpack.c.l.b16 %v2540
      %v3176 = vunpack.c.h.b16 %v2540
      %v3177 = vunpack.c.l.b16 %v2541
      %v3178 = vunpack.c.h.b16 %v2541
      %v3179 = vunpack.c.l.b16 %v2542
      %v3180 = vunpack.c.h.b16 %v2542
      %v3181 = vunpack.c.l.b16 %v2543
      %v3182 = vunpack.c.l.b16 %v2544
      %v3183 = vunpack.c.h.b16 %v2544
      %v3184 = vunpack.c.l.b16 %v2545
      %v3185 = vunpack.c.h.b16 %v2545
      %v3186 = vunpack.c.l.b16 %v2546
      %v3187 = vunpack.c.h.b16 %v2546
      %v3188 = vunpack.c.l.b16 %v2547
      %v3189 = vunpack.c.h.b16 %v2547
      %v3190 = vunpack.c.l.b16 %v2548
      %v3191 = vunpack.c.l.b16 %v2549
      %v3192 = vunpack.c.h.b16 %v2549
      %v3193 = vunpack.c.l.b16 %v2550
      %v3194 = vunpack.c.h.b16 %v2550
      %v3195 = vunpack.c.l.b16 %v2551
      %v3196 = vunpack.c.h.b16 %v2551
      %v3197 = vunpack.c.l.b16 %v2552
      %v3198 = vunpack.c.h.b16 %v2552
      %v3199 = vunpack.c.l.b16 %v2553
      %v3200 = vunpack.c.l.b16 %v2554
      %v3201 = vunpack.c.h.b16 %v2554
      %v3202 = vunpack.c.l.b16 %v2555
      %v3203 = vunpack.c.h.b16 %v2555
      %v3204 = vunpack.c.l.b16 %v2556
      %v3205 = vunpack.c.h.b16 %v2556
      %v3206 = vunpack.c.l.b16 %v2557
      %v3207 = vunpack.c.h.b16 %v2557
      %v3208 = vunpack.c.l.b16 %v2558
      %v3209 = vunpack.c.l.b16 %v2559
      %v3210 = vunpack.c.h.b16 %v2559
      %v3211 = vunpack.c.l.b16 %v2560
      %v3212 = vunpack.c.h.b16 %v2560
      %v3213 = vunpack.c.l.b16 %v2561
      %v3214 = vunpack.c.h.b16 %v2561
      %v3215 = vunpack.c.l.b16 %v2562
      %v3216 = vunpack.c.h.b16 %v2562
      %v3217 = vunpack.c.l.b16 %v2563
      %v3218 = vunpack.c.l.b16 %v2564
      %v3219 = vunpack.c.h.b16 %v2564
      %v3220 = vunpack.c.l.b16 %v2565
      %v3221 = vunpack.c.h.b16 %v2565
      %v3222 = vunpack.c.l.b16 %v2566
      %v3223 = vunpack.c.h.b16 %v2566
      %v3224 = vunpack.c.l.b16 %v2567
      %v3225 = vunpack.c.h.b16 %v2567
      %v3226 = vunpack.c.l.b16 %v2568
      %v3227 = vunpack.c.l.b16 %v2569
      %v3228 = vunpack.c.h.b16 %v2569
      %v3229 = vunpack.c.l.b16 %v2570
      %v3230 = vunpack.c.h.b16 %v2570
      %v3231 = vunpack.c.l.b16 %v2571
      %v3232 = vunpack.c.h.b16 %v2571
      %v3233 = vunpack.c.l.b16 %v2572
      %v3234 = vunpack.c.h.b16 %v2572
      %v3235 = vunpack.c.l.b16 %v2573
      %v3236 = vunpack.c.l.b16 %v2574
      %v3237 = vunpack.c.h.b16 %v2574
      %v3238 = vunpack.c.l.b16 %v2575
      %v3239 = vunpack.c.h.b16 %v2575
      %v3240 = vunpack.c.l.b16 %v2576
      %v3241 = vunpack.c.h.b16 %v2576
      %v3242 = vunpack.c.l.b16 %v2577
      %v3243 = vunpack.c.h.b16 %v2577
      %v3244 = vunpack.c.l.b16 %v2578
      %v3245 = vunpack.c.l.b16 %v2579
      %v3246 = vunpack.c.h.b16 %v2579
      %v3247 = vunpack.c.l.b16 %v2580
      %v3248 = vunpack.c.h.b16 %v2580
      %v3249 = vunpack.c.l.b16 %v2581
      %v3250 = vunpack.c.h.b16 %v2581
      %v3251 = vunpack.c.l.b16 %v2582
      %v3252 = vunpack.c.h.b16 %v2582
      %v3253 = vunpack.c.l.b16 %v2583
      %v3254 = vunpack.c.l.b16 %v2584
      %v3255 = vunpack.c.h.b16 %v2584
      %v3256 = vunpack.c.l.b16 %v2585
      %v3257 = vunpack.c.h.b16 %v2585
      %v3258 = vunpack.c.l.b16 %v2586
      %v3259 = vunpack.c.h.b16 %v2586
      %v3260 = vunpack.c.l.b16 %v2587
      %v3261 = vunpack.c.h.b16 %v2587
      %v3262 = vunpack.c.l.b16 %v2588
      %v3263 = vunpack.c.l.b16 %v2589
      %v3264 = vunpack.c.h.b16 %v2589
      %v3265 = vunpack.c.l.b16 %v2590
      %v3266 = vunpack.c.h.b16 %v2590
      %v3267 = vunpack.c.l.b16 %v2591
      %v3268 = vunpack.c.h.b16 %v2591
      %v3269 = vunpack.c.l.b16 %v2592
      %v3270 = vunpack.c.h.b16 %v2592
      %v3271 = vunpack.c.l.b16 %v2593
      %v3272 = vunpack.c.l.b16 %v2594
      %v3273 = vunpack.c.h.b16 %v2594
      %v3274 = vunpack.c.l.b16 %v2595
      %v3275 = vunpack.c.h.b16 %v2595
      %v3276 = vunpack.c.l.b16 %v2596
      %v3277 = vunpack.c.h.b16 %v2596
      %v3278 = vunpack.c.l.b16 %v2597
      %v3279 = vunpack.c.h.b16 %v2597
      %v3280 = vunpack.c.l.b16 %v2598
      %v3281 = vunpack.c.l.b16 %v2599
      %v3282 = vunpack.c.h.b16 %v2599
      %v3283 = vunpack.c.l.b16 %v2600
      %v3284 = vunpack.c.h.b16 %v2600
      %v3285 = vunpack.c.l.b16 %v2601
      %v3286 = vunpack.c.h.b16 %v2601
      %v3287 = vunpack.c.l.b16 %v2602
      %v3288 = vunpack.c.h.b16 %v2602
      %v3289 = vunpack.c.l.b16 %v2603
      %v3290 = vunpack.c.l.b16 %v2604
      %v3291 = vunpack.c.h.b16 %v2604
      %v3292 = vunpack.c.l.b16 %v2605
      %v3293 = vunpack.c.h.b16 %v2605
      %v3294 = vunpack.c.l.b16 %v2606
      %v3295 = vunpack.c.h.b16 %v2606
      %v3296 = vunpack.c.l.b16 %v2607
      %v3297 = vunpack.c.h.b16 %v2607
      %v3298 = vunpack.c.l.b16 %v2608
      %v3299 = vunpack.c.l.b16 %v2609
      %v3300 = vunpack.c.h.b16 %v2609
      %v3301 = vunpack.c.l.b16 %v2610
      %v3302 = vunpack.c.h.b16 %v2610
      %v3303 = vunpack.c.l.b16 %v2611
      %v3304 = vunpack.c.h.b16 %v2611
      %v3305 = vunpack.c.l.b16 %v2612
      %v3306 = vunpack.c.h.b16 %v2612
      %v3307 = vunpack.c.l.b16 %v2613
      %v3308 = vunpack.c.l.b16 %v2614
      %v3309 = vunpack.c.h.b16 %v2614
      %v3310 = vunpack.c.l.b16 %v2615
      %v3311 = vunpack.c.h.b16 %v2615
      %v3312 = vunpack.c.l.b16 %v2616
      %v3313 = vunpack.c.h.b16 %v2616
      %v3314 = vunpack.c.l.b16 %v2617
      %v3315 = vunpack.c.h.b16 %v2617
      %v3316 = vunpack.c.l.b16 %v2618
      %v3317 = vunpack.c.l.b16 %v2619
      %v3318 = vunpack.c.h.b16 %v2619
      %v3319 = vunpack.c.l.b16 %v2620
      %v3320 = vunpack.c.h.b16 %v2620
      %v3321 = vunpack.c.l.b16 %v2621
      %v3322 = vunpack.c.h.b16 %v2621
      %v3323 = vunpack.c.l.b16 %v2622
      %v3324 = vunpack.c.h.b16 %v2622
      %v3325 = vunpack.c.l.b16 %v2623
      %v3326 = vunpack.c.l.b16 %v2624
      %v3327 = vunpack.c.h.b16 %v2624
      %v3328 = vunpack.c.l.b16 %v2625
      %v3329 = vunpack.c.h.b16 %v2625
      %v3330 = vunpack.c.l.b16 %v2626
      %v3331 = vunpack.c.h.b16 %v2626
      %v3332 = vunpack.c.l.b16 %v2627
      %v3333 = vunpack.c.h.b16 %v2627
      %v3334 = vunpack.c.l.b16 %v2628
      %v3335 = vunpack.c.l.b16 %v2629
      %v3336 = vunpack.c.h.b16 %v2629
      %v3337 = vunpack.c.l.b16 %v2630
      %v3338 = vunpack.c.h.b16 %v2630
      %v3339 = vunpack.c.l.b16 %v2631
      %v3340 = vunpack.c.h.b16 %v2631
      %v3341 = vunpack.c.l.b16 %v2632
      %v3342 = vunpack.c.h.b16 %v2632
      %v3343 = vunpack.c.l.b16 %v2633
      %v3344 = vunpack.c.l.b16 %v2634
      %v3345 = vunpack.c.h.b16 %v2634
      %v3346 = vunpack.c.l.b16 %v2635
      %v3347 = vunpack.c.h.b16 %v2635
      %v3348 = vunpack.c.l.b16 %v2636
      %v3349 = vunpack.c.h.b16 %v2636
      %v3350 = vunpack.c.l.b16 %v2637
      %v3351 = vunpack.c.h.b16 %v2637
      %v3352 = vunpack.c.l.b16 %v2638
      %v3353 = vunpack.c.l.b16 %v2639
      %v3354 = vunpack.c.h.b16 %v2639
      %v3355 = vunpack.c.l.b16 %v2640
      %v3356 = vunpack.c.h.b16 %v2640
      %v3357 = vunpack.c.l.b16 %v2641
      %v3358 = vunpack.c.h.b16 %v2641
      %v3359 = vunpack.c.l.b16 %v2642
      %v3360 = vunpack.c.h.b16 %v2642
      %v3361 = vunpack.c.l.b16 %v2643
      %v3362 = vunpack.c.l.b16 %v2644
      %v3363 = vunpack.c.h.b16 %v2644
      %v3364 = vunpack.c.l.b16 %v2645
      %v3365 = vunpack.c.h.b16 %v2645
      %v3366 = vunpack.c.l.b16 %v2646
      %v3367 = vunpack.c.h.b16 %v2646
      %v3368 = vunpack.c.l.b16 %v2647
      %v3369 = vunpack.c.h.b16 %v2647
      %v3370 = vunpack.c.l.b16 %v2648
      %v3371 = vunpack.c.l.b16 %v2649
      %v3372 = vunpack.c.h.b16 %v2649
      %v3373 = vunpack.c.l.b16 %v2650
      %v3374 = vunpack.c.h.b16 %v2650
      %v3375 = vunpack.c.l.b16 %v2651
      %v3376 = vunpack.c.h.b16 %v2651
      %v3377 = vunpack.c.l.b16 %v2652
      %v3378 = vunpack.c.h.b16 %v2652
      %v3379 = vunpack.c.l.b16 %v2653
      %v3380 = vunpack.c.l.b16 %v2654
      %v3381 = vunpack.c.h.b16 %v2654
      %v3382 = vunpack.c.l.b16 %v2655
      %v3383 = vunpack.c.h.b16 %v2655
      %v3384 = vunpack.c.l.b16 %v2656
      %v3385 = vunpack.c.h.b16 %v2656
      %v3386 = vunpack.c.l.b16 %v2657
      %v3387 = vunpack.c.h.b16 %v2657
      %v3388 = vunpack.c.l.b16 %v2658
      %v3389 = vunpack.c.l.b16 %v2659
      %v3390 = vunpack.c.h.b16 %v2659
      %v3391 = vunpack.c.l.b16 %v2660
      %v3392 = vunpack.c.h.b16 %v2660
      %v3393 = vunpack.c.l.b16 %v2661
      %v3394 = vunpack.c.h.b16 %v2661
      %v3395 = vunpack.c.l.b16 %v2662
      %v3396 = vunpack.c.h.b16 %v2662
      %v3397 = vunpack.c.l.b16 %v2663
      %v3398 = vunpack.c.l.b16 %v2664
      %v3399 = vunpack.c.h.b16 %v2664
      %v3400 = vunpack.c.l.b16 %v2665
      %v3401 = vunpack.c.h.b16 %v2665
      %v3402 = vunpack.c.l.b16 %v2666
      %v3403 = vunpack.c.h.b16 %v2666
      %v3404 = vunpack.c.l.b16 %v2667
      %v3405 = vunpack.c.h.b16 %v2667
      %v3406 = vunpack.c.l.b16 %v2668
      %v3407 = vunpack.c.l.b16 %v2669
      %v3408 = vunpack.c.h.b16 %v2669
      %v3409 = vunpack.c.l.b16 %v2670
      %v3410 = vunpack.c.h.b16 %v2670
      %v3411 = vunpack.c.l.b16 %v2671
      %v3412 = vunpack.c.h.b16 %v2671
      %v3413 = vunpack.c.l.b16 %v2672
      %v3414 = vunpack.c.h.b16 %v2672
      %v3415 = vunpack.c.l.b16 %v2673
      %v3416 = vunpack.c.l.b16 %v2674
      %v3417 = vunpack.c.h.b16 %v2674
      %v3418 = vunpack.c.l.b16 %v2675
      %v3419 = vunpack.c.h.b16 %v2675
      %v3420 = vunpack.c.l.b16 %v2676
      %v3421 = vunpack.c.h.b16 %v2676
      %v3422 = vunpack.c.l.b16 %v2677
      %v3423 = vunpack.c.h.b16 %v2677
      %v3424 = vunpack.c.l.b16 %v2678
      %v3425 = vunpack.c.l.b16 %v2679
      %v3426 = vunpack.c.h.b16 %v2679
      %v3427 = vunpack.c.l.b16 %v2680
      %v3428 = vunpack.c.h.b16 %v2680
      %v3429 = vunpack.c.l.b16 %v2681
      %v3430 = vunpack.c.h.b16 %v2681
      %v3431 = vunpack.c.l.b16 %v2682
      %v3432 = vunpack.c.h.b16 %v2682
      %v3433 = vunpack.c.l.b16 %v2683
      %v3434 = vunpack.c.l.b16 %v2684
      %v3435 = vunpack.c.h.b16 %v2684
      %v3436 = vunpack.c.l.b16 %v2685
      %v3437 = vunpack.c.h.b16 %v2685
      %v3438 = vunpack.c.l.b16 %v2686
      %v3439 = vunpack.c.h.b16 %v2686
      %v3440 = vunpack.c.l.b16 %v2687
      %v3441 = vunpack.c.h.b16 %v2687
      %v3442 = vunpack.c.l.b16 %v2688
      %v3443 = vunpack.c.l.b16 %v2689
      %v3444 = vunpack.c.h.b16 %v2689
      %v3445 = vunpack.c.l.b16 %v2690
      %v3446 = vunpack.c.h.b16 %v2690
      %v3447 = vunpack.c.l.b16 %v2691
      %v3448 = vunpack.c.h.b16 %v2691
      %v3449 = vunpack.c.l.b16 %v2692
      %v3450 = vunpack.c.h.b16 %v2692
      %v3451 = vunpack.c.l.b16 %v2693
      %v3452 = vpack.c.b16 %v3173, %v3164
      %v3453 = vpack.c.b16 %v3174, %v3165
      %v3454 = vpack.c.b16 %v3175, %v3166
      %v3455 = vpack.c.b16 %v3176, %v3167
      %v3456 = vpack.c.b16 %v3177, %v3168
      %v3457 = vpack.c.b16 %v3178, %v3169
      %v3458 = vpack.c.b16 %v3179, %v3170
      %v3459 = vpack.c.b16 %v3180, %v3171
      %v3460 = vpack.c.b16 %v3181, %v3172
      %v3461 = vpack.c.b16 %v3191, %v3182
      %v3462 = vpack.c.b16 %v3192, %v3183
      %v3463 = vpack.c.b16 %v3193, %v3184
      %v3464 = vpack.c.b16 %v3194, %v3185
      %v3465 = vpack.c.b16 %v3195, %v3186
      %v3466 = vpack.c.b16 %v3196, %v3187
      %v3467 = vpack.c.b16 %v3197, %v3188
      %v3468 = vpack.c.b16 %v3198, %v3189
      %v3469 = vpack.c.b16 %v3199, %v3190
      %v3470 = vpack.c.b16 %v3209, %v3200
      %v3471 = vpack.c.b16 %v3210, %v3201
      %v3472 = vpack.c.b16 %v3211, %v3202
      %v3473 = vpack.c.b16 %v3212, %v3203
      %v3474 = vpack.c.b16 %v3213, %v3204
      %v3475 = vpack.c.b16 %v3214, %v3205
      %v3476 = vpack.c.b16 %v3215, %v3206
      %v3477 = vpack.c.b16 %v3216, %v3207
      %v3478 = vpack.c.b16 %v3217, %v3208
      %v3479 = vpack.c.b16 %v3227, %v3218
      %v3480 = vpack.c.b16 %v3228, %v3219
      %v3481 = vpack.c.b16 %v3229, %v3220
      %v3482 = vpack.c.b16 %v3230, %v3221
      %v3483 = vpack.c.b16 %v3231, %v3222
      %v3484 = vpack.c.b16 %v3232, %v3223
      %v3485 = vpack.c.b16 %v3233, %v3224
      %v3486 = vpack.c.b16 %v3234, %v3225
      %v3487 = vpack.c.b16 %v3235, %v3226
      %v3488 = vpack.c.b16 %v3245, %v3236
      %v3489 = vpack.c.b16 %v3246, %v3237
      %v3490 = vpack.c.b16 %v3247, %v3238
      %v3491 = vpack.c.b16 %v3248, %v3239
      %v3492 = vpack.c.b16 %v3249, %v3240
      %v3493 = vpack.c.b16 %v3250, %v3241
      %v3494 = vpack.c.b16 %v3251, %v3242
      %v3495 = vpack.c.b16 %v3252, %v3243
      %v3496 = vpack.c.b16 %v3253, %v3244
      %v3497 = vpack.c.b16 %v3263, %v3254
      %v3498 = vpack.c.b16 %v3264, %v3255
      %v3499 = vpack.c.b16 %v3265, %v3256
      %v3500 = vpack.c.b16 %v3266, %v3257
      %v3501 = vpack.c.b16 %v3267, %v3258
      %v3502 = vpack.c.b16 %v3268, %v3259
      %v3503 = vpack.c.b16 %v3269, %v3260
      %v3504 = vpack.c.b16 %v3270, %v3261
      %v3505 = vpack.c.b16 %v3271, %v3262
      %v3506 = vpack.c.b16 %v3281, %v3272
      %v3507 = vpack.c.b16 %v3282, %v3273
      %v3508 = vpack.c.b16 %v3283, %v3274
      %v3509 = vpack.c.b16 %v3284, %v3275
      %v3510 = vpack.c.b16 %v3285, %v3276
      %v3511 = vpack.c.b16 %v3286, %v3277
      %v3512 = vpack.c.b16 %v3287, %v3278
      %v3513 = vpack.c.b16 %v3288, %v3279
      %v3514 = vpack.c.b16 %v3289, %v3280
      %v3515 = vpack.c.b16 %v3299, %v3290
      %v3516 = vpack.c.b16 %v3300, %v3291
      %v3517 = vpack.c.b16 %v3301, %v3292
      %v3518 = vpack.c.b16 %v3302, %v3293
      %v3519 = vpack.c.b16 %v3303, %v3294
      %v3520 = vpack.c.b16 %v3304, %v3295
      %v3521 = vpack.c.b16 %v3305, %v3296
      %v3522 = vpack.c.b16 %v3306, %v3297
      %v3523 = vpack.c.b16 %v3307, %v3298
      %v3524 = vpack.c.b16 %v3317, %v3308
      %v3525 = vpack.c.b16 %v3318, %v3309
      %v3526 = vpack.c.b16 %v3319, %v3310
      %v3527 = vpack.c.b16 %v3320, %v3311
      %v3528 = vpack.c.b16 %v3321, %v3312
      %v3529 = vpack.c.b16 %v3322, %v3313
      %v3530 = vpack.c.b16 %v3323, %v3314
      %v3531 = vpack.c.b16 %v3324, %v3315
      %v3532 = vpack.c.b16 %v3325, %v3316
      %v3533 = vpack.c.b16 %v3335, %v3326
      %v3534 = vpack.c.b16 %v3336, %v3327
      %v3535 = vpack.c.b16 %v3337, %v3328
      %v3536 = vpack.c.b16 %v3338, %v3329
      %v3537 = vpack.c.b16 %v3339, %v3330
      %v3538 = vpack.c.b16 %v3340, %v3331
      %v3539 = vpack.c.b16 %v3341, %v3332
      %v3540 = vpack.c.b16 %v3342, %v3333
      %v3541 = vpack.c.b16 %v3343, %v3334
      %v3542 = vpack.c.b16 %v3353, %v3344
      %v3543 = vpack.c.b16 %v3354, %v3345
      %v3544 = vpack.c.b16 %v3355, %v3346
      %v3545 = vpack.c.b16 %v3356, %v3347
      %v3546 = vpack.c.b16 %v3357, %v3348
      %v3547 = vpack.c.b16 %v3358, %v3349
      %v3548 = vpack.c.b16 %v3359, %v3350
      %v3549 = vpack.c.b16 %v3360, %v3351
      %v3550 = vpack.c.b16 %v3361, %v3352
      %v3551 = vpack.c.b16 %v3371, %v3362
      %v3552 = vpack.c.b16 %v3372, %v3363
      %v3553 = vpack.c.b16 %v3373, %v3364
      %v3554 = vpack.c.b16 %v3374, %v3365
      %v3555 = vpack.c.b16 %v3375, %v3366
      %v3556 = vpack.c.b16 %v3376, %v3367
      %v3557 = vpack.c.b16 %v3377, %v3368
      %v3558 = vpack.c.b16 %v3378, %v3369
      %v3559 = vpack.c.b16 %v3379, %v3370
      %v3560 = vpack.c.b16 %v3389, %v3380
      %v3561 = vpack.c.b16 %v3390, %v3381
      %v3562 = vpack.c.b16 %v3391, %v3382
      %v3563 = vpack.c.b16 %v3392, %v3383
      %v3564 = vpack.c.b16 %v3393, %v3384
      %v3565 = vpack.c.b16 %v3394, %v3385
      %v3566 = vpack.c.b16 %v3395, %v3386
      %v3567 = vpack.c.b16 %v3396, %v3387
      %v3568 = vpack.c.b16 %v3397, %v3388
      %v3569 = vpack.c.b16 %v3407, %v3398
      %v3570 = vpack.c.b16 %v3408, %v3399
      %v3571 = vpack.c.b16 %v3409, %v3400
      %v3572 = vpack.c.b16 %v3410, %v3401
      %v3573 = vpack.c.b16 %v3411, %v3402
      %v3574 = vpack.c.b16 %v3412, %v3403
      %v3575 = vpack.c.b16 %v3413, %v3404
      %v3576 = vpack.c.b16 %v3414, %v3405
      %v3577 = vpack.c.b16 %v3415, %v3406
      %v3578 = vpack.c.b16 %v3425, %v3416
      %v3579 = vpack.c.b16 %v3426, %v3417
      %v3580 = vpack.c.b16 %v3427, %v3418
      %v3581 = vpack.c.b16 %v3428, %v3419
      %v3582 = vpack.c.b16 %v3429, %v3420
      %v3583 = vpack.c.b16 %v3430, %v3421
      %v3584 = vpack.c.b16 %v3431, %v3422
      %v3585 = vpack.c.b16 %v3432, %v3423
      %v3586 = vpack.c.b16 %v3433, %v3424
      %v3587 = vpack.c.b16 %v3443, %v3434
      %v3588 = vpack.c.b16 %v3444, %v3435
      %v3589 = vpack.c.b16 %v3445, %v3436
      %v3590 = vpack.c.b16 %v3446, %v3437
      %v3591 = vpack.c.b16 %v3447, %v3438
      %v3592 = vpack.c.b16 %v3448, %v3439
      %v3593 = vpack.c.b16 %v3449, %v3440
      %v3594 = vpack.c.b16 %v3450, %v3441
      %v3595 = vpack.c.b16 %v3451, %v3442
      %v4028 = vunpack.c.l.b16 %v2694
      %v4029 = vunpack.c.h.b16 %v2694
      %v4030 = vunpack.c.l.b16 %v2695
      %v4031 = vunpack.c.h.b16 %v2695
      %v4032 = vunpack.c.l.b16 %v2696
      %v4033 = vunpack.c.h.b16 %v2696
      %v4034 = vunpack.c.l.b16 %v2697
      %v4035 = vunpack.c.h.b16 %v2697
      %v4036 = vunpack.c.l.b16 %v2698
      %v4037 = vunpack.c.h.b16 %v2698
      %v4038 = vunpack.c.l.b16 %v2699
      %v4039 = vunpack.c.h.b16 %v2699
      %v4040 = vunpack.c.l.b16 %v2700
      %v4041 = vunpack.c.h.b16 %v2700
      %v4042 = vunpack.c.l.b16 %v2701
      %v4043 = vunpack.c.h.b16 %v2701
      %v4044 = vunpack.c.l.b16 %v2702
      %v4045 = vunpack.c.h.b16 %v2702
      %v4046 = vunpack.c.l.b16 %v2703
      %v4047 = vunpack.c.h.b16 %v2703
      %v4048 = vunpack.c.l.b16 %v2704
      %v4049 = vunpack.c.h.b16 %v2704
      %v4050 = vunpack.c.l.b16 %v2705
      %v4051 = vunpack.c.h.b16 %v2705
      %v4052 = vunpack.c.l.b16 %v2706
      %v4053 = vunpack.c.h.b16 %v2706
      %v4054 = vunpack.c.l.b16 %v2707
      %v4055 = vunpack.c.h.b16 %v2707
      %v4056 = vunpack.c.l.b16 %v2708
      %v4057 = vunpack.c.h.b16 %v2708
      %v4058 = vunpack.c.l.b16 %v2709
      %v4059 = vunpack.c.h.b16 %v2709
      %v4060 = vunpack.c.l.b16 %v2710
      %v4061 = vunpack.c.h.b16 %v2710
      %v4062 = vunpack.c.l.b16 %v2711
      %v4063 = vunpack.c.h.b16 %v2711
      %v4064 = vunpack.c.l.b16 %v2712
      %v4065 = vunpack.c.h.b16 %v2712
      %v4066 = vunpack.c.l.b16 %v2713
      %v4067 = vunpack.c.h.b16 %v2713
      %v4068 = vunpack.c.l.b16 %v2714
      %v4069 = vunpack.c.h.b16 %v2714
      %v4070 = vunpack.c.l.b16 %v2715
      %v4071 = vunpack.c.h.b16 %v2715
      %v4072 = vunpack.c.l.b16 %v2716
      %v4073 = vunpack.c.h.b16 %v2716
      %v4074 = vunpack.c.l.b16 %v2717
      %v4075 = vunpack.c.h.b16 %v2717
      %v4076 = vunpack.c.l.b16 %v2718
      %v4077 = vunpack.c.h.b16 %v2718
      %v4078 = vunpack.c.l.b16 %v2719
      %v4079 = vunpack.c.h.b16 %v2719
      %v4080 = vunpack.c.l.b16 %v2720
      %v4081 = vunpack.c.h.b16 %v2720
      %v4082 = vunpack.c.l.b16 %v2721
      %v4083 = vunpack.c.h.b16 %v2721
      %v4084 = vunpack.c.l.b16 %v2722
      %v4085 = vunpack.c.h.b16 %v2722
      %v4086 = vunpack.c.l.b16 %v2723
      %v4087 = vunpack.c.h.b16 %v2723
      %v4088 = vunpack.c.l.b16 %v2724
      %v4089 = vunpack.c.h.b16 %v2724
      %v4090 = vunpack.c.l.b16 %v2725
      %v4091 = vunpack.c.h.b16 %v2725
      %v4092 = vunpack.c.l.b16 %v2726
      %v4093 = vunpack.c.h.b16 %v2726
      %v4094 = vunpack.c.l.b16 %v2727
      %v4095 = vunpack.c.h.b16 %v2727
      %v4096 = vunpack.c.l.b16 %v2728
      %v4097 = vunpack.c.h.b16 %v2728
      %v4098 = vunpack.c.l.b16 %v2729
      %v4099 = vunpack.c.h.b16 %v2729
      %v4100 = vunpack.c.l.b16 %v2730
      %v4101 = vunpack.c.h.b16 %v2730
      %v4102 = vunpack.c.l.b16 %v2731
      %v4103 = vunpack.c.h.b16 %v2731
      %v4104 = vunpack.c.l.b16 %v2732
      %v4105 = vunpack.c.h.b16 %v2732
      %v4106 = vunpack.c.l.b16 %v2733
      %v4107 = vunpack.c.h.b16 %v2733
      %v4108 = vunpack.c.l.b16 %v2734
      %v4109 = vunpack.c.h.b16 %v2734
      %v4110 = vunpack.c.l.b16 %v2735
      %v4111 = vunpack.c.h.b16 %v2735
      %v4112 = vunpack.c.l.b16 %v2736
      %v4113 = vunpack.c.h.b16 %v2736
      %v4114 = vunpack.c.l.b16 %v2737
      %v4115 = vunpack.c.h.b16 %v2737
      %v4116 = vunpack.c.l.b16 %v2738
      %v4117 = vunpack.c.h.b16 %v2738
      %v4118 = vunpack.c.l.b16 %v2739
      %v4119 = vunpack.c.h.b16 %v2739
      %v4120 = vunpack.c.l.b16 %v2740
      %v4121 = vunpack.c.h.b16 %v2740
      %v4122 = vunpack.c.l.b16 %v2741
      %v4123 = vunpack.c.h.b16 %v2741
      %v4124 = vunpack.c.l.b16 %v2742
      %v4125 = vunpack.c.h.b16 %v2742
      %v4126 = vunpack.c.l.b16 %v2743
      %v4127 = vunpack.c.h.b16 %v2743
      %v4128 = vunpack.c.l.b16 %v2744
      %v4129 = vunpack.c.h.b16 %v2744
      %v4130 = vunpack.c.l.b16 %v2745
      %v4131 = vunpack.c.h.b16 %v2745
      %v4132 = vunpack.c.l.b16 %v2746
      %v4133 = vunpack.c.h.b16 %v2746
      %v4134 = vunpack.c.l.b16 %v2747
      %v4135 = vunpack.c.h.b16 %v2747
      %v4136 = vunpack.c.l.b16 %v2748
      %v4137 = vunpack.c.h.b16 %v2748
      %v4138 = vunpack.c.l.b16 %v2749
      %v4139 = vunpack.c.h.b16 %v2749
      %v4140 = vunpack.c.l.b16 %v2750
      %v4141 = vunpack.c.h.b16 %v2750
      %v4142 = vunpack.c.l.b16 %v2751
      %v4143 = vunpack.c.h.b16 %v2751
      %v4144 = vunpack.c.l.b16 %v2752
      %v4145 = vunpack.c.h.b16 %v2752
      %v4146 = vunpack.c.l.b16 %v2753
      %v4147 = vunpack.c.h.b16 %v2753
      %v4148 = vunpack.c.l.b16 %v2754
      %v4149 = vunpack.c.h.b16 %v2754
      %v4150 = vunpack.c.l.b16 %v2755
      %v4151 = vunpack.c.h.b16 %v2755
      %v4152 = vunpack.c.l.b16 %v2756
      %v4153 = vunpack.c.h.b16 %v2756
      %v4154 = vunpack.c.l.b16 %v2757
      %v4155 = vunpack.c.h.b16 %v2757
      %v4156 = vunpack.c.l.b16 %v2758
      %v4157 = vunpack.c.h.b16 %v2758
      %v4158 = vunpack.c.l.b16 %v2759
      %v4159 = vunpack.c.h.b16 %v2759
      %v4160 = vunpack.c.l.b16 %v2760
      %v4161 = vunpack.c.h.b16 %v2760
      %v4162 = vunpack.c.l.b16 %v2761
      %v4163 = vunpack.c.h.b16 %v2761
      %v4164 = vunpack.c.l.b16 %v2762
      %v4165 = vunpack.c.h.b16 %v2762
      %v4166 = vunpack.c.l.b16 %v2763
      %v4167 = vunpack.c.h.b16 %v2763
      %v4168 = vunpack.c.l.b16 %v2764
      %v4169 = vunpack.c.h.b16 %v2764
      %v4170 = vunpack.c.l.b16 %v2765
      %v4171 = vunpack.c.h.b16 %v2765
      %v4172 = vunpack.c.l.b16 %v2766
      %v4173 = vunpack.c.h.b16 %v2766
      %v4174 = vunpack.c.l.b16 %v2767
      %v4175 = vunpack.c.h.b16 %v2767
      %v4176 = vunpack.c.l.b16 %v2768
      %v4177 = vunpack.c.h.b16 %v2768
      %v4178 = vunpack.c.l.b16 %v2769
      %v4179 = vunpack.c.h.b16 %v2769
      %v4180 = vunpack.c.l.b16 %v2770
      %v4181 = vunpack.c.h.b16 %v2770
      %v4182 = vunpack.c.l.b16 %v2771
      %v4183 = vunpack.c.h.b16 %v2771
      %v4184 = vunpack.c.l.b16 %v2772
      %v4185 = vunpack.c.h.b16 %v2772
      %v4186 = vunpack.c.l.b16 %v2773
      %v4187 = vunpack.c.h.b16 %v2773
      %v4188 = vunpack.c.l.b16 %v2774
      %v4189 = vunpack.c.h.b16 %v2774
      %v4190 = vunpack.c.l.b16 %v2775
      %v4191 = vunpack.c.h.b16 %v2775
      %v4192 = vunpack.c.l.b16 %v2776
      %v4193 = vunpack.c.h.b16 %v2776
      %v4194 = vunpack.c.l.b16 %v2777
      %v4195 = vunpack.c.h.b16 %v2777
      %v4196 = vunpack.c.l.b16 %v2778
      %v4197 = vunpack.c.h.b16 %v2778
      %v4198 = vunpack.c.l.b16 %v2779
      %v4199 = vunpack.c.h.b16 %v2779
      %v4200 = vunpack.c.l.b16 %v2780
      %v4201 = vunpack.c.h.b16 %v2780
      %v4202 = vunpack.c.l.b16 %v2781
      %v4203 = vunpack.c.h.b16 %v2781
      %v4204 = vunpack.c.l.b16 %v2782
      %v4205 = vunpack.c.h.b16 %v2782
      %v4206 = vunpack.c.l.b16 %v2783
      %v4207 = vunpack.c.h.b16 %v2783
      %v4208 = vunpack.c.l.b16 %v2784
      %v4209 = vunpack.c.h.b16 %v2784
      %v4210 = vunpack.c.l.b16 %v2785
      %v4211 = vunpack.c.h.b16 %v2785
      %v4212 = vunpack.c.l.b16 %v2786
      %v4213 = vunpack.c.h.b16 %v2786
      %v4214 = vunpack.c.l.b16 %v2787
      %v4215 = vunpack.c.h.b16 %v2787
      %v4216 = vunpack.c.l.b16 %v2788
      %v4217 = vunpack.c.h.b16 %v2788
      %v4218 = vunpack.c.l.b16 %v2789
      %v4219 = vunpack.c.h.b16 %v2789
      %v4220 = vunpack.c.l.b16 %v2790
      %v4221 = vunpack.c.h.b16 %v2790
      %v4222 = vunpack.c.l.b16 %v2791
      %v4223 = vunpack.c.h.b16 %v2791
      %v4224 = vunpack.c.l.b16 %v2792
      %v4225 = vunpack.c.h.b16 %v2792
      %v4226 = vunpack.c.l.b16 %v2793
      %v4227 = vunpack.c.h.b16 %v2793
      %v4228 = vunpack.c.l.b16 %v2794
      %v4229 = vunpack.c.h.b16 %v2794
      %v4230 = vunpack.c.l.b16 %v2795
      %v4231 = vunpack.c.h.b16 %v2795
      %v4232 = vunpack.c.l.b16 %v2796
      %v4233 = vunpack.c.h.b16 %v2796
      %v4234 = vunpack.c.l.b16 %v2797
      %v4235 = vunpack.c.h.b16 %v2797
      %v4236 = vunpack.c.l.b16 %v2798
      %v4237 = vunpack.c.h.b16 %v2798
      %v4238 = vunpack.c.l.b16 %v2799
      %v4239 = vunpack.c.h.b16 %v2799
      %v4240 = vunpack.c.l.b16 %v2800
      %v4241 = vunpack.c.h.b16 %v2800
      %v4242 = vunpack.c.l.b16 %v2801
      %v4243 = vunpack.c.h.b16 %v2801
      %v4244 = vunpack.c.l.b16 %v2802
      %v4245 = vunpack.c.h.b16 %v2802
      %v4246 = vunpack.c.l.b16 %v2803
      %v4247 = vunpack.c.h.b16 %v2803
      %v4248 = vunpack.c.l.b16 %v2804
      %v4249 = vunpack.c.h.b16 %v2804
      %v4250 = vunpack.c.l.b16 %v2805
      %v4251 = vunpack.c.h.b16 %v2805
      %v4252 = vunpack.c.l.b16 %v2806
      %v4253 = vunpack.c.h.b16 %v2806
      %v4254 = vunpack.c.l.b16 %v2807
      %v4255 = vunpack.c.h.b16 %v2807
      %v4256 = vunpack.c.l.b16 %v2808
      %v4257 = vunpack.c.h.b16 %v2808
      %v4258 = vunpack.c.l.b16 %v2809
      %v4259 = vunpack.c.h.b16 %v2809
      %v4260 = vunpack.c.l.b16 %v2810
      %v4261 = vunpack.c.h.b16 %v2810
      %v4262 = vunpack.c.l.b16 %v2811
      %v4263 = vunpack.c.h.b16 %v2811
      %v4264 = vunpack.c.l.b16 %v2812
      %v4265 = vunpack.c.h.b16 %v2812
      %v4266 = vunpack.c.l.b16 %v2813
      %v4267 = vunpack.c.h.b16 %v2813
      %v4268 = vunpack.c.l.b16 %v2814
      %v4269 = vunpack.c.h.b16 %v2814
      %v4270 = vunpack.c.l.b16 %v2815
      %v4271 = vunpack.c.h.b16 %v2815
      %v4272 = vunpack.c.l.b16 %v2816
      %v4273 = vunpack.c.h.b16 %v2816
      %v4274 = vunpack.c.l.b16 %v2817
      %v4275 = vunpack.c.h.b16 %v2817
      %v4276 = vunpack.c.l.b16 %v2818
      %v4277 = vunpack.c.h.b16 %v2818
      %v4278 = vunpack.c.l.b16 %v2819
      %v4279 = vunpack.c.h.b16 %v2819
      %v4280 = vunpack.c.l.b16 %v2820
      %v4281 = vunpack.c.h.b16 %v2820
      %v4282 = vunpack.c.l.b16 %v2821
      %v4283 = vunpack.c.h.b16 %v2821
      %v4284 = vunpack.c.l.b16 %v2822
      %v4285 = vunpack.c.h.b16 %v2822
      %v4286 = vunpack.c.l.b16 %v2823
      %v4287 = vunpack.c.h.b16 %v2823
      %v4288 = vunpack.c.l.b16 %v2824
      %v4289 = vunpack.c.h.b16 %v2824
      %v4290 = vunpack.c.l.b16 %v2825
      %v4291 = vunpack.c.h.b16 %v2825
      %v4292 = vunpack.c.l.b16 %v2826
      %v4293 = vunpack.c.h.b16 %v2826
      %v4294 = vunpack.c.l.b16 %v2827
      %v4295 = vunpack.c.h.b16 %v2827
      %v4296 = vunpack.c.l.b16 %v2828
      %v4297 = vunpack.c.h.b16 %v2828
      %v4298 = vunpack.c.l.b16 %v2829
      %v4299 = vunpack.c.h.b16 %v2829
      %v4300 = vunpack.c.l.b16 %v2830
      %v4301 = vunpack.c.h.b16 %v2830
      %v4302 = vunpack.c.l.b16 %v2831
      %v4303 = vunpack.c.h.b16 %v2831
      %v4304 = vunpack.c.l.b16 %v2832
      %v4305 = vunpack.c.h.b16 %v2832
      %v4306 = vunpack.c.l.b16 %v2833
      %v4307 = vunpack.c.h.b16 %v2833
      %v4308 = vunpack.c.l.b16 %v2834
      %v4309 = vunpack.c.h.b16 %v2834
      %v4310 = vunpack.c.l.b16 %v2835
      %v4311 = vunpack.c.h.b16 %v2835
      %v4312 = vunpack.c.l.b16 %v2836
      %v4313 = vunpack.c.h.b16 %v2836
      %v4314 = vunpack.c.l.b16 %v2837
      %v4315 = vunpack.c.h.b16 %v2837
      %v4316 = vunpack.c.l.b16 %v2838
      %v4317 = vunpack.c.h.b16 %v2838
      %v4318 = vunpack.c.l.b16 %v2839
      %v4319 = vunpack.c.h.b16 %v2839
      %v4320 = vunpack.c.l.b16 %v2840
      %v4321 = vunpack.c.h.b16 %v2840
      %v4322 = vunpack.c.l.b16 %v2841
      %v4323 = vunpack.c.h.b16 %v2841
      %v4324 = vunpack.c.l.b16 %v2842
      %v4325 = vunpack.c.h.b16 %v2842
      %v4326 = vunpack.c.l.b16 %v2843
      %v4327 = vunpack.c.h.b16 %v2843
      %v4328 = vunpack.c.l.b16 %v2844
      %v4329 = vunpack.c.h.b16 %v2844
      %v4330 = vunpack.c.l.b16 %v2845
      %v4331 = vunpack.c.h.b16 %v2845
      %v4332 = vunpack.c.l.b16 %v2846
      %v4333 = vunpack.c.h.b16 %v2846
      %v4334 = vunpack.c.l.b16 %v2847
      %v4335 = vunpack.c.h.b16 %v2847
      %v4336 = vunpack.c.l.b16 %v2848
      %v4337 = vunpack.c.h.b16 %v2848
      %v4338 = vunpack.c.l.b16 %v2849
      %v4339 = vunpack.c.h.b16 %v2849
      %v4340 = vunpack.c.l.b16 %v2850
      %v4341 = vunpack.c.h.b16 %v2850
      %v4342 = vunpack.c.l.b16 %v2851
      %v4343 = vunpack.c.h.b16 %v2851
      %v4344 = vunpack.c.l.b16 %v2852
      %v4345 = vunpack.c.h.b16 %v2852
      %v4346 = vunpack.c.l.b16 %v2853
      %v4347 = vunpack.c.h.b16 %v2853
      %v4348 = vunpack.c.l.b16 %v2854
      %v4349 = vunpack.c.h.b16 %v2854
      %v4350 = vunpack.c.l.b16 %v2855
      %v4351 = vunpack.c.h.b16 %v2855
      %v4352 = vunpack.c.l.b16 %v2856
      %v4353 = vunpack.c.h.b16 %v2856
      %v4354 = vunpack.c.l.b16 %v2857
      %v4355 = vunpack.c.h.b16 %v2857
      %v4356 = vunpack.c.l.b16 %v2858
      %v4357 = vunpack.c.h.b16 %v2858
      %v4358 = vunpack.c.l.b16 %v2859
      %v4359 = vunpack.c.h.b16 %v2859
      %v4360 = vunpack.c.l.b16 %v2860
      %v4361 = vunpack.c.h.b16 %v2860
      %v4362 = vunpack.c.l.b16 %v2861
      %v4363 = vunpack.c.h.b16 %v2861
      %v4364 = vunpack.c.l.b16 %v2862
      %v4365 = vunpack.c.h.b16 %v2862
      %v4366 = vunpack.c.l.b16 %v2863
      %v4367 = vunpack.c.h.b16 %v2863
      %v4368 = vunpack.c.l.b16 %v2864
      %v4369 = vunpack.c.h.b16 %v2864
      %v4370 = vunpack.c.l.b16 %v2865
      %v4371 = vunpack.c.h.b16 %v2865
      %v4372 = vunpack.c.l.b16 %v2866
      %v4373 = vunpack.c.h.b16 %v2866
      %v4374 = vunpack.c.l.b16 %v2867
      %v4375 = vunpack.c.h.b16 %v2867
      %v4376 = vunpack.c.l.b16 %v2868
      %v4377 = vunpack.c.h.b16 %v2868
      %v4378 = vunpack.c.l.b16 %v2869
      %v4379 = vunpack.c.h.b16 %v2869
      %v4380 = vunpack.c.l.b16 %v2870
      %v4381 = vunpack.c.h.b16 %v2870
      %v4382 = vunpack.c.l.b16 %v2871
      %v4383 = vunpack.c.h.b16 %v2871
      %v4384 = vunpack.c.l.b16 %v2872
      %v4385 = vunpack.c.h.b16 %v2872
      %v4386 = vunpack.c.l.b16 %v2873
      %v4387 = vunpack.c.h.b16 %v2873
      %v4388 = vunpack.c.l.b16 %v2874
      %v4389 = vunpack.c.h.b16 %v2874
      %v4390 = vunpack.c.l.b16 %v2875
      %v4391 = vunpack.c.h.b16 %v2875
      %v4392 = vunpack.c.l.b16 %v2876
      %v4393 = vunpack.c.h.b16 %v2876
      %v4394 = vunpack.c.l.b16 %v2877
      %v4395 = vunpack.c.h.b16 %v2877
      %v4396 = vunpack.c.l.b16 %v2878
      %v4397 = vunpack.c.h.b16 %v2878
      %v4398 = vunpack.c.l.b16 %v2879
      %v4399 = vunpack.c.h.b16 %v2879
      %v4400 = vunpack.c.l.b16 %v2880
      %v4401 = vunpack.c.h.b16 %v2880
      %v4402 = vunpack.c.l.b16 %v2881
      %v4403 = vunpack.c.h.b16 %v2881
      %v4404 = vunpack.c.l.b16 %v2882
      %v4405 = vunpack.c.h.b16 %v2882
      %v4406 = vunpack.c.l.b16 %v2883
      %v4407 = vunpack.c.h.b16 %v2883
      %v4408 = vunpack.c.l.b16 %v2884
      %v4409 = vunpack.c.h.b16 %v2884
      %v4410 = vunpack.c.l.b16 %v2885
      %v4411 = vunpack.c.h.b16 %v2885
      %v4412 = vunpack.c.l.b16 %v2886
      %v4413 = vunpack.c.h.b16 %v2886
      %v4414 = vunpack.c.l.b16 %v2887
      %v4415 = vunpack.c.h.b16 %v2887
      %v4416 = vunpack.c.l.b16 %v2888
      %v4417 = vunpack.c.h.b16 %v2888
      %v4418 = vunpack.c.l.b16 %v2889
      %v4419 = vunpack.c.h.b16 %v2889
      %v4420 = vunpack.c.l.b16 %v2890
      %v4421 = vunpack.c.h.b16 %v2890
      %v4422 = vunpack.c.l.b16 %v2891
      %v4423 = vunpack.c.h.b16 %v2891
      %v4424 = vunpack.c.l.b16 %v2892
      %v4425 = vunpack.c.h.b16 %v2892
      %v4426 = vunpack.c.l.b16 %v2893
      %v4427 = vunpack.c.h.b16 %v2893
      %v4428 = vunpack.c.l.b16 %v2894
      %v4429 = vunpack.c.h.b16 %v2894
      %v4430 = vunpack.c.l.b16 %v2895
      %v4431 = vunpack.c.h.b16 %v2895
      %v4432 = vunpack.c.l.b16 %v2896
      %v4433 = vunpack.c.h.b16 %v2896
      %v4434 = vunpack.c.l.b16 %v2897
      %v4435 = vunpack.c.h.b16 %v2897
      %v4436 = vunpack.c.l.b16 %v2898
      %v4437 = vunpack.c.h.b16 %v2898
      %v4438 = vunpack.c.l.b16 %v2899
      %v4439 = vunpack.c.h.b16 %v2899
      %v4440 = vunpack.c.l.b16 %v2900
      %v4441 = vunpack.c.h.b16 %v2900
      %v4442 = vunpack.c.l.b16 %v2901
      %v4443 = vunpack.c.h.b16 %v2901
      %v4444 = vunpack.c.l.b16 %v2902
      %v4445 = vunpack.c.h.b16 %v2902
      %v4446 = vunpack.c.l.b16 %v2903
      %v4447 = vunpack.c.h.b16 %v2903
      %v4448 = vunpack.c.l.b16 %v2904
      %v4449 = vunpack.c.h.b16 %v2904
      %v4450 = vunpack.c.l.b16 %v2905
      %v4451 = vunpack.c.h.b16 %v2905
      %v4452 = vunpack.c.l.b16 %v2906
      %v4453 = vunpack.c.h.b16 %v2906
      %v4454 = vunpack.c.l.b16 %v2907
      %v4455 = vunpack.c.h.b16 %v2907
      %v4456 = vunpack.c.l.b16 %v2908
      %v4457 = vunpack.c.h.b16 %v2908
      %v4458 = vunpack.c.l.b16 %v2909
      %v4459 = vunpack.c.h.b16 %v2909
      %v4460 = vunpack.c.l.b16 %v2910
      %v4461 = vunpack.c.h.b16 %v2910
      %v4462 = vunpack.c.l.b16 %v2911
      %v4463 = vunpack.c.h.b16 %v2911
      %v4464 = vunpack.c.l.b16 %v2912
      %v4465 = vunpack.c.h.b16 %v2912
      %v4466 = vunpack.c.l.b16 %v2913
      %v4467 = vunpack.c.h.b16 %v2913
      %v4468 = vunpack.c.l.b16 %v2914
      %v4469 = vunpack.c.h.b16 %v2914
      %v4470 = vunpack.c.l.b16 %v2915
      %v4471 = vunpack.c.h.b16 %v2915
      %v4472 = vunpack.c.l.b16 %v2916
      %v4473 = vunpack.c.h.b16 %v2916
      %v4474 = vunpack.c.l.b16 %v2917
      %v4475 = vunpack.c.h.b16 %v2917
      %v4476 = vunpack.c.l.b16 %v2918
      %v4477 = vunpack.c.h.b16 %v2918
      %v4478 = vunpack.c.l.b16 %v2919
      %v4479 = vunpack.c.h.b16 %v2919
      %v4480 = vunpack.c.l.b16 %v2920
      %v4481 = vunpack.c.h.b16 %v2920
      %v4482 = vunpack.c.l.b16 %v2921
      %v4483 = vunpack.c.h.b16 %v2921
      %v4484 = vunpack.c.l.b16 %v2922
      %v4485 = vunpack.c.h.b16 %v2922
      %v4486 = vunpack.c.l.b16 %v2923
      %v4487 = vunpack.c.h.b16 %v2923
      %v4488 = vunpack.c.l.b16 %v2924
      %v4489 = vunpack.c.h.b16 %v2924
      %v4490 = vunpack.c.l.b16 %v2925
      %v4491 = vunpack.c.h.b16 %v2925
      %v4492 = vunpack.c.l.b16 %v2926
      %v4493 = vunpack.c.h.b16 %v2926
      %v4494 = vunpack.c.l.b16 %v2927
      %v4495 = vunpack.c.h.b16 %v2927
      %v4496 = vunpack.c.l.b16 %v2928
      %v4497 = vunpack.c.h.b16 %v2928
      %v4498 = vunpack.c.l.b16 %v2929
      %v4499 = vunpack.c.h.b16 %v2929
      %v4500 = vunpack.c.l.b16 %v2930
      %v4501 = vunpack.c.h.b16 %v2930
      %v4502 = vunpack.c.l.b16 %v2931
      %v4503 = vunpack.c.h.b16 %v2931
      %v4504 = vunpack.c.l.b16 %v2932
      %v4505 = vunpack.c.h.b16 %v2932
      %v4506 = vunpack.c.l.b16 %v2933
      %v4507 = vunpack.c.h.b16 %v2933
      %v4508 = vunpack.c.l.b16 %v2934
      %v4509 = vunpack.c.h.b16 %v2934
      %v4510 = vunpack.c.l.b16 %v2935
      %v4511 = vunpack.c.h.b16 %v2935
      %v4512 = vunpack.c.l.b16 %v2936
      %v4513 = vunpack.c.h.b16 %v2936
      %v4514 = vunpack.c.l.b16 %v2937
      %v4515 = vunpack.c.h.b16 %v2937
      %v4516 = vunpack.c.l.b16 %v2938
      %v4517 = vunpack.c.h.b16 %v2938
      %v4518 = vunpack.c.l.b16 %v2939
      %v4519 = vunpack.c.h.b16 %v2939
      %v4520 = vunpack.c.l.b16 %v2940
      %v4521 = vunpack.c.h.b16 %v2940
      %v4522 = vunpack.c.l.b16 %v2941
      %v4523 = vunpack.c.h.b16 %v2941
      %v4524 = vunpack.c.l.b16 %v2942
      %v4525 = vunpack.c.h.b16 %v2942
      %v4526 = vunpack.c.l.b16 %v2943
      %v4527 = vunpack.c.h.b16 %v2943
      %v4528 = vunpack.c.l.b16 %v2944
      %v4529 = vunpack.c.h.b16 %v2944
      %v4530 = vunpack.c.l.b16 %v2945
      %v4531 = vunpack.c.h.b16 %v2945
      %v4532 = vunpack.c.l.b16 %v2946
      %v4533 = vunpack.c.h.b16 %v2946
      %v4534 = vunpack.c.l.b16 %v2947
      %v4535 = vunpack.c.h.b16 %v2947
      %v4536 = vunpack.c.l.b16 %v2948
      %v4537 = vunpack.c.h.b16 %v2948
      %v4538 = vunpack.c.l.b16 %v2949
      %v4539 = vunpack.c.h.b16 %v2949
      %v4540 = vunpack.c.l.b16 %v2950
      %v4541 = vunpack.c.h.b16 %v2950
      %v4542 = vunpack.c.l.b16 %v2951
      %v4543 = vunpack.c.h.b16 %v2951
      %v4544 = vunpack.c.l.b16 %v2952
      %v4545 = vunpack.c.h.b16 %v2952
      %v4546 = vunpack.c.l.b16 %v2953
      %v4547 = vunpack.c.h.b16 %v2953
      %v4548 = vunpack.c.l.b16 %v2954
      %v4549 = vunpack.c.h.b16 %v2954
      %v4550 = vunpack.c.l.b16 %v2955
      %v4551 = vunpack.c.h.b16 %v2955
      %v4552 = vunpack.c.l.b16 %v2956
      %v4553 = vunpack.c.h.b16 %v2956
      %v4554 = vunpack.c.l.b16 %v2957
      %v4555 = vunpack.c.h.b16 %v2957
      %v4556 = vunpack.c.l.b16 %v2958
      %v4557 = vunpack.c.h.b16 %v2958
      %v4558 = vunpack.c.l.b16 %v2959
      %v4559 = vunpack.c.h.b16 %v2959
      %v4560 = vunpack.c.l.b16 %v2960
      %v4561 = vunpack.c.h.b16 %v2960
      %v4562 = vunpack.c.l.b16 %v2961
      %v4563 = vunpack.c.h.b16 %v2961
      %v4564 = vunpack.c.l.b16 %v2962
      %v4565 = vunpack.c.h.b16 %v2962
      %v4566 = vunpack.c.l.b16 %v2963
      %v4567 = vunpack.c.h.b16 %v2963
      %v4568 = vunpack.c.l.b16 %v2964
      %v4569 = vunpack.c.h.b16 %v2964
      %v4570 = vunpack.c.l.b16 %v2965
      %v4571 = vunpack.c.h.b16 %v2965
      %v4572 = vunpack.c.l.b16 %v2966
      %v4573 = vunpack.c.h.b16 %v2966
      %v4574 = vunpack.c.l.b16 %v2967
      %v4575 = vunpack.c.h.b16 %v2967
      %v4576 = vunpack.c.l.b16 %v2968
      %v4577 = vunpack.c.h.b16 %v2968
      %v4578 = vunpack.c.l.b16 %v2969
      %v4579 = vunpack.c.h.b16 %v2969
      %v4580 = vunpack.c.l.b16 %v2970
      %v4581 = vunpack.c.h.b16 %v2970
      %v4582 = vunpack.c.l.b16 %v2971
      %v4583 = vunpack.c.h.b16 %v2971
      %v4584 = vunpack.c.l.b16 %v2972
      %v4585 = vunpack.c.h.b16 %v2972
      %v4586 = vunpack.c.l.b16 %v2973
      %v4587 = vunpack.c.h.b16 %v2973
      %v4588 = vunpack.c.l.b16 %v2974
      %v4589 = vunpack.c.h.b16 %v2974
      %v4590 = vunpack.c.l.b16 %v2975
      %v4591 = vunpack.c.h.b16 %v2975
      %v4592 = vunpack.c.l.b16 %v2976
      %v4593 = vunpack.c.h.b16 %v2976
      %v4594 = vunpack.c.l.b16 %v2977
      %v4595 = vunpack.c.h.b16 %v2977
      %v4596 = vunpack.c.l.b16 %v2978
      %v4597 = vunpack.c.h.b16 %v2978
      %v4598 = vunpack.c.l.b16 %v2979
      %v4599 = vunpack.c.h.b16 %v2979
      %v4600 = vunpack.c.l.b16 %v2980
      %v4601 = vunpack.c.h.b16 %v2980
      %v4602 = vunpack.c.l.b16 %v2981
      %v4603 = vunpack.c.h.b16 %v2981
      %v4604 = vpack.c.b16 %v4032, %v4028
      %v4605 = vpack.c.b16 %v4033, %v4029
      %v4606 = vpack.c.b16 %v4034, %v4030
      %v4607 = vpack.c.b16 %v4035, %v4031
      %v4608 = vpack.c.b16 %v4040, %v4036
      %v4609 = vpack.c.b16 %v4041, %v4037
      %v4610 = vpack.c.b16 %v4042, %v4038
      %v4611 = vpack.c.b16 %v4043, %v4039
      %v4612 = vpack.c.b16 %v4048, %v4044
      %v4613 = vpack.c.b16 %v4049, %v4045
      %v4614 = vpack.c.b16 %v4050, %v4046
      %v4615 = vpack.c.b16 %v4051, %v4047
      %v4616 = vpack.c.b16 %v4056, %v4052
      %v4617 = vpack.c.b16 %v4057, %v4053
      %v4618 = vpack.c.b16 %v4058, %v4054
      %v4619 = vpack.c.b16 %v4059, %v4055
      %v4620 = vpack.c.b16 %v4064, %v4060
      %v4621 = vpack.c.b16 %v4065, %v4061
      %v4622 = vpack.c.b16 %v4066, %v4062
      %v4623 = vpack.c.b16 %v4067, %v4063
      %v4624 = vpack.c.b16 %v4072, %v4068
      %v4625 = vpack.c.b16 %v4073, %v4069
      %v4626 = vpack.c.b16 %v4074, %v4070
      %v4627 = vpack.c.b16 %v4075, %v4071
      %v4628 = vpack.c.b16 %v4080, %v4076
      %v4629 = vpack.c.b16 %v4081, %v4077
      %v4630 = vpack.c.b16 %v4082, %v4078
      %v4631 = vpack.c.b16 %v4083, %v4079
      %v4632 = vpack.c.b16 %v4088, %v4084
      %v4633 = vpack.c.b16 %v4089, %v4085
      %v4634 = vpack.c.b16 %v4090, %v4086
      %v4635 = vpack.c.b16 %v4091, %v4087
      %v4636 = vpack.c.b16 %v4096, %v4092
      %v4637 = vpack.c.b16 %v4097, %v4093
      %v4638 = vpack.c.b16 %v4098, %v4094
      %v4639 = vpack.c.b16 %v4099, %v4095
      %v4640 = vpack.c.b16 %v4104, %v4100
      %v4641 = vpack.c.b16 %v4105, %v4101
      %v4642 = vpack.c.b16 %v4106, %v4102
      %v4643 = vpack.c.b16 %v4107, %v4103
      %v4644 = vpack.c.b16 %v4112, %v4108
      %v4645 = vpack.c.b16 %v4113, %v4109
      %v4646 = vpack.c.b16 %v4114, %v4110
      %v4647 = vpack.c.b16 %v4115, %v4111
      %v4648 = vpack.c.b16 %v4120, %v4116
      %v4649 = vpack.c.b16 %v4121, %v4117
      %v4650 = vpack.c.b16 %v4122, %v4118
      %v4651 = vpack.c.b16 %v4123, %v4119
      %v4652 = vpack.c.b16 %v4128, %v4124
      %v4653 = vpack.c.b16 %v4129, %v4125
      %v4654 = vpack.c.b16 %v4130, %v4126
      %v4655 = vpack.c.b16 %v4131, %v4127
      %v4656 = vpack.c.b16 %v4136, %v4132
      %v4657 = vpack.c.b16 %v4137, %v4133
      %v4658 = vpack.c.b16 %v4138, %v4134
      %v4659 = vpack.c.b16 %v4139, %v4135
      %v4660 = vpack.c.b16 %v4144, %v4140
      %v4661 = vpack.c.b16 %v4145, %v4141
      %v4662 = vpack.c.b16 %v4146, %v4142
      %v4663 = vpack.c.b16 %v4147, %v4143
      %v4664 = vpack.c.b16 %v4152, %v4148
      %v4665 = vpack.c.b16 %v4153, %v4149
      %v4666 = vpack.c.b16 %v4154, %v4150
      %v4667 = vpack.c.b16 %v4155, %v4151
      %v4668 = vpack.c.b16 %v4160, %v4156
      %v4669 = vpack.c.b16 %v4161, %v4157
      %v4670 = vpack.c.b16 %v4162, %v4158
      %v4671 = vpack.c.b16 %v4163, %v4159
      %v4672 = vpack.c.b16 %v4168, %v4164
      %v4673 = vpack.c.b16 %v4169, %v4165
      %v4674 = vpack.c.b16 %v4170, %v4166
      %v4675 = vpack.c.b16 %v4171, %v4167
      %v4676 = vpack.c.b16 %v4176, %v4172
      %v4677 = vpack.c.b16 %v4177, %v4173
      %v4678 = vpack.c.b16 %v4178, %v4174
      %v4679 = vpack.c.b16 %v4179, %v4175
      %v4680 = vpack.c.b16 %v4184, %v4180
      %v4681 = vpack.c.b16 %v4185, %v4181
      %v4682 = vpack.c.b16 %v4186, %v4182
      %v4683 = vpack.c.b16 %v4187, %v4183
      %v4684 = vpack.c.b16 %v4192, %v4188
      %v4685 = vpack.c.b16 %v4193, %v4189
      %v4686 = vpack.c.b16 %v4194, %v4190
      %v4687 = vpack.c.b16 %v4195, %v4191
      %v4688 = vpack.c.b16 %v4200, %v4196
      %v4689 = vpack.c.b16 %v4201, %v4197
      %v4690 = vpack.c.b16 %v4202, %v4198
      %v4691 = vpack.c.b16 %v4203, %v4199
      %v4692 = vpack.c.b16 %v4208, %v4204
      %v4693 = vpack.c.b16 %v4209, %v4205
      %v4694 = vpack.c.b16 %v4210, %v4206
      %v4695 = vpack.c.b16 %v4211, %v4207
      %v4696 = vpack.c.b16 %v4216, %v4212
      %v4697 = vpack.c.b16 %v4217, %v4213
      %v4698 = vpack.c.b16 %v4218, %v4214
      %v4699 = vpack.c.b16 %v4219, %v4215
      %v4700 = vpack.c.b16 %v4224, %v4220
      %v4701 = vpack.c.b16 %v4225, %v4221
      %v4702 = vpack.c.b16 %v4226, %v4222
      %v4703 = vpack.c.b16 %v4227, %v4223
      %v4704 = vpack.c.b16 %v4232, %v4228
      %v4705 = vpack.c.b16 %v4233, %v4229
      %v4706 = vpack.c.b16 %v4234, %v4230
      %v4707 = vpack.c.b16 %v4235, %v4231
      %v4708 = vpack.c.b16 %v4240, %v4236
      %v4709 = vpack.c.b16 %v4241, %v4237
      %v4710 = vpack.c.b16 %v4242, %v4238
      %v4711 = vpack.c.b16 %v4243, %v4239
      %v4712 = vpack.c.b16 %v4248, %v4244
      %v4713 = vpack.c.b16 %v4249, %v4245
      %v4714 = vpack.c.b16 %v4250, %v4246
      %v4715 = vpack.c.b16 %v4251, %v4247
      %v4716 = vpack.c.b16 %v4256, %v4252
      %v4717 = vpack.c.b16 %v4257, %v4253
      %v4718 = vpack.c.b16 %v4258, %v4254
      %v4719 = vpack.c.b16 %v4259, %v4255
      %v4720 = vpack.c.b16 %v4264, %v4260
      %v4721 = vpack.c.b16 %v4265, %v4261
      %v4722 = vpack.c.b16 %v4266, %v4262
      %v4723 = vpack.c.b16 %v4267, %v4263
      %v4724 = vpack.c.b16 %v4272, %v4268
      %v4725 = vpack.c.b16 %v4273, %v4269
      %v4726 = vpack.c.b16 %v4274, %v4270
      %v4727 = vpack.c.b16 %v4275, %v4271
      %v4728 = vpack.c.b16 %v4280, %v4276
      %v4729 = vpack.c.b16 %v4281, %v4277
      %v4730 = vpack.c.b16 %v4282, %v4278
      %v4731 = vpack.c.b16 %v4283, %v4279
      %v4732 = vpack.c.b16 %v4288, %v4284
      %v4733 = vpack.c.b16 %v4289, %v4285
      %v4734 = vpack.c.b16 %v4290, %v4286
      %v4735 = vpack.c.b16 %v4291, %v4287
      %v4736 = vpack.c.b16 %v4296, %v4292
      %v4737 = vpack.c.b16 %v4297, %v4293
      %v4738 = vpack.c.b16 %v4298, %v4294
      %v4739 = vpack.c.b16 %v4299, %v4295
      %v4740 = vpack.c.b16 %v4304, %v4300
      %v4741 = vpack.c.b16 %v4305, %v4301
      %v4742 = vpack.c.b16 %v4306, %v4302
      %v4743 = vpack.c.b16 %v4307, %v4303
      %v4744 = vpack.c.b16 %v4312, %v4308
      %v4745 = vpack.c.b16 %v4313, %v4309
      %v4746 = vpack.c.b16 %v4314, %v4310
      %v4747 = vpack.c.b16 %v4315, %v4311
      %v4748 = vpack.c.b16 %v4320, %v4316
      %v4749 = vpack.c.b16 %v4321, %v4317
      %v4750 = vpack.c.b16 %v4322, %v4318
      %v4751 = vpack.c.b16 %v4323, %v4319
      %v4752 = vpack.c.b16 %v4328, %v4324
      %v4753 = vpack.c.b16 %v4329, %v4325
      %v4754 = vpack.c.b16 %v4330, %v4326
      %v4755 = vpack.c.b16 %v4331, %v4327
      %v4756 = vpack.c.b16 %v4336, %v4332
      %v4757 = vpack.c.b16 %v4337, %v4333
      %v4758 = vpack.c.b16 %v4338, %v4334
      %v4759 = vpack.c.b16 %v4339, %v4335
      %v4760 = vpack.c.b16 %v4344, %v4340
      %v4761 = vpack.c.b16 %v4345, %v4341
      %v4762 = vpack.c.b16 %v4346, %v4342
      %v4763 = vpack.c.b16 %v4347, %v4343
      %v4764 = vpack.c.b16 %v4352, %v4348
      %v4765 = vpack.c.b16 %v4353, %v4349
      %v4766 = vpack.c.b16 %v4354, %v4350
      %v4767 = vpack.c.b16 %v4355, %v4351
      %v4768 = vpack.c.b16 %v4360, %v4356
      %v4769 = vpack.c.b16 %v4361, %v4357
      %v4770 = vpack.c.b16 %v4362, %v4358
      %v4771 = vpack.c.b16 %v4363, %v4359
      %v4772 = vpack.c.b16 %v4368, %v4364
      %v4773 = vpack.c.b16 %v4369, %v4365
      %v4774 = vpack.c.b16 %v4370, %v4366
      %v4775 = vpack.c.b16 %v4371, %v4367
      %v4776 = vpack.c.b16 %v4376, %v4372
      %v4777 = vpack.c.b16 %v4377, %v4373
      %v4778 = vpack.c.b16 %v4378, %v4374
      %v4779 = vpack.c.b16 %v4379, %v4375
      %v4780 = vpack.c.b16 %v4384, %v4380
      %v4781 = vpack.c.b16 %v4385, %v4381
      %v4782 = vpack.c.b16 %v4386, %v4382
      %v4783 = vpack.c.b16 %v4387, %v4383
      %v4784 = vpack.c.b16 %v4392, %v4388
      %v4785 = vpack.c.b16 %v4393, %v4389
      %v4786 = vpack.c.b16 %v4394, %v4390
      %v4787 = vpack.c.b16 %v4395, %v4391
      %v4788 = vpack.c.b16 %v4400, %v4396
      %v4789 = vpack.c.b16 %v4401, %v4397
      %v4790 = vpack.c.b16 %v4402, %v4398
      %v4791 = vpack.c.b16 %v4403, %v4399
      %v4792 = vpack.c.b16 %v4408, %v4404
      %v4793 = vpack.c.b16 %v4409, %v4405
      %v4794 = vpack.c.b16 %v4410, %v4406
      %v4795 = vpack.c.b16 %v4411, %v4407
      %v4796 = vpack.c.b16 %v4416, %v4412
      %v4797 = vpack.c.b16 %v4417, %v4413
      %v4798 = vpack.c.b16 %v4418, %v4414
      %v4799 = vpack.c.b16 %v4419, %v4415
      %v4800 = vpack.c.b16 %v4424, %v4420
      %v4801 = vpack.c.b16 %v4425, %v4421
      %v4802 = vpack.c.b16 %v4426, %v4422
      %v4803 = vpack.c.b16 %v4427, %v4423
      %v4804 = vpack.c.b16 %v4432, %v4428
      %v4805 = vpack.c.b16 %v4433, %v4429
      %v4806 = vpack.c.b16 %v4434, %v4430
      %v4807 = vpack.c.b16 %v4435, %v4431
      %v4808 = vpack.c.b16 %v4440, %v4436
      %v4809 = vpack.c.b16 %v4441, %v4437
      %v4810 = vpack.c.b16 %v4442, %v4438
      %v4811 = vpack.c.b16 %v4443, %v4439
      %v4812 = vpack.c.b16 %v4448, %v4444
      %v4813 = vpack.c.b16 %v4449, %v4445
      %v4814 = vpack.c.b16 %v4450, %v4446
      %v4815 = vpack.c.b16 %v4451, %v4447
      %v4816 = vpack.c.b16 %v4456, %v4452
      %v4817 = vpack.c.b16 %v4457, %v4453
      %v4818 = vpack.c.b16 %v4458, %v4454
      %v4819 = vpack.c.b16 %v4459, %v4455
      %v4820 = vpack.c.b16 %v4464, %v4460
      %v4821 = vpack.c.b16 %v4465, %v4461
      %v4822 = vpack.c.b16 %v4466, %v4462
      %v4823 = vpack.c.b16 %v4467, %v4463
      %v4824 = vpack.c.b16 %v4472, %v4468
      %v4825 = vpack.c.b16 %v4473, %v4469
      %v4826 = vpack.c.b16 %v4474, %v4470
      %v4827 = vpack.c.b16 %v4475, %v4471
      %v4828 = vpack.c.b16 %v4480, %v4476
      %v4829 = vpack.c.b16 %v4481, %v4477
      %v4830 = vpack.c.b16 %v4482, %v4478
      %v4831 = vpack.c.b16 %v4483, %v4479
      %v4832 = vpack.c.b16 %v4488, %v4484
      %v4833 = vpack.c.b16 %v4489, %v4485
      %v4834 = vpack.c.b16 %v4490, %v4486
      %v4835 = vpack.c.b16 %v4491, %v4487
      %v4836 = vpack.c.b16 %v4496, %v4492
      %v4837 = vpack.c.b16 %v4497, %v4493
      %v4838 = vpack.c.b16 %v4498, %v4494
      %v4839 = vpack.c.b16 %v4499, %v4495
      %v4840 = vpack.c.b16 %v4504, %v4500
      %v4841 = vpack.c.b16 %v4505, %v4501
      %v4842 = vpack.c.b16 %v4506, %v4502
      %v4843 = vpack.c.b16 %v4507, %v4503
      %v4844 = vpack.c.b16 %v4512, %v4508
      %v4845 = vpack.c.b16 %v4513, %v4509
      %v4846 = vpack.c.b16 %v4514, %v4510
      %v4847 = vpack.c.b16 %v4515, %v4511
      %v4848 = vpack.c.b16 %v4520, %v4516
      %v4849 = vpack.c.b16 %v4521, %v4517
      %v4850 = vpack.c.b16 %v4522, %v4518
      %v4851 = vpack.c.b16 %v4523, %v4519
      %v4852 = vpack.c.b16 %v4528, %v4524
      %v4853 = vpack.c.b16 %v4529, %v4525
      %v4854 = vpack.c.b16 %v4530, %v4526
      %v4855 = vpack.c.b16 %v4531, %v4527
      %v4856 = vpack.c.b16 %v4536, %v4532
      %v4857 = vpack.c.b16 %v4537, %v4533
      %v4858 = vpack.c.b16 %v4538, %v4534
      %v4859 = vpack.c.b16 %v4539, %v4535
      %v4860 = vpack.c.b16 %v4544, %v4540
      %v4861 = vpack.c.b16 %v4545, %v4541
      %v4862 = vpack.c.b16 %v4546, %v4542
      %v4863 = vpack.c.b16 %v4547, %v4543
      %v4864 = vpack.c.b16 %v4552, %v4548
      %v4865 = vpack.c.b16 %v4553, %v4549
      %v4866 = vpack.c.b16 %v4554, %v4550
      %v4867 = vpack.c.b16 %v4555, %v4551
      %v4868 = vpack.c.b16 %v4560, %v4556
      %v4869 = vpack.c.b16 %v4561, %v4557
      %v4870 = vpack.c.b16 %v4562, %v4558
      %v4871 = vpack.c.b16 %v4563, %v4559
      %v4872 = vpack.c.b16 %v4568, %v4564
      %v4873 = vpack.c.b16 %v4569, %v4565
      %v4874 = vpack.c.b16 %v4570, %v4566
      %v4875 = vpack.c.b16 %v4571, %v4567
      %v4876 = vpack.c.b16 %v4576, %v4572
      %v4877 = vpack.c.b16 %v4577, %v4573
      %v4878 = vpack.c.b16 %v4578, %v4574
      %v4879 = vpack.c.b16 %v4579, %v4575
      %v4880 = vpack.c.b16 %v4584, %v4580
      %v4881 = vpack.c.b16 %v4585, %v4581
      %v4882 = vpack.c.b16 %v4586, %v4582
      %v4883 = vpack.c.b16 %v4587, %v4583
      %v4884 = vpack.c.b16 %v4592, %v4588
      %v4885 = vpack.c.b16 %v4593, %v4589
      %v4886 = vpack.c.b16 %v4594, %v4590
      %v4887 = vpack.c.b16 %v4595, %v4591
      %v4888 = vpack.c.b16 %v4600, %v4596
      %v4889 = vpack.c.b16 %v4601, %v4597
      %v4890 = vpack.c.b16 %v4602, %v4598
      %v4891 = vpack.c.b16 %v4603, %v4599
      %5180 = vmatprep.subr.bf16.mxu0 %v4633
      %5181 = vmatpush1.bf16.msra.mxu0 %v4632
      %5182 = vmatprep.subr.bf16.mxu0 %v4629
      %5183 = vmatpush1.bf16.msra.mxu0 %v4628
      %5184 = vmatprep.subr.bf16.mxu0 %v4625
      %5185 = vmatpush1.bf16.msra.mxu0 %v4624
      %5186 = vmatprep.subr.bf16.mxu0 %v4621
      %5187 = vmatpush1.bf16.msra.mxu0 %v4620
      %5188 = vmatprep.subr.bf16.mxu0 %v4617
      %5189 = vmatpush1.bf16.msra.mxu0 %v4616
      %5190 = vmatprep.subr.bf16.mxu0 %v4613
      %5191 = vmatpush1.bf16.msra.mxu0 %v4612
      %5192 = vmatprep.subr.bf16.mxu0 %v4609
      %5193 = vmatpush1.bf16.msra.mxu0 %v4608
      %5194 = vmatprep.subr.bf16.mxu0 %v4605
      %5195 = vmatpush1.bf16.msra.mxu0 %v4604
      %5196 = vmatprep.subr.bf16.mxu0 %v4665
      %5197 = vmatpush2.bf16.msra.mxu0 %v4664
      %5198 = vmatprep.subr.bf16.mxu0 %v4661
      %5199 = vmatpush2.bf16.msra.mxu0 %v4660
      %5200 = vmatprep.subr.bf16.mxu0 %v4657
      %5201 = vmatpush2.bf16.msra.mxu0 %v4656
      %5202 = vmatprep.subr.bf16.mxu0 %v4653
      %5203 = vmatpush2.bf16.msra.mxu0 %v4652
      %5204 = vmatprep.subr.bf16.mxu0 %v4649
      %5205 = vmatpush2.bf16.msra.mxu0 %v4648
      %5206 = vmatprep.subr.bf16.mxu0 %v4645
      %5207 = vmatpush2.bf16.msra.mxu0 %v4644
      %5208 = vmatprep.subr.bf16.mxu0 %v4641
      %5209 = vmatpush2.bf16.msra.mxu0 %v4640
      %5210 = vmatprep.subr.bf16.mxu0 %v4637
      %5211 = vmatpush2.bf16.msra.mxu0 %v4636
      %5212 = vmatprep.mubr.bf16.mxu0 %v3453
      %5213 = vmatmul.mubr.bf16.gmra.mxu0 %v3452
      %v5214 = vpop.f32.mrf.mxu0
      %v5215 = vadd.f32 %v2987, %v5214
      %v5216 = vpop.f32.mrf.mxu0
      %v5217 = vadd.f32 %v2991, %v5216
      %v5218 = vpop.f32.mrf.mxu0
      %v5219 = vadd.f32 %v2987, %v5218
      %v5220 = vpop.f32.mrf.mxu0
      %v5221 = vadd.f32 %v2991, %v5220
      %5222 = vmatprep.mubr.bf16.mxu0 %v3462
      %5223 = vmatmul.mubr.bf16.gmra.mxu0 %v3461
      %v5224 = vpop.f32.mrf.mxu0
      %v5225 = vadd.f32 %v2987, %v5224
      %v5226 = vpop.f32.mrf.mxu0
      %v5227 = vadd.f32 %v2991, %v5226
      %v5228 = vpop.f32.mrf.mxu0
      %v5229 = vadd.f32 %v2987, %v5228
      %v5230 = vpop.f32.mrf.mxu0
      %v5231 = vadd.f32 %v2991, %v5230
      %5232 = vmatprep.mubr.bf16.mxu0 %v3471
      %5233 = vmatmul.mubr.bf16.gmra.mxu0 %v3470
      %v5234 = vpop.f32.mrf.mxu0
      %v5235 = vadd.f32 %v2987, %v5234
      %v5236 = vpop.f32.mrf.mxu0
      %v5237 = vadd.f32 %v2991, %v5236
      %v5238 = vpop.f32.mrf.mxu0
      %v5239 = vadd.f32 %v2987, %v5238
      %v5240 = vpop.f32.mrf.mxu0
      %v5241 = vadd.f32 %v2991, %v5240
      %5242 = vmatprep.mubr.bf16.mxu0 %v3480
      %5243 = vmatmul.mubr.bf16.gmra.mxu0 %v3479
      %v5244 = vpop.f32.mrf.mxu0
      %v5245 = vadd.f32 %v2987, %v5244
      %v5246 = vpop.f32.mrf.mxu0
      %v5247 = vadd.f32 %v2991, %v5246
      %v5248 = vpop.f32.mrf.mxu0
      %v5249 = vadd.f32 %v2987, %v5248
      %v5250 = vpop.f32.mrf.mxu0
      %v5251 = vadd.f32 %v2991, %v5250
      %5252 = vmatprep.mubr.bf16.mxu0 %v3489
      %5253 = vmatmul.mubr.bf16.gmra.mxu0 %v3488
      %v5254 = vpop.f32.mrf.mxu0
      %v5255 = vadd.f32 %v2987, %v5254
      %v5256 = vpop.f32.mrf.mxu0
      %v5257 = vadd.f32 %v2991, %v5256
      %v5258 = vpop.f32.mrf.mxu0
      %v5259 = vadd.f32 %v2987, %v5258
      %v5260 = vpop.f32.mrf.mxu0
      %v5261 = vadd.f32 %v2991, %v5260
      %5262 = vmatprep.mubr.bf16.mxu0 %v3498
      %5263 = vmatmul.mubr.bf16.gmra.mxu0 %v3497
      %v5264 = vpop.f32.mrf.mxu0
      %v5265 = vadd.f32 %v2987, %v5264
      %v5266 = vpop.f32.mrf.mxu0
      %v5267 = vadd.f32 %v2991, %v5266
      %v5268 = vpop.f32.mrf.mxu0
      %v5269 = vadd.f32 %v2987, %v5268
      %v5270 = vpop.f32.mrf.mxu0
      %v5271 = vadd.f32 %v2991, %v5270
      %5272 = vmatprep.mubr.bf16.mxu0 %v3507
      %5273 = vmatmul.mubr.bf16.gmra.mxu0 %v3506
      %v5274 = vpop.f32.mrf.mxu0
      %v5275 = vadd.f32 %v2987, %v5274
      %v5276 = vpop.f32.mrf.mxu0
      %v5277 = vadd.f32 %v2991, %v5276
      %v5278 = vpop.f32.mrf.mxu0
      %v5279 = vadd.f32 %v2987, %v5278
      %v5280 = vpop.f32.mrf.mxu0
      %v5281 = vadd.f32 %v2991, %v5280
      %5282 = vmatprep.mubr.bf16.mxu0 %v3516
      %5283 = vmatmul.mubr.bf16.gmra.mxu0 %v3515
      %v5284 = vpop.f32.mrf.mxu0
      %v5285 = vadd.f32 %v2987, %v5284
      %v5286 = vpop.f32.mrf.mxu0
      %v5287 = vadd.f32 %v2991, %v5286
      %v5288 = vpop.f32.mrf.mxu0
      %v5289 = vadd.f32 %v2987, %v5288
      %v5290 = vpop.f32.mrf.mxu0
      %v5291 = vadd.f32 %v2991, %v5290
      %5292 = vmatprep.mubr.bf16.mxu0 %v3525
      %5293 = vmatmul.mubr.bf16.gmra.mxu0 %v3524
      %v5294 = vpop.f32.mrf.mxu0
      %v5295 = vadd.f32 %v2987, %v5294
      %v5296 = vpop.f32.mrf.mxu0
      %v5297 = vadd.f32 %v2991, %v5296
      %v5298 = vpop.f32.mrf.mxu0
      %v5299 = vadd.f32 %v2987, %v5298
      %v5300 = vpop.f32.mrf.mxu0
      %v5301 = vadd.f32 %v2991, %v5300
      %5302 = vmatprep.mubr.bf16.mxu0 %v3534
      %5303 = vmatmul.mubr.bf16.gmra.mxu0 %v3533
      %v5304 = vpop.f32.mrf.mxu0
      %v5305 = vadd.f32 %v2987, %v5304
      %v5306 = vpop.f32.mrf.mxu0
      %v5307 = vadd.f32 %v2991, %v5306
      %v5308 = vpop.f32.mrf.mxu0
      %v5309 = vadd.f32 %v2987, %v5308
      %v5310 = vpop.f32.mrf.mxu0
      %v5311 = vadd.f32 %v2991, %v5310
      %5312 = vmatprep.mubr.bf16.mxu0 %v3543
      %5313 = vmatmul.mubr.bf16.gmra.mxu0 %v3542
      %v5314 = vpop.f32.mrf.mxu0
      %v5315 = vadd.f32 %v2987, %v5314
      %v5316 = vpop.f32.mrf.mxu0
      %v5317 = vadd.f32 %v2991, %v5316
      %v5318 = vpop.f32.mrf.mxu0
      %v5319 = vadd.f32 %v2987, %v5318
      %v5320 = vpop.f32.mrf.mxu0
      %v5321 = vadd.f32 %v2991, %v5320
      %5322 = vmatprep.mubr.bf16.mxu0 %v3552
      %5323 = vmatmul.mubr.bf16.gmra.mxu0 %v3551
      %v5324 = vpop.f32.mrf.mxu0
      %v5325 = vadd.f32 %v2987, %v5324
      %v5326 = vpop.f32.mrf.mxu0
      %v5327 = vadd.f32 %v2991, %v5326
      %v5328 = vpop.f32.mrf.mxu0
      %v5329 = vadd.f32 %v2987, %v5328
      %v5330 = vpop.f32.mrf.mxu0
      %v5331 = vadd.f32 %v2991, %v5330
      %5332 = vmatprep.mubr.bf16.mxu0 %v3561
      %5333 = vmatmul.mubr.bf16.gmra.mxu0 %v3560
      %v5334 = vpop.f32.mrf.mxu0
      %v5335 = vadd.f32 %v2987, %v5334
      %v5336 = vpop.f32.mrf.mxu0
      %v5337 = vadd.f32 %v2991, %v5336
      %v5338 = vpop.f32.mrf.mxu0
      %v5339 = vadd.f32 %v2987, %v5338
      %v5340 = vpop.f32.mrf.mxu0
      %v5341 = vadd.f32 %v2991, %v5340
      %5342 = vmatprep.mubr.bf16.mxu0 %v3570
      %5343 = vmatmul.mubr.bf16.gmra.mxu0 %v3569
      %v5344 = vpop.f32.mrf.mxu0
      %v5345 = vadd.f32 %v2987, %v5344
      %v5346 = vpop.f32.mrf.mxu0
      %v5347 = vadd.f32 %v2991, %v5346
      %v5348 = vpop.f32.mrf.mxu0
      %v5349 = vadd.f32 %v2987, %v5348
      %v5350 = vpop.f32.mrf.mxu0
      %v5351 = vadd.f32 %v2991, %v5350
      %5352 = vmatprep.mubr.bf16.mxu0 %v3579
      %5353 = vmatmul.mubr.bf16.gmra.mxu0 %v3578
      %v5354 = vpop.f32.mrf.mxu0
      %v5355 = vadd.f32 %v2987, %v5354
      %v5356 = vpop.f32.mrf.mxu0
      %v5357 = vadd.f32 %v2991, %v5356
      %v5358 = vpop.f32.mrf.mxu0
      %v5359 = vadd.f32 %v2987, %v5358
      %v5360 = vpop.f32.mrf.mxu0
      %v5361 = vadd.f32 %v2991, %v5360
      %5362 = vmatprep.mubr.bf16.mxu0 %v3588
      %5363 = vmatmul.mubr.bf16.gmra.mxu0 %v3587
      %v5364 = vpop.f32.mrf.mxu0
      %v5365 = vadd.f32 %v2987, %v5364
      %v5366 = vpop.f32.mrf.mxu0
      %v5367 = vadd.f32 %v2991, %v5366
      %v5368 = vpop.f32.mrf.mxu0
      %v5369 = vadd.f32 %v2987, %v5368
      %v5370 = vpop.f32.mrf.mxu0
      %v5371 = vadd.f32 %v2991, %v5370
      %5372 = vdwg.mxu0
      %5373 = vmatprep.subr.bf16.mxu0 %v4697
      %5374 = vmatpush1.bf16.msra.mxu0 %v4696
      %5375 = vmatprep.subr.bf16.mxu0 %v4693
      %5376 = vmatpush1.bf16.msra.mxu0 %v4692
      %5377 = vmatprep.subr.bf16.mxu0 %v4689
      %5378 = vmatpush1.bf16.msra.mxu0 %v4688
      %5379 = vmatprep.subr.bf16.mxu0 %v4685
      %5380 = vmatpush1.bf16.msra.mxu0 %v4684
      %5381 = vmatprep.subr.bf16.mxu0 %v4681
      %5382 = vmatpush1.bf16.msra.mxu0 %v4680
      %5383 = vmatprep.subr.bf16.mxu0 %v4677
      %5384 = vmatpush1.bf16.msra.mxu0 %v4676
      %5385 = vmatprep.subr.bf16.mxu0 %v4673
      %5386 = vmatpush1.bf16.msra.mxu0 %v4672
      %5387 = vmatprep.subr.bf16.mxu0 %v4669
      %5388 = vmatpush1.bf16.msra.mxu0 %v4668
      %5389 = vmatprep.subr.bf16.mxu0 %v4729
      %5390 = vmatpush2.bf16.msra.mxu0 %v4728
      %5391 = vmatprep.subr.bf16.mxu0 %v4725
      %5392 = vmatpush2.bf16.msra.mxu0 %v4724
      %5393 = vmatprep.subr.bf16.mxu0 %v4721
      %5394 = vmatpush2.bf16.msra.mxu0 %v4720
      %5395 = vmatprep.subr.bf16.mxu0 %v4717
      %5396 = vmatpush2.bf16.msra.mxu0 %v4716
      %5397 = vmatprep.subr.bf16.mxu0 %v4713
      %5398 = vmatpush2.bf16.msra.mxu0 %v4712
      %5399 = vmatprep.subr.bf16.mxu0 %v4709
      %5400 = vmatpush2.bf16.msra.mxu0 %v4708
      %5401 = vmatprep.subr.bf16.mxu0 %v4705
      %5402 = vmatpush2.bf16.msra.mxu0 %v4704
      %5403 = vmatprep.subr.bf16.mxu0 %v4701
      %5404 = vmatpush2.bf16.msra.mxu0 %v4700
      %5405 = vmatprep.mubr.bf16.mxu0 %v3455
      %5406 = vmatmul.mubr.bf16.gmra.mxu0 %v3454
      %v5407 = vpop.f32.mrf.mxu0
      %v5408 = vadd.f32 %v5215, %v5407
      %v5409 = vpop.f32.mrf.mxu0
      %v5410 = vadd.f32 %v5217, %v5409
      %v5411 = vpop.f32.mrf.mxu0
      %v5412 = vadd.f32 %v5219, %v5411
      %v5413 = vpop.f32.mrf.mxu0
      %v5414 = vadd.f32 %v5221, %v5413
      %5415 = vmatprep.mubr.bf16.mxu0 %v3464
      %5416 = vmatmul.mubr.bf16.gmra.mxu0 %v3463
      %v5417 = vpop.f32.mrf.mxu0
      %v5418 = vadd.f32 %v5225, %v5417
      %v5419 = vpop.f32.mrf.mxu0
      %v5420 = vadd.f32 %v5227, %v5419
      %v5421 = vpop.f32.mrf.mxu0
      %v5422 = vadd.f32 %v5229, %v5421
      %v5423 = vpop.f32.mrf.mxu0
      %v5424 = vadd.f32 %v5231, %v5423
      %5425 = vmatprep.mubr.bf16.mxu0 %v3473
      %5426 = vmatmul.mubr.bf16.gmra.mxu0 %v3472
      %v5427 = vpop.f32.mrf.mxu0
      %v5428 = vadd.f32 %v5235, %v5427
      %v5429 = vpop.f32.mrf.mxu0
      %v5430 = vadd.f32 %v5237, %v5429
      %v5431 = vpop.f32.mrf.mxu0
      %v5432 = vadd.f32 %v5239, %v5431
      %v5433 = vpop.f32.mrf.mxu0
      %v5434 = vadd.f32 %v5241, %v5433
      %5435 = vmatprep.mubr.bf16.mxu0 %v3482
      %5436 = vmatmul.mubr.bf16.gmra.mxu0 %v3481
      %v5437 = vpop.f32.mrf.mxu0
      %v5438 = vadd.f32 %v5245, %v5437
      %v5439 = vpop.f32.mrf.mxu0
      %v5440 = vadd.f32 %v5247, %v5439
      %v5441 = vpop.f32.mrf.mxu0
      %v5442 = vadd.f32 %v5249, %v5441
      %v5443 = vpop.f32.mrf.mxu0
      %v5444 = vadd.f32 %v5251, %v5443
      %5445 = vmatprep.mubr.bf16.mxu0 %v3491
      %5446 = vmatmul.mubr.bf16.gmra.mxu0 %v3490
      %v5447 = vpop.f32.mrf.mxu0
      %v5448 = vadd.f32 %v5255, %v5447
      %v5449 = vpop.f32.mrf.mxu0
      %v5450 = vadd.f32 %v5257, %v5449
      %v5451 = vpop.f32.mrf.mxu0
      %v5452 = vadd.f32 %v5259, %v5451
      %v5453 = vpop.f32.mrf.mxu0
      %v5454 = vadd.f32 %v5261, %v5453
      %5455 = vmatprep.mubr.bf16.mxu0 %v3500
      %5456 = vmatmul.mubr.bf16.gmra.mxu0 %v3499
      %v5457 = vpop.f32.mrf.mxu0
      %v5458 = vadd.f32 %v5265, %v5457
      %v5459 = vpop.f32.mrf.mxu0
      %v5460 = vadd.f32 %v5267, %v5459
      %v5461 = vpop.f32.mrf.mxu0
      %v5462 = vadd.f32 %v5269, %v5461
      %v5463 = vpop.f32.mrf.mxu0
      %v5464 = vadd.f32 %v5271, %v5463
      %5465 = vmatprep.mubr.bf16.mxu0 %v3509
      %5466 = vmatmul.mubr.bf16.gmra.mxu0 %v3508
      %v5467 = vpop.f32.mrf.mxu0
      %v5468 = vadd.f32 %v5275, %v5467
      %v5469 = vpop.f32.mrf.mxu0
      %v5470 = vadd.f32 %v5277, %v5469
      %v5471 = vpop.f32.mrf.mxu0
      %v5472 = vadd.f32 %v5279, %v5471
      %v5473 = vpop.f32.mrf.mxu0
      %v5474 = vadd.f32 %v5281, %v5473
      %5475 = vmatprep.mubr.bf16.mxu0 %v3518
      %5476 = vmatmul.mubr.bf16.gmra.mxu0 %v3517
      %v5477 = vpop.f32.mrf.mxu0
      %v5478 = vadd.f32 %v5285, %v5477
      %v5479 = vpop.f32.mrf.mxu0
      %v5480 = vadd.f32 %v5287, %v5479
      %v5481 = vpop.f32.mrf.mxu0
      %v5482 = vadd.f32 %v5289, %v5481
      %v5483 = vpop.f32.mrf.mxu0
      %v5484 = vadd.f32 %v5291, %v5483
      %5485 = vmatprep.mubr.bf16.mxu0 %v3527
      %5486 = vmatmul.mubr.bf16.gmra.mxu0 %v3526
      %v5487 = vpop.f32.mrf.mxu0
      %v5488 = vadd.f32 %v5295, %v5487
      %v5489 = vpop.f32.mrf.mxu0
      %v5490 = vadd.f32 %v5297, %v5489
      %v5491 = vpop.f32.mrf.mxu0
      %v5492 = vadd.f32 %v5299, %v5491
      %v5493 = vpop.f32.mrf.mxu0
      %v5494 = vadd.f32 %v5301, %v5493
      %5495 = vmatprep.mubr.bf16.mxu0 %v3536
      %5496 = vmatmul.mubr.bf16.gmra.mxu0 %v3535
      %v5497 = vpop.f32.mrf.mxu0
      %v5498 = vadd.f32 %v5305, %v5497
      %v5499 = vpop.f32.mrf.mxu0
      %v5500 = vadd.f32 %v5307, %v5499
      %v5501 = vpop.f32.mrf.mxu0
      %v5502 = vadd.f32 %v5309, %v5501
      %v5503 = vpop.f32.mrf.mxu0
      %v5504 = vadd.f32 %v5311, %v5503
      %5505 = vmatprep.mubr.bf16.mxu0 %v3545
      %5506 = vmatmul.mubr.bf16.gmra.mxu0 %v3544
      %v5507 = vpop.f32.mrf.mxu0
      %v5508 = vadd.f32 %v5315, %v5507
      %v5509 = vpop.f32.mrf.mxu0
      %v5510 = vadd.f32 %v5317, %v5509
      %v5511 = vpop.f32.mrf.mxu0
      %v5512 = vadd.f32 %v5319, %v5511
      %v5513 = vpop.f32.mrf.mxu0
      %v5514 = vadd.f32 %v5321, %v5513
      %5515 = vmatprep.mubr.bf16.mxu0 %v3554
      %5516 = vmatmul.mubr.bf16.gmra.mxu0 %v3553
      %v5517 = vpop.f32.mrf.mxu0
      %v5518 = vadd.f32 %v5325, %v5517
      %v5519 = vpop.f32.mrf.mxu0
      %v5520 = vadd.f32 %v5327, %v5519
      %v5521 = vpop.f32.mrf.mxu0
      %v5522 = vadd.f32 %v5329, %v5521
      %v5523 = vpop.f32.mrf.mxu0
      %v5524 = vadd.f32 %v5331, %v5523
      %5525 = vmatprep.mubr.bf16.mxu0 %v3563
      %5526 = vmatmul.mubr.bf16.gmra.mxu0 %v3562
      %v5527 = vpop.f32.mrf.mxu0
      %v5528 = vadd.f32 %v5335, %v5527
      %v5529 = vpop.f32.mrf.mxu0
      %v5530 = vadd.f32 %v5337, %v5529
      %v5531 = vpop.f32.mrf.mxu0
      %v5532 = vadd.f32 %v5339, %v5531
      %v5533 = vpop.f32.mrf.mxu0
      %v5534 = vadd.f32 %v5341, %v5533
      %5535 = vmatprep.mubr.bf16.mxu0 %v3572
      %5536 = vmatmul.mubr.bf16.gmra.mxu0 %v3571
      %v5537 = vpop.f32.mrf.mxu0
      %v5538 = vadd.f32 %v5345, %v5537
      %v5539 = vpop.f32.mrf.mxu0
      %v5540 = vadd.f32 %v5347, %v5539
      %v5541 = vpop.f32.mrf.mxu0
      %v5542 = vadd.f32 %v5349, %v5541
      %v5543 = vpop.f32.mrf.mxu0
      %v5544 = vadd.f32 %v5351, %v5543
      %5545 = vmatprep.mubr.bf16.mxu0 %v3581
      %5546 = vmatmul.mubr.bf16.gmra.mxu0 %v3580
      %v5547 = vpop.f32.mrf.mxu0
      %v5548 = vadd.f32 %v5355, %v5547
      %v5549 = vpop.f32.mrf.mxu0
      %v5550 = vadd.f32 %v5357, %v5549
      %v5551 = vpop.f32.mrf.mxu0
      %v5552 = vadd.f32 %v5359, %v5551
      %v5553 = vpop.f32.mrf.mxu0
      %v5554 = vadd.f32 %v5361, %v5553
      %5555 = vmatprep.mubr.bf16.mxu0 %v3590
      %5556 = vmatmul.mubr.bf16.gmra.mxu0 %v3589
      %v5557 = vpop.f32.mrf.mxu0
      %v5558 = vadd.f32 %v5365, %v5557
      %v5559 = vpop.f32.mrf.mxu0
      %v5560 = vadd.f32 %v5367, %v5559
      %v5561 = vpop.f32.mrf.mxu0
      %v5562 = vadd.f32 %v5369, %v5561
      %v5563 = vpop.f32.mrf.mxu0
      %v5564 = vadd.f32 %v5371, %v5563
      %5565 = vdwg.mxu0
      %5566 = vmatprep.subr.bf16.mxu0 %v4761
      %5567 = vmatpush1.bf16.msra.mxu0 %v4760
      %5568 = vmatprep.subr.bf16.mxu0 %v4757
      %5569 = vmatpush1.bf16.msra.mxu0 %v4756
      %5570 = vmatprep.subr.bf16.mxu0 %v4753
      %5571 = vmatpush1.bf16.msra.mxu0 %v4752
      %5572 = vmatprep.subr.bf16.mxu0 %v4749
      %5573 = vmatpush1.bf16.msra.mxu0 %v4748
      %5574 = vmatprep.subr.bf16.mxu0 %v4745
      %5575 = vmatpush1.bf16.msra.mxu0 %v4744
      %5576 = vmatprep.subr.bf16.mxu0 %v4741
      %5577 = vmatpush1.bf16.msra.mxu0 %v4740
      %5578 = vmatprep.subr.bf16.mxu0 %v4737
      %5579 = vmatpush1.bf16.msra.mxu0 %v4736
      %5580 = vmatprep.subr.bf16.mxu0 %v4733
      %5581 = vmatpush1.bf16.msra.mxu0 %v4732
      %5582 = vmatprep.subr.bf16.mxu0 %v4793
      %5583 = vmatpush2.bf16.msra.mxu0 %v4792
      %5584 = vmatprep.subr.bf16.mxu0 %v4789
      %5585 = vmatpush2.bf16.msra.mxu0 %v4788
      %5586 = vmatprep.subr.bf16.mxu0 %v4785
      %5587 = vmatpush2.bf16.msra.mxu0 %v4784
      %5588 = vmatprep.subr.bf16.mxu0 %v4781
      %5589 = vmatpush2.bf16.msra.mxu0 %v4780
      %5590 = vmatprep.subr.bf16.mxu0 %v4777
      %5591 = vmatpush2.bf16.msra.mxu0 %v4776
      %5592 = vmatprep.subr.bf16.mxu0 %v4773
      %5593 = vmatpush2.bf16.msra.mxu0 %v4772
      %5594 = vmatprep.subr.bf16.mxu0 %v4769
      %5595 = vmatpush2.bf16.msra.mxu0 %v4768
      %5596 = vmatprep.subr.bf16.mxu0 %v4765
      %5597 = vmatpush2.bf16.msra.mxu0 %v4764
      %5598 = vmatprep.mubr.bf16.mxu0 %v3457
      %5599 = vmatmul.mubr.bf16.gmra.mxu0 %v3456
      %v5600 = vpop.f32.mrf.mxu0
      %v5601 = vadd.f32 %v5408, %v5600
      %v5602 = vpop.f32.mrf.mxu0
      %v5603 = vadd.f32 %v5410, %v5602
      %v5604 = vpop.f32.mrf.mxu0
      %v5605 = vadd.f32 %v5412, %v5604
      %v5606 = vpop.f32.mrf.mxu0
      %v5607 = vadd.f32 %v5414, %v5606
      %5608 = vmatprep.mubr.bf16.mxu0 %v3466
      %5609 = vmatmul.mubr.bf16.gmra.mxu0 %v3465
      %v5610 = vpop.f32.mrf.mxu0
      %v5611 = vadd.f32 %v5418, %v5610
      %v5612 = vpop.f32.mrf.mxu0
      %v5613 = vadd.f32 %v5420, %v5612
      %v5614 = vpop.f32.mrf.mxu0
      %v5615 = vadd.f32 %v5422, %v5614
      %v5616 = vpop.f32.mrf.mxu0
      %v5617 = vadd.f32 %v5424, %v5616
      %5618 = vmatprep.mubr.bf16.mxu0 %v3475
      %5619 = vmatmul.mubr.bf16.gmra.mxu0 %v3474
      %v5620 = vpop.f32.mrf.mxu0
      %v5621 = vadd.f32 %v5428, %v5620
      %v5622 = vpop.f32.mrf.mxu0
      %v5623 = vadd.f32 %v5430, %v5622
      %v5624 = vpop.f32.mrf.mxu0
      %v5625 = vadd.f32 %v5432, %v5624
      %v5626 = vpop.f32.mrf.mxu0
      %v5627 = vadd.f32 %v5434, %v5626
      %5628 = vmatprep.mubr.bf16.mxu0 %v3484
      %5629 = vmatmul.mubr.bf16.gmra.mxu0 %v3483
      %v5630 = vpop.f32.mrf.mxu0
      %v5631 = vadd.f32 %v5438, %v5630
      %v5632 = vpop.f32.mrf.mxu0
      %v5633 = vadd.f32 %v5440, %v5632
      %v5634 = vpop.f32.mrf.mxu0
      %v5635 = vadd.f32 %v5442, %v5634
      %v5636 = vpop.f32.mrf.mxu0
      %v5637 = vadd.f32 %v5444, %v5636
      %5638 = vmatprep.mubr.bf16.mxu0 %v3493
      %5639 = vmatmul.mubr.bf16.gmra.mxu0 %v3492
      %v5640 = vpop.f32.mrf.mxu0
      %v5641 = vadd.f32 %v5448, %v5640
      %v5642 = vpop.f32.mrf.mxu0
      %v5643 = vadd.f32 %v5450, %v5642
      %v5644 = vpop.f32.mrf.mxu0
      %v5645 = vadd.f32 %v5452, %v5644
      %v5646 = vpop.f32.mrf.mxu0
      %v5647 = vadd.f32 %v5454, %v5646
      %5648 = vmatprep.mubr.bf16.mxu0 %v3502
      %5649 = vmatmul.mubr.bf16.gmra.mxu0 %v3501
      %v5650 = vpop.f32.mrf.mxu0
      %v5651 = vadd.f32 %v5458, %v5650
      %v5652 = vpop.f32.mrf.mxu0
      %v5653 = vadd.f32 %v5460, %v5652
      %v5654 = vpop.f32.mrf.mxu0
      %v5655 = vadd.f32 %v5462, %v5654
      %v5656 = vpop.f32.mrf.mxu0
      %v5657 = vadd.f32 %v5464, %v5656
      %5658 = vmatprep.mubr.bf16.mxu0 %v3511
      %5659 = vmatmul.mubr.bf16.gmra.mxu0 %v3510
      %v5660 = vpop.f32.mrf.mxu0
      %v5661 = vadd.f32 %v5468, %v5660
      %v5662 = vpop.f32.mrf.mxu0
      %v5663 = vadd.f32 %v5470, %v5662
      %v5664 = vpop.f32.mrf.mxu0
      %v5665 = vadd.f32 %v5472, %v5664
      %v5666 = vpop.f32.mrf.mxu0
      %v5667 = vadd.f32 %v5474, %v5666
      %5668 = vmatprep.mubr.bf16.mxu0 %v3520
      %5669 = vmatmul.mubr.bf16.gmra.mxu0 %v3519
      %v5670 = vpop.f32.mrf.mxu0
      %v5671 = vadd.f32 %v5478, %v5670
      %v5672 = vpop.f32.mrf.mxu0
      %v5673 = vadd.f32 %v5480, %v5672
      %v5674 = vpop.f32.mrf.mxu0
      %v5675 = vadd.f32 %v5482, %v5674
      %v5676 = vpop.f32.mrf.mxu0
      %v5677 = vadd.f32 %v5484, %v5676
      %5678 = vmatprep.mubr.bf16.mxu0 %v3529
      %5679 = vmatmul.mubr.bf16.gmra.mxu0 %v3528
      %v5680 = vpop.f32.mrf.mxu0
      %v5681 = vadd.f32 %v5488, %v5680
      %v5682 = vpop.f32.mrf.mxu0
      %v5683 = vadd.f32 %v5490, %v5682
      %v5684 = vpop.f32.mrf.mxu0
      %v5685 = vadd.f32 %v5492, %v5684
      %v5686 = vpop.f32.mrf.mxu0
      %v5687 = vadd.f32 %v5494, %v5686
      %5688 = vmatprep.mubr.bf16.mxu0 %v3538
      %5689 = vmatmul.mubr.bf16.gmra.mxu0 %v3537
      %v5690 = vpop.f32.mrf.mxu0
      %v5691 = vadd.f32 %v5498, %v5690
      %v5692 = vpop.f32.mrf.mxu0
      %v5693 = vadd.f32 %v5500, %v5692
      %v5694 = vpop.f32.mrf.mxu0
      %v5695 = vadd.f32 %v5502, %v5694
      %v5696 = vpop.f32.mrf.mxu0
      %v5697 = vadd.f32 %v5504, %v5696
      %5698 = vmatprep.mubr.bf16.mxu0 %v3547
      %5699 = vmatmul.mubr.bf16.gmra.mxu0 %v3546
      %v5700 = vpop.f32.mrf.mxu0
      %v5701 = vadd.f32 %v5508, %v5700
      %v5702 = vpop.f32.mrf.mxu0
      %v5703 = vadd.f32 %v5510, %v5702
      %v5704 = vpop.f32.mrf.mxu0
      %v5705 = vadd.f32 %v5512, %v5704
      %v5706 = vpop.f32.mrf.mxu0
      %v5707 = vadd.f32 %v5514, %v5706
      %5708 = vmatprep.mubr.bf16.mxu0 %v3556
      %5709 = vmatmul.mubr.bf16.gmra.mxu0 %v3555
      %v5710 = vpop.f32.mrf.mxu0
      %v5711 = vadd.f32 %v5518, %v5710
      %v5712 = vpop.f32.mrf.mxu0
      %v5713 = vadd.f32 %v5520, %v5712
      %v5714 = vpop.f32.mrf.mxu0
      %v5715 = vadd.f32 %v5522, %v5714
      %v5716 = vpop.f32.mrf.mxu0
      %v5717 = vadd.f32 %v5524, %v5716
      %5718 = vmatprep.mubr.bf16.mxu0 %v3565
      %5719 = vmatmul.mubr.bf16.gmra.mxu0 %v3564
      %v5720 = vpop.f32.mrf.mxu0
      %v5721 = vadd.f32 %v5528, %v5720
      %v5722 = vpop.f32.mrf.mxu0
      %v5723 = vadd.f32 %v5530, %v5722
      %v5724 = vpop.f32.mrf.mxu0
      %v5725 = vadd.f32 %v5532, %v5724
      %v5726 = vpop.f32.mrf.mxu0
      %v5727 = vadd.f32 %v5534, %v5726
      %5728 = vmatprep.mubr.bf16.mxu0 %v3574
      %5729 = vmatmul.mubr.bf16.gmra.mxu0 %v3573
      %v5730 = vpop.f32.mrf.mxu0
      %v5731 = vadd.f32 %v5538, %v5730
      %v5732 = vpop.f32.mrf.mxu0
      %v5733 = vadd.f32 %v5540, %v5732
      %v5734 = vpop.f32.mrf.mxu0
      %v5735 = vadd.f32 %v5542, %v5734
      %v5736 = vpop.f32.mrf.mxu0
      %v5737 = vadd.f32 %v5544, %v5736
      %5738 = vmatprep.mubr.bf16.mxu0 %v3583
      %5739 = vmatmul.mubr.bf16.gmra.mxu0 %v3582
      %v5740 = vpop.f32.mrf.mxu0
      %v5741 = vadd.f32 %v5548, %v5740
      %v5742 = vpop.f32.mrf.mxu0
      %v5743 = vadd.f32 %v5550, %v5742
      %v5744 = vpop.f32.mrf.mxu0
      %v5745 = vadd.f32 %v5552, %v5744
      %v5746 = vpop.f32.mrf.mxu0
      %v5747 = vadd.f32 %v5554, %v5746
      %5748 = vmatprep.mubr.bf16.mxu0 %v3592
      %5749 = vmatmul.mubr.bf16.gmra.mxu0 %v3591
      %v5750 = vpop.f32.mrf.mxu0
      %v5751 = vadd.f32 %v5558, %v5750
      %v5752 = vpop.f32.mrf.mxu0
      %v5753 = vadd.f32 %v5560, %v5752
      %v5754 = vpop.f32.mrf.mxu0
      %v5755 = vadd.f32 %v5562, %v5754
      %v5756 = vpop.f32.mrf.mxu0
      %v5757 = vadd.f32 %v5564, %v5756
      %5758 = vdwg.mxu0
      %5759 = vmatprep.subr.bf16.mxu0 %v4825
      %5760 = vmatpush1.bf16.msra.mxu0 %v4824
      %5761 = vmatprep.subr.bf16.mxu0 %v4821
      %5762 = vmatpush1.bf16.msra.mxu0 %v4820
      %5763 = vmatprep.subr.bf16.mxu0 %v4817
      %5764 = vmatpush1.bf16.msra.mxu0 %v4816
      %5765 = vmatprep.subr.bf16.mxu0 %v4813
      %5766 = vmatpush1.bf16.msra.mxu0 %v4812
      %5767 = vmatprep.subr.bf16.mxu0 %v4809
      %5768 = vmatpush1.bf16.msra.mxu0 %v4808
      %5769 = vmatprep.subr.bf16.mxu0 %v4805
      %5770 = vmatpush1.bf16.msra.mxu0 %v4804
      %5771 = vmatprep.subr.bf16.mxu0 %v4801
      %5772 = vmatpush1.bf16.msra.mxu0 %v4800
      %5773 = vmatprep.subr.bf16.mxu0 %v4797
      %5774 = vmatpush1.bf16.msra.mxu0 %v4796
      %5775 = vmatprep.subr.bf16.mxu0 %v4857
      %5776 = vmatpush2.bf16.msra.mxu0 %v4856
      %5777 = vmatprep.subr.bf16.mxu0 %v4853
      %5778 = vmatpush2.bf16.msra.mxu0 %v4852
      %5779 = vmatprep.subr.bf16.mxu0 %v4849
      %5780 = vmatpush2.bf16.msra.mxu0 %v4848
      %5781 = vmatprep.subr.bf16.mxu0 %v4845
      %5782 = vmatpush2.bf16.msra.mxu0 %v4844
      %5783 = vmatprep.subr.bf16.mxu0 %v4841
      %5784 = vmatpush2.bf16.msra.mxu0 %v4840
      %5785 = vmatprep.subr.bf16.mxu0 %v4837
      %5786 = vmatpush2.bf16.msra.mxu0 %v4836
      %5787 = vmatprep.subr.bf16.mxu0 %v4833
      %5788 = vmatpush2.bf16.msra.mxu0 %v4832
      %5789 = vmatprep.subr.bf16.mxu0 %v4829
      %5790 = vmatpush2.bf16.msra.mxu0 %v4828
      %5791 = vmatprep.mubr.bf16.mxu0 %v3459
      %5792 = vmatmul.mubr.bf16.gmra.mxu0 %v3458
      %v5793 = vpop.f32.mrf.mxu0
      %v5794 = vadd.f32 %v5601, %v5793
      %v5795 = vpop.f32.mrf.mxu0
      %v5796 = vadd.f32 %v5603, %v5795
      %v5797 = vpop.f32.mrf.mxu0
      %v5798 = vadd.f32 %v5605, %v5797
      %v5799 = vpop.f32.mrf.mxu0
      %v5800 = vadd.f32 %v5607, %v5799
      %5801 = vmatprep.mubr.bf16.mxu0 %v3468
      %5802 = vmatmul.mubr.bf16.gmra.mxu0 %v3467
      %v5803 = vpop.f32.mrf.mxu0
      %v5804 = vadd.f32 %v5611, %v5803
      %v5805 = vpop.f32.mrf.mxu0
      %v5806 = vadd.f32 %v5613, %v5805
      %v5807 = vpop.f32.mrf.mxu0
      %v5808 = vadd.f32 %v5615, %v5807
      %v5809 = vpop.f32.mrf.mxu0
      %v5810 = vadd.f32 %v5617, %v5809
      %5811 = vmatprep.mubr.bf16.mxu0 %v3477
      %5812 = vmatmul.mubr.bf16.gmra.mxu0 %v3476
      %v5813 = vpop.f32.mrf.mxu0
      %v5814 = vadd.f32 %v5621, %v5813
      %v5815 = vpop.f32.mrf.mxu0
      %v5816 = vadd.f32 %v5623, %v5815
      %v5817 = vpop.f32.mrf.mxu0
      %v5818 = vadd.f32 %v5625, %v5817
      %v5819 = vpop.f32.mrf.mxu0
      %v5820 = vadd.f32 %v5627, %v5819
      %5821 = vmatprep.mubr.bf16.mxu0 %v3486
      %5822 = vmatmul.mubr.bf16.gmra.mxu0 %v3485
      %v5823 = vpop.f32.mrf.mxu0
      %v5824 = vadd.f32 %v5631, %v5823
      %v5825 = vpop.f32.mrf.mxu0
      %v5826 = vadd.f32 %v5633, %v5825
      %v5827 = vpop.f32.mrf.mxu0
      %v5828 = vadd.f32 %v5635, %v5827
      %v5829 = vpop.f32.mrf.mxu0
      %v5830 = vadd.f32 %v5637, %v5829
      %5831 = vmatprep.mubr.bf16.mxu0 %v3495
      %5832 = vmatmul.mubr.bf16.gmra.mxu0 %v3494
      %v5833 = vpop.f32.mrf.mxu0
      %v5834 = vadd.f32 %v5641, %v5833
      %v5835 = vpop.f32.mrf.mxu0
      %v5836 = vadd.f32 %v5643, %v5835
      %v5837 = vpop.f32.mrf.mxu0
      %v5838 = vadd.f32 %v5645, %v5837
      %v5839 = vpop.f32.mrf.mxu0
      %v5840 = vadd.f32 %v5647, %v5839
      %5841 = vmatprep.mubr.bf16.mxu0 %v3504
      %5842 = vmatmul.mubr.bf16.gmra.mxu0 %v3503
      %v5843 = vpop.f32.mrf.mxu0
      %v5844 = vadd.f32 %v5651, %v5843
      %v5845 = vpop.f32.mrf.mxu0
      %v5846 = vadd.f32 %v5653, %v5845
      %v5847 = vpop.f32.mrf.mxu0
      %v5848 = vadd.f32 %v5655, %v5847
      %v5849 = vpop.f32.mrf.mxu0
      %v5850 = vadd.f32 %v5657, %v5849
      %5851 = vmatprep.mubr.bf16.mxu0 %v3513
      %5852 = vmatmul.mubr.bf16.gmra.mxu0 %v3512
      %v5853 = vpop.f32.mrf.mxu0
      %v5854 = vadd.f32 %v5661, %v5853
      %v5855 = vpop.f32.mrf.mxu0
      %v5856 = vadd.f32 %v5663, %v5855
      %v5857 = vpop.f32.mrf.mxu0
      %v5858 = vadd.f32 %v5665, %v5857
      %v5859 = vpop.f32.mrf.mxu0
      %v5860 = vadd.f32 %v5667, %v5859
      %5861 = vmatprep.mubr.bf16.mxu0 %v3522
      %5862 = vmatmul.mubr.bf16.gmra.mxu0 %v3521
      %v5863 = vpop.f32.mrf.mxu0
      %v5864 = vadd.f32 %v5671, %v5863
      %v5865 = vpop.f32.mrf.mxu0
      %v5866 = vadd.f32 %v5673, %v5865
      %v5867 = vpop.f32.mrf.mxu0
      %v5868 = vadd.f32 %v5675, %v5867
      %v5869 = vpop.f32.mrf.mxu0
      %v5870 = vadd.f32 %v5677, %v5869
      %5871 = vmatprep.mubr.bf16.mxu0 %v3531
      %5872 = vmatmul.mubr.bf16.gmra.mxu0 %v3530
      %v5873 = vpop.f32.mrf.mxu0
      %v5874 = vadd.f32 %v5681, %v5873
      %v5875 = vpop.f32.mrf.mxu0
      %v5876 = vadd.f32 %v5683, %v5875
      %v5877 = vpop.f32.mrf.mxu0
      %v5878 = vadd.f32 %v5685, %v5877
      %v5879 = vpop.f32.mrf.mxu0
      %v5880 = vadd.f32 %v5687, %v5879
      %5881 = vmatprep.mubr.bf16.mxu0 %v3540
      %5882 = vmatmul.mubr.bf16.gmra.mxu0 %v3539
      %v5883 = vpop.f32.mrf.mxu0
      %v5884 = vadd.f32 %v5691, %v5883
      %v5885 = vpop.f32.mrf.mxu0
      %v5886 = vadd.f32 %v5693, %v5885
      %v5887 = vpop.f32.mrf.mxu0
      %v5888 = vadd.f32 %v5695, %v5887
      %v5889 = vpop.f32.mrf.mxu0
      %v5890 = vadd.f32 %v5697, %v5889
      %5891 = vmatprep.mubr.bf16.mxu0 %v3549
      %5892 = vmatmul.mubr.bf16.gmra.mxu0 %v3548
      %v5893 = vpop.f32.mrf.mxu0
      %v5894 = vadd.f32 %v5701, %v5893
      %v5895 = vpop.f32.mrf.mxu0
      %v5896 = vadd.f32 %v5703, %v5895
      %v5897 = vpop.f32.mrf.mxu0
      %v5898 = vadd.f32 %v5705, %v5897
      %v5899 = vpop.f32.mrf.mxu0
      %v5900 = vadd.f32 %v5707, %v5899
      %5901 = vmatprep.mubr.bf16.mxu0 %v3558
      %5902 = vmatmul.mubr.bf16.gmra.mxu0 %v3557
      %v5903 = vpop.f32.mrf.mxu0
      %v5904 = vadd.f32 %v5711, %v5903
      %v5905 = vpop.f32.mrf.mxu0
      %v5906 = vadd.f32 %v5713, %v5905
      %v5907 = vpop.f32.mrf.mxu0
      %v5908 = vadd.f32 %v5715, %v5907
      %v5909 = vpop.f32.mrf.mxu0
      %v5910 = vadd.f32 %v5717, %v5909
      %5911 = vmatprep.mubr.bf16.mxu0 %v3567
      %5912 = vmatmul.mubr.bf16.gmra.mxu0 %v3566
      %v5913 = vpop.f32.mrf.mxu0
      %v5914 = vadd.f32 %v5721, %v5913
      %v5915 = vpop.f32.mrf.mxu0
      %v5916 = vadd.f32 %v5723, %v5915
      %v5917 = vpop.f32.mrf.mxu0
      %v5918 = vadd.f32 %v5725, %v5917
      %v5919 = vpop.f32.mrf.mxu0
      %v5920 = vadd.f32 %v5727, %v5919
      %5921 = vmatprep.mubr.bf16.mxu0 %v3576
      %5922 = vmatmul.mubr.bf16.gmra.mxu0 %v3575
      %v5923 = vpop.f32.mrf.mxu0
      %v5924 = vadd.f32 %v5731, %v5923
      %v5925 = vpop.f32.mrf.mxu0
      %v5926 = vadd.f32 %v5733, %v5925
      %v5927 = vpop.f32.mrf.mxu0
      %v5928 = vadd.f32 %v5735, %v5927
      %v5929 = vpop.f32.mrf.mxu0
      %v5930 = vadd.f32 %v5737, %v5929
      %5931 = vmatprep.mubr.bf16.mxu0 %v3585
      %5932 = vmatmul.mubr.bf16.gmra.mxu0 %v3584
      %v5933 = vpop.f32.mrf.mxu0
      %v5934 = vadd.f32 %v5741, %v5933
      %v5935 = vpop.f32.mrf.mxu0
      %v5936 = vadd.f32 %v5743, %v5935
      %v5937 = vpop.f32.mrf.mxu0
      %v5938 = vadd.f32 %v5745, %v5937
      %v5939 = vpop.f32.mrf.mxu0
      %v5940 = vadd.f32 %v5747, %v5939
      %5941 = vmatprep.mubr.bf16.mxu0 %v3594
      %5942 = vmatmul.mubr.bf16.gmra.mxu0 %v3593
      %v5943 = vpop.f32.mrf.mxu0
      %v5944 = vadd.f32 %v5751, %v5943
      %v5945 = vpop.f32.mrf.mxu0
      %v5946 = vadd.f32 %v5753, %v5945
      %v5947 = vpop.f32.mrf.mxu0
      %v5948 = vadd.f32 %v5755, %v5947
      %v5949 = vpop.f32.mrf.mxu0
      %v5950 = vadd.f32 %v5757, %v5949
      %5951 = vdwg.mxu0
      %5952 = vmatprep.subr.bf16.mxu0 %v4889
      %5953 = vmatpush1.bf16.msra.mxu0 %v4888
      %5954 = vmatprep.subr.bf16.mxu0 %v4885
      %5955 = vmatpush1.bf16.msra.mxu0 %v4884
      %5956 = vmatprep.subr.bf16.mxu0 %v4881
      %5957 = vmatpush1.bf16.msra.mxu0 %v4880
      %5958 = vmatprep.subr.bf16.mxu0 %v4877
      %5959 = vmatpush1.bf16.msra.mxu0 %v4876
      %5960 = vmatprep.subr.bf16.mxu0 %v4873
      %5961 = vmatpush1.bf16.msra.mxu0 %v4872
      %5962 = vmatprep.subr.bf16.mxu0 %v4869
      %5963 = vmatpush1.bf16.msra.mxu0 %v4868
      %5964 = vmatprep.subr.bf16.mxu0 %v4865
      %5965 = vmatpush1.bf16.msra.mxu0 %v4864
      %5966 = vmatprep.subr.bf16.mxu0 %v4861
      %5967 = vmatpush1.bf16.msra.mxu0 %v4860
      %5968 = vmatprep.subr.bf16.mxu0 0
      %5969 = vmatpush2.bf16.msra.mxu0 0
      %5970 = vmatprep.subr.bf16.mxu0 0
      %5971 = vmatpush2.bf16.msra.mxu0 0
      %5972 = vmatprep.subr.bf16.mxu0 0
      %5973 = vmatpush2.bf16.msra.mxu0 0
      %5974 = vmatprep.subr.bf16.mxu0 0
      %5975 = vmatpush2.bf16.msra.mxu0 0
      %5976 = vmatprep.subr.bf16.mxu0 0
      %5977 = vmatpush2.bf16.msra.mxu0 0
      %5978 = vmatprep.subr.bf16.mxu0 0
      %5979 = vmatpush2.bf16.msra.mxu0 0
      %5980 = vmatprep.subr.bf16.mxu0 0
      %5981 = vmatpush2.bf16.msra.mxu0 0
      %5982 = vmatprep.subr.bf16.mxu0 0
      %5983 = vmatpush2.bf16.msra.mxu0 0
      %5984 = vmatprep.mubr.bf16.mxu0 0
      %5985 = vmatmul.mubr.bf16.gmra.mxu0 %v3460
      %v5986 = vpop.f32.mrf.mxu0
      %v5987 = vadd.f32 %v5794, %v5986
      %v5988 = vpop.f32.mrf.mxu0
      %v5989 = vadd.f32 %v5796, %v5988
      %v5990 = vpop.f32.mrf.mxu0
      %v5991 = vadd.f32 %v5798, %v5990
      %v5992 = vpop.f32.mrf.mxu0
      %v5993 = vadd.f32 %v5800, %v5992
      %5994 = vmatprep.mubr.bf16.mxu0 0
      %5995 = vmatmul.mubr.bf16.gmra.mxu0 %v3469
      %v5996 = vpop.f32.mrf.mxu0
      %v5997 = vadd.f32 %v5804, %v5996
      %v5998 = vpop.f32.mrf.mxu0
      %v5999 = vadd.f32 %v5806, %v5998
      %v6000 = vpop.f32.mrf.mxu0
      %v6001 = vadd.f32 %v5808, %v6000
      %v6002 = vpop.f32.mrf.mxu0
      %v6003 = vadd.f32 %v5810, %v6002
      %6004 = vmatprep.mubr.bf16.mxu0 0
      %6005 = vmatmul.mubr.bf16.gmra.mxu0 %v3478
      %v6006 = vpop.f32.mrf.mxu0
      %v6007 = vadd.f32 %v5814, %v6006
      %v6008 = vpop.f32.mrf.mxu0
      %v6009 = vadd.f32 %v5816, %v6008
      %v6010 = vpop.f32.mrf.mxu0
      %v6011 = vadd.f32 %v5818, %v6010
      %v6012 = vpop.f32.mrf.mxu0
      %v6013 = vadd.f32 %v5820, %v6012
      %6014 = vmatprep.mubr.bf16.mxu0 0
      %6015 = vmatmul.mubr.bf16.gmra.mxu0 %v3487
      %v6016 = vpop.f32.mrf.mxu0
      %v6017 = vadd.f32 %v5824, %v6016
      %v6018 = vpop.f32.mrf.mxu0
      %v6019 = vadd.f32 %v5826, %v6018
      %v6020 = vpop.f32.mrf.mxu0
      %v6021 = vadd.f32 %v5828, %v6020
      %v6022 = vpop.f32.mrf.mxu0
      %v6023 = vadd.f32 %v5830, %v6022
      %6024 = vmatprep.mubr.bf16.mxu0 0
      %6025 = vmatmul.mubr.bf16.gmra.mxu0 %v3496
      %v6026 = vpop.f32.mrf.mxu0
      %v6027 = vadd.f32 %v5834, %v6026
      %v6028 = vpop.f32.mrf.mxu0
      %v6029 = vadd.f32 %v5836, %v6028
      %v6030 = vpop.f32.mrf.mxu0
      %v6031 = vadd.f32 %v5838, %v6030
      %v6032 = vpop.f32.mrf.mxu0
      %v6033 = vadd.f32 %v5840, %v6032
      %6034 = vmatprep.mubr.bf16.mxu0 0
      %6035 = vmatmul.mubr.bf16.gmra.mxu0 %v3505
      %v6036 = vpop.f32.mrf.mxu0
      %v6037 = vadd.f32 %v5844, %v6036
      %v6038 = vpop.f32.mrf.mxu0
      %v6039 = vadd.f32 %v5846, %v6038
      %v6040 = vpop.f32.mrf.mxu0
      %v6041 = vadd.f32 %v5848, %v6040
      %v6042 = vpop.f32.mrf.mxu0
      %v6043 = vadd.f32 %v5850, %v6042
      %6044 = vmatprep.mubr.bf16.mxu0 0
      %6045 = vmatmul.mubr.bf16.gmra.mxu0 %v3514
      %v6046 = vpop.f32.mrf.mxu0
      %v6047 = vadd.f32 %v5854, %v6046
      %v6048 = vpop.f32.mrf.mxu0
      %v6049 = vadd.f32 %v5856, %v6048
      %v6050 = vpop.f32.mrf.mxu0
      %v6051 = vadd.f32 %v5858, %v6050
      %v6052 = vpop.f32.mrf.mxu0
      %v6053 = vadd.f32 %v5860, %v6052
      %6054 = vmatprep.mubr.bf16.mxu0 0
      %6055 = vmatmul.mubr.bf16.gmra.mxu0 %v3523
      %v6056 = vpop.f32.mrf.mxu0
      %v6057 = vadd.f32 %v5864, %v6056
      %v6058 = vpop.f32.mrf.mxu0
      %v6059 = vadd.f32 %v5866, %v6058
      %v6060 = vpop.f32.mrf.mxu0
      %v6061 = vadd.f32 %v5868, %v6060
      %v6062 = vpop.f32.mrf.mxu0
      %v6063 = vadd.f32 %v5870, %v6062
      %6064 = vmatprep.mubr.bf16.mxu0 0
      %6065 = vmatmul.mubr.bf16.gmra.mxu0 %v3532
      %v6066 = vpop.f32.mrf.mxu0
      %v6067 = vadd.f32 %v5874, %v6066
      %v6068 = vpop.f32.mrf.mxu0
      %v6069 = vadd.f32 %v5876, %v6068
      %v6070 = vpop.f32.mrf.mxu0
      %v6071 = vadd.f32 %v5878, %v6070
      %v6072 = vpop.f32.mrf.mxu0
      %v6073 = vadd.f32 %v5880, %v6072
      %6074 = vmatprep.mubr.bf16.mxu0 0
      %6075 = vmatmul.mubr.bf16.gmra.mxu0 %v3541
      %v6076 = vpop.f32.mrf.mxu0
      %v6077 = vadd.f32 %v5884, %v6076
      %v6078 = vpop.f32.mrf.mxu0
      %v6079 = vadd.f32 %v5886, %v6078
      %v6080 = vpop.f32.mrf.mxu0
      %v6081 = vadd.f32 %v5888, %v6080
      %v6082 = vpop.f32.mrf.mxu0
      %v6083 = vadd.f32 %v5890, %v6082
      %6084 = vmatprep.mubr.bf16.mxu0 0
      %6085 = vmatmul.mubr.bf16.gmra.mxu0 %v3550
      %v6086 = vpop.f32.mrf.mxu0
      %v6087 = vadd.f32 %v5894, %v6086
      %v6088 = vpop.f32.mrf.mxu0
      %v6089 = vadd.f32 %v5896, %v6088
      %v6090 = vpop.f32.mrf.mxu0
      %v6091 = vadd.f32 %v5898, %v6090
      %v6092 = vpop.f32.mrf.mxu0
      %v6093 = vadd.f32 %v5900, %v6092
      %6094 = vmatprep.mubr.bf16.mxu0 0
      %6095 = vmatmul.mubr.bf16.gmra.mxu0 %v3559
      %v6096 = vpop.f32.mrf.mxu0
      %v6097 = vadd.f32 %v5904, %v6096
      %v6098 = vpop.f32.mrf.mxu0
      %v6099 = vadd.f32 %v5906, %v6098
      %v6100 = vpop.f32.mrf.mxu0
      %v6101 = vadd.f32 %v5908, %v6100
      %v6102 = vpop.f32.mrf.mxu0
      %v6103 = vadd.f32 %v5910, %v6102
      %6104 = vmatprep.mubr.bf16.mxu0 0
      %6105 = vmatmul.mubr.bf16.gmra.mxu0 %v3568
      %v6106 = vpop.f32.mrf.mxu0
      %v6107 = vadd.f32 %v5914, %v6106
      %v6108 = vpop.f32.mrf.mxu0
      %v6109 = vadd.f32 %v5916, %v6108
      %v6110 = vpop.f32.mrf.mxu0
      %v6111 = vadd.f32 %v5918, %v6110
      %v6112 = vpop.f32.mrf.mxu0
      %v6113 = vadd.f32 %v5920, %v6112
      %6114 = vmatprep.mubr.bf16.mxu0 0
      %6115 = vmatmul.mubr.bf16.gmra.mxu0 %v3577
      %v6116 = vpop.f32.mrf.mxu0
      %v6117 = vadd.f32 %v5924, %v6116
      %v6118 = vpop.f32.mrf.mxu0
      %v6119 = vadd.f32 %v5926, %v6118
      %v6120 = vpop.f32.mrf.mxu0
      %v6121 = vadd.f32 %v5928, %v6120
      %v6122 = vpop.f32.mrf.mxu0
      %v6123 = vadd.f32 %v5930, %v6122
      %6124 = vmatprep.mubr.bf16.mxu0 0
      %6125 = vmatmul.mubr.bf16.gmra.mxu0 %v3586
      %v6126 = vpop.f32.mrf.mxu0
      %v6127 = vadd.f32 %v5934, %v6126
      %v6128 = vpop.f32.mrf.mxu0
      %v6129 = vadd.f32 %v5936, %v6128
      %v6130 = vpop.f32.mrf.mxu0
      %v6131 = vadd.f32 %v5938, %v6130
      %v6132 = vpop.f32.mrf.mxu0
      %v6133 = vadd.f32 %v5940, %v6132
      %6134 = vmatprep.mubr.bf16.mxu0 0
      %6135 = vmatmul.mubr.bf16.gmra.mxu0 %v3595
      %v6136 = vpop.f32.mrf.mxu0
      %v6137 = vadd.f32 %v5944, %v6136
      %v6138 = vpop.f32.mrf.mxu0
      %v6139 = vadd.f32 %v5946, %v6138
      %v6140 = vpop.f32.mrf.mxu0
      %v6141 = vadd.f32 %v5948, %v6140
      %v6142 = vpop.f32.mrf.mxu0
      %v6143 = vadd.f32 %v5950, %v6142
      %6144 = vdwg.mxu0
      %6145 = vmatprep.subr.bf16.mxu0 %v4635
      %6146 = vmatpush1.bf16.msra.mxu0 %v4634
      %6147 = vmatprep.subr.bf16.mxu0 %v4631
      %6148 = vmatpush1.bf16.msra.mxu0 %v4630
      %6149 = vmatprep.subr.bf16.mxu0 %v4627
      %6150 = vmatpush1.bf16.msra.mxu0 %v4626
      %6151 = vmatprep.subr.bf16.mxu0 %v4623
      %6152 = vmatpush1.bf16.msra.mxu0 %v4622
      %6153 = vmatprep.subr.bf16.mxu0 %v4619
      %6154 = vmatpush1.bf16.msra.mxu0 %v4618
      %6155 = vmatprep.subr.bf16.mxu0 %v4615
      %6156 = vmatpush1.bf16.msra.mxu0 %v4614
      %6157 = vmatprep.subr.bf16.mxu0 %v4611
      %6158 = vmatpush1.bf16.msra.mxu0 %v4610
      %6159 = vmatprep.subr.bf16.mxu0 %v4607
      %6160 = vmatpush1.bf16.msra.mxu0 %v4606
      %6161 = vmatprep.subr.bf16.mxu0 %v4667
      %6162 = vmatpush2.bf16.msra.mxu0 %v4666
      %6163 = vmatprep.subr.bf16.mxu0 %v4663
      %6164 = vmatpush2.bf16.msra.mxu0 %v4662
      %6165 = vmatprep.subr.bf16.mxu0 %v4659
      %6166 = vmatpush2.bf16.msra.mxu0 %v4658
      %6167 = vmatprep.subr.bf16.mxu0 %v4655
      %6168 = vmatpush2.bf16.msra.mxu0 %v4654
      %6169 = vmatprep.subr.bf16.mxu0 %v4651
      %6170 = vmatpush2.bf16.msra.mxu0 %v4650
      %6171 = vmatprep.subr.bf16.mxu0 %v4647
      %6172 = vmatpush2.bf16.msra.mxu0 %v4646
      %6173 = vmatprep.subr.bf16.mxu0 %v4643
      %6174 = vmatpush2.bf16.msra.mxu0 %v4642
      %6175 = vmatprep.subr.bf16.mxu0 %v4639
      %6176 = vmatpush2.bf16.msra.mxu0 %v4638
      %6177 = vmatprep.mubr.bf16.mxu0 %v3453
      %6178 = vmatmul.mubr.bf16.gmra.mxu0 %v3452
      %v6179 = vpop.f32.mrf.mxu0
      %v6180 = vadd.f32 %v2995, %v6179
      %v6181 = vpop.f32.mrf.mxu0
      %v6182 = vadd.f32 %v2999, %v6181
      %v6183 = vpop.f32.mrf.mxu0
      %v6184 = vadd.f32 %v2995, %v6183
      %v6185 = vpop.f32.mrf.mxu0
      %v6186 = vadd.f32 %v2999, %v6185
      %6187 = vmatprep.mubr.bf16.mxu0 %v3462
      %6188 = vmatmul.mubr.bf16.gmra.mxu0 %v3461
      %v6189 = vpop.f32.mrf.mxu0
      %v6190 = vadd.f32 %v2995, %v6189
      %v6191 = vpop.f32.mrf.mxu0
      %v6192 = vadd.f32 %v2999, %v6191
      %v6193 = vpop.f32.mrf.mxu0
      %v6194 = vadd.f32 %v2995, %v6193
      %v6195 = vpop.f32.mrf.mxu0
      %v6196 = vadd.f32 %v2999, %v6195
      %6197 = vmatprep.mubr.bf16.mxu0 %v3471
      %6198 = vmatmul.mubr.bf16.gmra.mxu0 %v3470
      %v6199 = vpop.f32.mrf.mxu0
      %v6200 = vadd.f32 %v2995, %v6199
      %v6201 = vpop.f32.mrf.mxu0
      %v6202 = vadd.f32 %v2999, %v6201
      %v6203 = vpop.f32.mrf.mxu0
      %v6204 = vadd.f32 %v2995, %v6203
      %v6205 = vpop.f32.mrf.mxu0
      %v6206 = vadd.f32 %v2999, %v6205
      %6207 = vmatprep.mubr.bf16.mxu0 %v3480
      %6208 = vmatmul.mubr.bf16.gmra.mxu0 %v3479
      %v6209 = vpop.f32.mrf.mxu0
      %v6210 = vadd.f32 %v2995, %v6209
      %v6211 = vpop.f32.mrf.mxu0
      %v6212 = vadd.f32 %v2999, %v6211
      %v6213 = vpop.f32.mrf.mxu0
      %v6214 = vadd.f32 %v2995, %v6213
      %v6215 = vpop.f32.mrf.mxu0
      %v6216 = vadd.f32 %v2999, %v6215
      %6217 = vmatprep.mubr.bf16.mxu0 %v3489
      %6218 = vmatmul.mubr.bf16.gmra.mxu0 %v3488
      %v6219 = vpop.f32.mrf.mxu0
      %v6220 = vadd.f32 %v2995, %v6219
      %v6221 = vpop.f32.mrf.mxu0
      %v6222 = vadd.f32 %v2999, %v6221
      %v6223 = vpop.f32.mrf.mxu0
      %v6224 = vadd.f32 %v2995, %v6223
      %v6225 = vpop.f32.mrf.mxu0
      %v6226 = vadd.f32 %v2999, %v6225
      %6227 = vmatprep.mubr.bf16.mxu0 %v3498
      %6228 = vmatmul.mubr.bf16.gmra.mxu0 %v3497
      %v6229 = vpop.f32.mrf.mxu0
      %v6230 = vadd.f32 %v2995, %v6229
      %v6231 = vpop.f32.mrf.mxu0
      %v6232 = vadd.f32 %v2999, %v6231
      %v6233 = vpop.f32.mrf.mxu0
      %v6234 = vadd.f32 %v2995, %v6233
      %v6235 = vpop.f32.mrf.mxu0
      %v6236 = vadd.f32 %v2999, %v6235
      %6237 = vmatprep.mubr.bf16.mxu0 %v3507
      %6238 = vmatmul.mubr.bf16.gmra.mxu0 %v3506
      %v6239 = vpop.f32.mrf.mxu0
      %v6240 = vadd.f32 %v2995, %v6239
      %v6241 = vpop.f32.mrf.mxu0
      %v6242 = vadd.f32 %v2999, %v6241
      %v6243 = vpop.f32.mrf.mxu0
      %v6244 = vadd.f32 %v2995, %v6243
      %v6245 = vpop.f32.mrf.mxu0
      %v6246 = vadd.f32 %v2999, %v6245
      %6247 = vmatprep.mubr.bf16.mxu0 %v3516
      %6248 = vmatmul.mubr.bf16.gmra.mxu0 %v3515
      %v6249 = vpop.f32.mrf.mxu0
      %v6250 = vadd.f32 %v2995, %v6249
      %v6251 = vpop.f32.mrf.mxu0
      %v6252 = vadd.f32 %v2999, %v6251
      %v6253 = vpop.f32.mrf.mxu0
      %v6254 = vadd.f32 %v2995, %v6253
      %v6255 = vpop.f32.mrf.mxu0
      %v6256 = vadd.f32 %v2999, %v6255
      %6257 = vmatprep.mubr.bf16.mxu0 %v3525
      %6258 = vmatmul.mubr.bf16.gmra.mxu0 %v3524
      %v6259 = vpop.f32.mrf.mxu0
      %v6260 = vadd.f32 %v2995, %v6259
      %v6261 = vpop.f32.mrf.mxu0
      %v6262 = vadd.f32 %v2999, %v6261
      %v6263 = vpop.f32.mrf.mxu0
      %v6264 = vadd.f32 %v2995, %v6263
      %v6265 = vpop.f32.mrf.mxu0
      %v6266 = vadd.f32 %v2999, %v6265
      %6267 = vmatprep.mubr.bf16.mxu0 %v3534
      %6268 = vmatmul.mubr.bf16.gmra.mxu0 %v3533
      %v6269 = vpop.f32.mrf.mxu0
      %v6270 = vadd.f32 %v2995, %v6269
      %v6271 = vpop.f32.mrf.mxu0
      %v6272 = vadd.f32 %v2999, %v6271
      %v6273 = vpop.f32.mrf.mxu0
      %v6274 = vadd.f32 %v2995, %v6273
      %v6275 = vpop.f32.mrf.mxu0
      %v6276 = vadd.f32 %v2999, %v6275
      %6277 = vmatprep.mubr.bf16.mxu0 %v3543
      %6278 = vmatmul.mubr.bf16.gmra.mxu0 %v3542
      %v6279 = vpop.f32.mrf.mxu0
      %v6280 = vadd.f32 %v2995, %v6279
      %v6281 = vpop.f32.mrf.mxu0
      %v6282 = vadd.f32 %v2999, %v6281
      %v6283 = vpop.f32.mrf.mxu0
      %v6284 = vadd.f32 %v2995, %v6283
      %v6285 = vpop.f32.mrf.mxu0
      %v6286 = vadd.f32 %v2999, %v6285
      %6287 = vmatprep.mubr.bf16.mxu0 %v3552
      %6288 = vmatmul.mubr.bf16.gmra.mxu0 %v3551
      %v6289 = vpop.f32.mrf.mxu0
      %v6290 = vadd.f32 %v2995, %v6289
      %v6291 = vpop.f32.mrf.mxu0
      %v6292 = vadd.f32 %v2999, %v6291
      %v6293 = vpop.f32.mrf.mxu0
      %v6294 = vadd.f32 %v2995, %v6293
      %v6295 = vpop.f32.mrf.mxu0
      %v6296 = vadd.f32 %v2999, %v6295
      %6297 = vmatprep.mubr.bf16.mxu0 %v3561
      %6298 = vmatmul.mubr.bf16.gmra.mxu0 %v3560
      %v6299 = vpop.f32.mrf.mxu0
      %v6300 = vadd.f32 %v2995, %v6299
      %v6301 = vpop.f32.mrf.mxu0
      %v6302 = vadd.f32 %v2999, %v6301
      %v6303 = vpop.f32.mrf.mxu0
      %v6304 = vadd.f32 %v2995, %v6303
      %v6305 = vpop.f32.mrf.mxu0
      %v6306 = vadd.f32 %v2999, %v6305
      %6307 = vmatprep.mubr.bf16.mxu0 %v3570
      %6308 = vmatmul.mubr.bf16.gmra.mxu0 %v3569
      %v6309 = vpop.f32.mrf.mxu0
      %v6310 = vadd.f32 %v2995, %v6309
      %v6311 = vpop.f32.mrf.mxu0
      %v6312 = vadd.f32 %v2999, %v6311
      %v6313 = vpop.f32.mrf.mxu0
      %v6314 = vadd.f32 %v2995, %v6313
      %v6315 = vpop.f32.mrf.mxu0
      %v6316 = vadd.f32 %v2999, %v6315
      %6317 = vmatprep.mubr.bf16.mxu0 %v3579
      %6318 = vmatmul.mubr.bf16.gmra.mxu0 %v3578
      %v6319 = vpop.f32.mrf.mxu0
      %v6320 = vadd.f32 %v2995, %v6319
      %v6321 = vpop.f32.mrf.mxu0
      %v6322 = vadd.f32 %v2999, %v6321
      %v6323 = vpop.f32.mrf.mxu0
      %v6324 = vadd.f32 %v2995, %v6323
      %v6325 = vpop.f32.mrf.mxu0
      %v6326 = vadd.f32 %v2999, %v6325
      %6327 = vmatprep.mubr.bf16.mxu0 %v3588
      %6328 = vmatmul.mubr.bf16.gmra.mxu0 %v3587
      %v6329 = vpop.f32.mrf.mxu0
      %v6330 = vadd.f32 %v2995, %v6329
      %v6331 = vpop.f32.mrf.mxu0
      %v6332 = vadd.f32 %v2999, %v6331
      %v6333 = vpop.f32.mrf.mxu0
      %v6334 = vadd.f32 %v2995, %v6333
      %v6335 = vpop.f32.mrf.mxu0
      %v6336 = vadd.f32 %v2999, %v6335
      %6337 = vdwg.mxu0
      %6338 = vmatprep.subr.bf16.mxu0 %v4699
      %6339 = vmatpush1.bf16.msra.mxu0 %v4698
      %6340 = vmatprep.subr.bf16.mxu0 %v4695
      %6341 = vmatpush1.bf16.msra.mxu0 %v4694
      %6342 = vmatprep.subr.bf16.mxu0 %v4691
      %6343 = vmatpush1.bf16.msra.mxu0 %v4690
      %6344 = vmatprep.subr.bf16.mxu0 %v4687
      %6345 = vmatpush1.bf16.msra.mxu0 %v4686
      %6346 = vmatprep.subr.bf16.mxu0 %v4683
      %6347 = vmatpush1.bf16.msra.mxu0 %v4682
      %6348 = vmatprep.subr.bf16.mxu0 %v4679
      %6349 = vmatpush1.bf16.msra.mxu0 %v4678
      %6350 = vmatprep.subr.bf16.mxu0 %v4675
      %6351 = vmatpush1.bf16.msra.mxu0 %v4674
      %6352 = vmatprep.subr.bf16.mxu0 %v4671
      %6353 = vmatpush1.bf16.msra.mxu0 %v4670
      %6354 = vmatprep.subr.bf16.mxu0 %v4731
      %6355 = vmatpush2.bf16.msra.mxu0 %v4730
      %6356 = vmatprep.subr.bf16.mxu0 %v4727
      %6357 = vmatpush2.bf16.msra.mxu0 %v4726
      %6358 = vmatprep.subr.bf16.mxu0 %v4723
      %6359 = vmatpush2.bf16.msra.mxu0 %v4722
      %6360 = vmatprep.subr.bf16.mxu0 %v4719
      %6361 = vmatpush2.bf16.msra.mxu0 %v4718
      %6362 = vmatprep.subr.bf16.mxu0 %v4715
      %6363 = vmatpush2.bf16.msra.mxu0 %v4714
      %6364 = vmatprep.subr.bf16.mxu0 %v4711
      %6365 = vmatpush2.bf16.msra.mxu0 %v4710
      %6366 = vmatprep.subr.bf16.mxu0 %v4707
      %6367 = vmatpush2.bf16.msra.mxu0 %v4706
      %6368 = vmatprep.subr.bf16.mxu0 %v4703
      %6369 = vmatpush2.bf16.msra.mxu0 %v4702
      %6370 = vmatprep.mubr.bf16.mxu0 %v3455
      %6371 = vmatmul.mubr.bf16.gmra.mxu0 %v3454
      %v6372 = vpop.f32.mrf.mxu0
      %v6373 = vadd.f32 %v6180, %v6372
      %v6374 = vpop.f32.mrf.mxu0
      %v6375 = vadd.f32 %v6182, %v6374
      %v6376 = vpop.f32.mrf.mxu0
      %v6377 = vadd.f32 %v6184, %v6376
      %v6378 = vpop.f32.mrf.mxu0
      %v6379 = vadd.f32 %v6186, %v6378
      %6380 = vmatprep.mubr.bf16.mxu0 %v3464
      %6381 = vmatmul.mubr.bf16.gmra.mxu0 %v3463
      %v6382 = vpop.f32.mrf.mxu0
      %v6383 = vadd.f32 %v6190, %v6382
      %v6384 = vpop.f32.mrf.mxu0
      %v6385 = vadd.f32 %v6192, %v6384
      %v6386 = vpop.f32.mrf.mxu0
      %v6387 = vadd.f32 %v6194, %v6386
      %v6388 = vpop.f32.mrf.mxu0
      %v6389 = vadd.f32 %v6196, %v6388
      %6390 = vmatprep.mubr.bf16.mxu0 %v3473
      %6391 = vmatmul.mubr.bf16.gmra.mxu0 %v3472
      %v6392 = vpop.f32.mrf.mxu0
      %v6393 = vadd.f32 %v6200, %v6392
      %v6394 = vpop.f32.mrf.mxu0
      %v6395 = vadd.f32 %v6202, %v6394
      %v6396 = vpop.f32.mrf.mxu0
      %v6397 = vadd.f32 %v6204, %v6396
      %v6398 = vpop.f32.mrf.mxu0
      %v6399 = vadd.f32 %v6206, %v6398
      %6400 = vmatprep.mubr.bf16.mxu0 %v3482
      %6401 = vmatmul.mubr.bf16.gmra.mxu0 %v3481
      %v6402 = vpop.f32.mrf.mxu0
      %v6403 = vadd.f32 %v6210, %v6402
      %v6404 = vpop.f32.mrf.mxu0
      %v6405 = vadd.f32 %v6212, %v6404
      %v6406 = vpop.f32.mrf.mxu0
      %v6407 = vadd.f32 %v6214, %v6406
      %v6408 = vpop.f32.mrf.mxu0
      %v6409 = vadd.f32 %v6216, %v6408
      %6410 = vmatprep.mubr.bf16.mxu0 %v3491
      %6411 = vmatmul.mubr.bf16.gmra.mxu0 %v3490
      %v6412 = vpop.f32.mrf.mxu0
      %v6413 = vadd.f32 %v6220, %v6412
      %v6414 = vpop.f32.mrf.mxu0
      %v6415 = vadd.f32 %v6222, %v6414
      %v6416 = vpop.f32.mrf.mxu0
      %v6417 = vadd.f32 %v6224, %v6416
      %v6418 = vpop.f32.mrf.mxu0
      %v6419 = vadd.f32 %v6226, %v6418
      %6420 = vmatprep.mubr.bf16.mxu0 %v3500
      %6421 = vmatmul.mubr.bf16.gmra.mxu0 %v3499
      %v6422 = vpop.f32.mrf.mxu0
      %v6423 = vadd.f32 %v6230, %v6422
      %v6424 = vpop.f32.mrf.mxu0
      %v6425 = vadd.f32 %v6232, %v6424
      %v6426 = vpop.f32.mrf.mxu0
      %v6427 = vadd.f32 %v6234, %v6426
      %v6428 = vpop.f32.mrf.mxu0
      %v6429 = vadd.f32 %v6236, %v6428
      %6430 = vmatprep.mubr.bf16.mxu0 %v3509
      %6431 = vmatmul.mubr.bf16.gmra.mxu0 %v3508
      %v6432 = vpop.f32.mrf.mxu0
      %v6433 = vadd.f32 %v6240, %v6432
      %v6434 = vpop.f32.mrf.mxu0
      %v6435 = vadd.f32 %v6242, %v6434
      %v6436 = vpop.f32.mrf.mxu0
      %v6437 = vadd.f32 %v6244, %v6436
      %v6438 = vpop.f32.mrf.mxu0
      %v6439 = vadd.f32 %v6246, %v6438
      %6440 = vmatprep.mubr.bf16.mxu0 %v3518
      %6441 = vmatmul.mubr.bf16.gmra.mxu0 %v3517
      %v6442 = vpop.f32.mrf.mxu0
      %v6443 = vadd.f32 %v6250, %v6442
      %v6444 = vpop.f32.mrf.mxu0
      %v6445 = vadd.f32 %v6252, %v6444
      %v6446 = vpop.f32.mrf.mxu0
      %v6447 = vadd.f32 %v6254, %v6446
      %v6448 = vpop.f32.mrf.mxu0
      %v6449 = vadd.f32 %v6256, %v6448
      %6450 = vmatprep.mubr.bf16.mxu0 %v3527
      %6451 = vmatmul.mubr.bf16.gmra.mxu0 %v3526
      %v6452 = vpop.f32.mrf.mxu0
      %v6453 = vadd.f32 %v6260, %v6452
      %v6454 = vpop.f32.mrf.mxu0
      %v6455 = vadd.f32 %v6262, %v6454
      %v6456 = vpop.f32.mrf.mxu0
      %v6457 = vadd.f32 %v6264, %v6456
      %v6458 = vpop.f32.mrf.mxu0
      %v6459 = vadd.f32 %v6266, %v6458
      %6460 = vmatprep.mubr.bf16.mxu0 %v3536
      %6461 = vmatmul.mubr.bf16.gmra.mxu0 %v3535
      %v6462 = vpop.f32.mrf.mxu0
      %v6463 = vadd.f32 %v6270, %v6462
      %v6464 = vpop.f32.mrf.mxu0
      %v6465 = vadd.f32 %v6272, %v6464
      %v6466 = vpop.f32.mrf.mxu0
      %v6467 = vadd.f32 %v6274, %v6466
      %v6468 = vpop.f32.mrf.mxu0
      %v6469 = vadd.f32 %v6276, %v6468
      %6470 = vmatprep.mubr.bf16.mxu0 %v3545
      %6471 = vmatmul.mubr.bf16.gmra.mxu0 %v3544
      %v6472 = vpop.f32.mrf.mxu0
      %v6473 = vadd.f32 %v6280, %v6472
      %v6474 = vpop.f32.mrf.mxu0
      %v6475 = vadd.f32 %v6282, %v6474
      %v6476 = vpop.f32.mrf.mxu0
      %v6477 = vadd.f32 %v6284, %v6476
      %v6478 = vpop.f32.mrf.mxu0
      %v6479 = vadd.f32 %v6286, %v6478
      %6480 = vmatprep.mubr.bf16.mxu0 %v3554
      %6481 = vmatmul.mubr.bf16.gmra.mxu0 %v3553
      %v6482 = vpop.f32.mrf.mxu0
      %v6483 = vadd.f32 %v6290, %v6482
      %v6484 = vpop.f32.mrf.mxu0
      %v6485 = vadd.f32 %v6292, %v6484
      %v6486 = vpop.f32.mrf.mxu0
      %v6487 = vadd.f32 %v6294, %v6486
      %v6488 = vpop.f32.mrf.mxu0
      %v6489 = vadd.f32 %v6296, %v6488
      %6490 = vmatprep.mubr.bf16.mxu0 %v3563
      %6491 = vmatmul.mubr.bf16.gmra.mxu0 %v3562
      %v6492 = vpop.f32.mrf.mxu0
      %v6493 = vadd.f32 %v6300, %v6492
      %v6494 = vpop.f32.mrf.mxu0
      %v6495 = vadd.f32 %v6302, %v6494
      %v6496 = vpop.f32.mrf.mxu0
      %v6497 = vadd.f32 %v6304, %v6496
      %v6498 = vpop.f32.mrf.mxu0
      %v6499 = vadd.f32 %v6306, %v6498
      %6500 = vmatprep.mubr.bf16.mxu0 %v3572
      %6501 = vmatmul.mubr.bf16.gmra.mxu0 %v3571
      %v6502 = vpop.f32.mrf.mxu0
      %v6503 = vadd.f32 %v6310, %v6502
      %v6504 = vpop.f32.mrf.mxu0
      %v6505 = vadd.f32 %v6312, %v6504
      %v6506 = vpop.f32.mrf.mxu0
      %v6507 = vadd.f32 %v6314, %v6506
      %v6508 = vpop.f32.mrf.mxu0
      %v6509 = vadd.f32 %v6316, %v6508
      %6510 = vmatprep.mubr.bf16.mxu0 %v3581
      %6511 = vmatmul.mubr.bf16.gmra.mxu0 %v3580
      %v6512 = vpop.f32.mrf.mxu0
      %v6513 = vadd.f32 %v6320, %v6512
      %v6514 = vpop.f32.mrf.mxu0
      %v6515 = vadd.f32 %v6322, %v6514
      %v6516 = vpop.f32.mrf.mxu0
      %v6517 = vadd.f32 %v6324, %v6516
      %v6518 = vpop.f32.mrf.mxu0
      %v6519 = vadd.f32 %v6326, %v6518
      %6520 = vmatprep.mubr.bf16.mxu0 %v3590
      %6521 = vmatmul.mubr.bf16.gmra.mxu0 %v3589
      %v6522 = vpop.f32.mrf.mxu0
      %v6523 = vadd.f32 %v6330, %v6522
      %v6524 = vpop.f32.mrf.mxu0
      %v6525 = vadd.f32 %v6332, %v6524
      %v6526 = vpop.f32.mrf.mxu0
      %v6527 = vadd.f32 %v6334, %v6526
      %v6528 = vpop.f32.mrf.mxu0
      %v6529 = vadd.f32 %v6336, %v6528
      %6530 = vdwg.mxu0
      %6531 = vmatprep.subr.bf16.mxu0 %v4763
      %6532 = vmatpush1.bf16.msra.mxu0 %v4762
      %6533 = vmatprep.subr.bf16.mxu0 %v4759
      %6534 = vmatpush1.bf16.msra.mxu0 %v4758
      %6535 = vmatprep.subr.bf16.mxu0 %v4755
      %6536 = vmatpush1.bf16.msra.mxu0 %v4754
      %6537 = vmatprep.subr.bf16.mxu0 %v4751
      %6538 = vmatpush1.bf16.msra.mxu0 %v4750
      %6539 = vmatprep.subr.bf16.mxu0 %v4747
      %6540 = vmatpush1.bf16.msra.mxu0 %v4746
      %6541 = vmatprep.subr.bf16.mxu0 %v4743
      %6542 = vmatpush1.bf16.msra.mxu0 %v4742
      %6543 = vmatprep.subr.bf16.mxu0 %v4739
      %6544 = vmatpush1.bf16.msra.mxu0 %v4738
      %6545 = vmatprep.subr.bf16.mxu0 %v4735
      %6546 = vmatpush1.bf16.msra.mxu0 %v4734
      %6547 = vmatprep.subr.bf16.mxu0 %v4795
      %6548 = vmatpush2.bf16.msra.mxu0 %v4794
      %6549 = vmatprep.subr.bf16.mxu0 %v4791
      %6550 = vmatpush2.bf16.msra.mxu0 %v4790
      %6551 = vmatprep.subr.bf16.mxu0 %v4787
      %6552 = vmatpush2.bf16.msra.mxu0 %v4786
      %6553 = vmatprep.subr.bf16.mxu0 %v4783
      %6554 = vmatpush2.bf16.msra.mxu0 %v4782
      %6555 = vmatprep.subr.bf16.mxu0 %v4779
      %6556 = vmatpush2.bf16.msra.mxu0 %v4778
      %6557 = vmatprep.subr.bf16.mxu0 %v4775
      %6558 = vmatpush2.bf16.msra.mxu0 %v4774
      %6559 = vmatprep.subr.bf16.mxu0 %v4771
      %6560 = vmatpush2.bf16.msra.mxu0 %v4770
      %6561 = vmatprep.subr.bf16.mxu0 %v4767
      %6562 = vmatpush2.bf16.msra.mxu0 %v4766
      %6563 = vmatprep.mubr.bf16.mxu0 %v3457
      %6564 = vmatmul.mubr.bf16.gmra.mxu0 %v3456
      %v6565 = vpop.f32.mrf.mxu0
      %v6566 = vadd.f32 %v6373, %v6565
      %v6567 = vpop.f32.mrf.mxu0
      %v6568 = vadd.f32 %v6375, %v6567
      %v6569 = vpop.f32.mrf.mxu0
      %v6570 = vadd.f32 %v6377, %v6569
      %v6571 = vpop.f32.mrf.mxu0
      %v6572 = vadd.f32 %v6379, %v6571
      %6573 = vmatprep.mubr.bf16.mxu0 %v3466
      %6574 = vmatmul.mubr.bf16.gmra.mxu0 %v3465
      %v6575 = vpop.f32.mrf.mxu0
      %v6576 = vadd.f32 %v6383, %v6575
      %v6577 = vpop.f32.mrf.mxu0
      %v6578 = vadd.f32 %v6385, %v6577
      %v6579 = vpop.f32.mrf.mxu0
      %v6580 = vadd.f32 %v6387, %v6579
      %v6581 = vpop.f32.mrf.mxu0
      %v6582 = vadd.f32 %v6389, %v6581
      %6583 = vmatprep.mubr.bf16.mxu0 %v3475
      %6584 = vmatmul.mubr.bf16.gmra.mxu0 %v3474
      %v6585 = vpop.f32.mrf.mxu0
      %v6586 = vadd.f32 %v6393, %v6585
      %v6587 = vpop.f32.mrf.mxu0
      %v6588 = vadd.f32 %v6395, %v6587
      %v6589 = vpop.f32.mrf.mxu0
      %v6590 = vadd.f32 %v6397, %v6589
      %v6591 = vpop.f32.mrf.mxu0
      %v6592 = vadd.f32 %v6399, %v6591
      %6593 = vmatprep.mubr.bf16.mxu0 %v3484
      %6594 = vmatmul.mubr.bf16.gmra.mxu0 %v3483
      %v6595 = vpop.f32.mrf.mxu0
      %v6596 = vadd.f32 %v6403, %v6595
      %v6597 = vpop.f32.mrf.mxu0
      %v6598 = vadd.f32 %v6405, %v6597
      %v6599 = vpop.f32.mrf.mxu0
      %v6600 = vadd.f32 %v6407, %v6599
      %v6601 = vpop.f32.mrf.mxu0
      %v6602 = vadd.f32 %v6409, %v6601
      %6603 = vmatprep.mubr.bf16.mxu0 %v3493
      %6604 = vmatmul.mubr.bf16.gmra.mxu0 %v3492
      %v6605 = vpop.f32.mrf.mxu0
      %v6606 = vadd.f32 %v6413, %v6605
      %v6607 = vpop.f32.mrf.mxu0
      %v6608 = vadd.f32 %v6415, %v6607
      %v6609 = vpop.f32.mrf.mxu0
      %v6610 = vadd.f32 %v6417, %v6609
      %v6611 = vpop.f32.mrf.mxu0
      %v6612 = vadd.f32 %v6419, %v6611
      %6613 = vmatprep.mubr.bf16.mxu0 %v3502
      %6614 = vmatmul.mubr.bf16.gmra.mxu0 %v3501
      %v6615 = vpop.f32.mrf.mxu0
      %v6616 = vadd.f32 %v6423, %v6615
      %v6617 = vpop.f32.mrf.mxu0
      %v6618 = vadd.f32 %v6425, %v6617
      %v6619 = vpop.f32.mrf.mxu0
      %v6620 = vadd.f32 %v6427, %v6619
      %v6621 = vpop.f32.mrf.mxu0
      %v6622 = vadd.f32 %v6429, %v6621
      %6623 = vmatprep.mubr.bf16.mxu0 %v3511
      %6624 = vmatmul.mubr.bf16.gmra.mxu0 %v3510
      %v6625 = vpop.f32.mrf.mxu0
      %v6626 = vadd.f32 %v6433, %v6625
      %v6627 = vpop.f32.mrf.mxu0
      %v6628 = vadd.f32 %v6435, %v6627
      %v6629 = vpop.f32.mrf.mxu0
      %v6630 = vadd.f32 %v6437, %v6629
      %v6631 = vpop.f32.mrf.mxu0
      %v6632 = vadd.f32 %v6439, %v6631
      %6633 = vmatprep.mubr.bf16.mxu0 %v3520
      %6634 = vmatmul.mubr.bf16.gmra.mxu0 %v3519
      %v6635 = vpop.f32.mrf.mxu0
      %v6636 = vadd.f32 %v6443, %v6635
      %v6637 = vpop.f32.mrf.mxu0
      %v6638 = vadd.f32 %v6445, %v6637
      %v6639 = vpop.f32.mrf.mxu0
      %v6640 = vadd.f32 %v6447, %v6639
      %v6641 = vpop.f32.mrf.mxu0
      %v6642 = vadd.f32 %v6449, %v6641
      %6643 = vmatprep.mubr.bf16.mxu0 %v3529
      %6644 = vmatmul.mubr.bf16.gmra.mxu0 %v3528
      %v6645 = vpop.f32.mrf.mxu0
      %v6646 = vadd.f32 %v6453, %v6645
      %v6647 = vpop.f32.mrf.mxu0
      %v6648 = vadd.f32 %v6455, %v6647
      %v6649 = vpop.f32.mrf.mxu0
      %v6650 = vadd.f32 %v6457, %v6649
      %v6651 = vpop.f32.mrf.mxu0
      %v6652 = vadd.f32 %v6459, %v6651
      %6653 = vmatprep.mubr.bf16.mxu0 %v3538
      %6654 = vmatmul.mubr.bf16.gmra.mxu0 %v3537
      %v6655 = vpop.f32.mrf.mxu0
      %v6656 = vadd.f32 %v6463, %v6655
      %v6657 = vpop.f32.mrf.mxu0
      %v6658 = vadd.f32 %v6465, %v6657
      %v6659 = vpop.f32.mrf.mxu0
      %v6660 = vadd.f32 %v6467, %v6659
      %v6661 = vpop.f32.mrf.mxu0
      %v6662 = vadd.f32 %v6469, %v6661
      %6663 = vmatprep.mubr.bf16.mxu0 %v3547
      %6664 = vmatmul.mubr.bf16.gmra.mxu0 %v3546
      %v6665 = vpop.f32.mrf.mxu0
      %v6666 = vadd.f32 %v6473, %v6665
      %v6667 = vpop.f32.mrf.mxu0
      %v6668 = vadd.f32 %v6475, %v6667
      %v6669 = vpop.f32.mrf.mxu0
      %v6670 = vadd.f32 %v6477, %v6669
      %v6671 = vpop.f32.mrf.mxu0
      %v6672 = vadd.f32 %v6479, %v6671
      %6673 = vmatprep.mubr.bf16.mxu0 %v3556
      %6674 = vmatmul.mubr.bf16.gmra.mxu0 %v3555
      %v6675 = vpop.f32.mrf.mxu0
      %v6676 = vadd.f32 %v6483, %v6675
      %v6677 = vpop.f32.mrf.mxu0
      %v6678 = vadd.f32 %v6485, %v6677
      %v6679 = vpop.f32.mrf.mxu0
      %v6680 = vadd.f32 %v6487, %v6679
      %v6681 = vpop.f32.mrf.mxu0
      %v6682 = vadd.f32 %v6489, %v6681
      %6683 = vmatprep.mubr.bf16.mxu0 %v3565
      %6684 = vmatmul.mubr.bf16.gmra.mxu0 %v3564
      %v6685 = vpop.f32.mrf.mxu0
      %v6686 = vadd.f32 %v6493, %v6685
      %v6687 = vpop.f32.mrf.mxu0
      %v6688 = vadd.f32 %v6495, %v6687
      %v6689 = vpop.f32.mrf.mxu0
      %v6690 = vadd.f32 %v6497, %v6689
      %v6691 = vpop.f32.mrf.mxu0
      %v6692 = vadd.f32 %v6499, %v6691
      %6693 = vmatprep.mubr.bf16.mxu0 %v3574
      %6694 = vmatmul.mubr.bf16.gmra.mxu0 %v3573
      %v6695 = vpop.f32.mrf.mxu0
      %v6696 = vadd.f32 %v6503, %v6695
      %v6697 = vpop.f32.mrf.mxu0
      %v6698 = vadd.f32 %v6505, %v6697
      %v6699 = vpop.f32.mrf.mxu0
      %v6700 = vadd.f32 %v6507, %v6699
      %v6701 = vpop.f32.mrf.mxu0
      %v6702 = vadd.f32 %v6509, %v6701
      %6703 = vmatprep.mubr.bf16.mxu0 %v3583
      %6704 = vmatmul.mubr.bf16.gmra.mxu0 %v3582
      %v6705 = vpop.f32.mrf.mxu0
      %v6706 = vadd.f32 %v6513, %v6705
      %v6707 = vpop.f32.mrf.mxu0
      %v6708 = vadd.f32 %v6515, %v6707
      %v6709 = vpop.f32.mrf.mxu0
      %v6710 = vadd.f32 %v6517, %v6709
      %v6711 = vpop.f32.mrf.mxu0
      %v6712 = vadd.f32 %v6519, %v6711
      %6713 = vmatprep.mubr.bf16.mxu0 %v3592
      %6714 = vmatmul.mubr.bf16.gmra.mxu0 %v3591
      %v6715 = vpop.f32.mrf.mxu0
      %v6716 = vadd.f32 %v6523, %v6715
      %v6717 = vpop.f32.mrf.mxu0
      %v6718 = vadd.f32 %v6525, %v6717
      %v6719 = vpop.f32.mrf.mxu0
      %v6720 = vadd.f32 %v6527, %v6719
      %v6721 = vpop.f32.mrf.mxu0
      %v6722 = vadd.f32 %v6529, %v6721
      %6723 = vdwg.mxu0
      %6724 = vmatprep.subr.bf16.mxu0 %v4827
      %6725 = vmatpush1.bf16.msra.mxu0 %v4826
      %6726 = vmatprep.subr.bf16.mxu0 %v4823
      %6727 = vmatpush1.bf16.msra.mxu0 %v4822
      %6728 = vmatprep.subr.bf16.mxu0 %v4819
      %6729 = vmatpush1.bf16.msra.mxu0 %v4818
      %6730 = vmatprep.subr.bf16.mxu0 %v4815
      %6731 = vmatpush1.bf16.msra.mxu0 %v4814
      %6732 = vmatprep.subr.bf16.mxu0 %v4811
      %6733 = vmatpush1.bf16.msra.mxu0 %v4810
      %6734 = vmatprep.subr.bf16.mxu0 %v4807
      %6735 = vmatpush1.bf16.msra.mxu0 %v4806
      %6736 = vmatprep.subr.bf16.mxu0 %v4803
      %6737 = vmatpush1.bf16.msra.mxu0 %v4802
      %6738 = vmatprep.subr.bf16.mxu0 %v4799
      %6739 = vmatpush1.bf16.msra.mxu0 %v4798
      %6740 = vmatprep.subr.bf16.mxu0 %v4859
      %6741 = vmatpush2.bf16.msra.mxu0 %v4858
      %6742 = vmatprep.subr.bf16.mxu0 %v4855
      %6743 = vmatpush2.bf16.msra.mxu0 %v4854
      %6744 = vmatprep.subr.bf16.mxu0 %v4851
      %6745 = vmatpush2.bf16.msra.mxu0 %v4850
      %6746 = vmatprep.subr.bf16.mxu0 %v4847
      %6747 = vmatpush2.bf16.msra.mxu0 %v4846
      %6748 = vmatprep.subr.bf16.mxu0 %v4843
      %6749 = vmatpush2.bf16.msra.mxu0 %v4842
      %6750 = vmatprep.subr.bf16.mxu0 %v4839
      %6751 = vmatpush2.bf16.msra.mxu0 %v4838
      %6752 = vmatprep.subr.bf16.mxu0 %v4835
      %6753 = vmatpush2.bf16.msra.mxu0 %v4834
      %6754 = vmatprep.subr.bf16.mxu0 %v4831
      %6755 = vmatpush2.bf16.msra.mxu0 %v4830
      %6756 = vmatprep.mubr.bf16.mxu0 %v3459
      %6757 = vmatmul.mubr.bf16.gmra.mxu0 %v3458
      %v6758 = vpop.f32.mrf.mxu0
      %v6759 = vadd.f32 %v6566, %v6758
      %v6760 = vpop.f32.mrf.mxu0
      %v6761 = vadd.f32 %v6568, %v6760
      %v6762 = vpop.f32.mrf.mxu0
      %v6763 = vadd.f32 %v6570, %v6762
      %v6764 = vpop.f32.mrf.mxu0
      %v6765 = vadd.f32 %v6572, %v6764
      %6766 = vmatprep.mubr.bf16.mxu0 %v3468
      %6767 = vmatmul.mubr.bf16.gmra.mxu0 %v3467
      %v6768 = vpop.f32.mrf.mxu0
      %v6769 = vadd.f32 %v6576, %v6768
      %v6770 = vpop.f32.mrf.mxu0
      %v6771 = vadd.f32 %v6578, %v6770
      %v6772 = vpop.f32.mrf.mxu0
      %v6773 = vadd.f32 %v6580, %v6772
      %v6774 = vpop.f32.mrf.mxu0
      %v6775 = vadd.f32 %v6582, %v6774
      %6776 = vmatprep.mubr.bf16.mxu0 %v3477
      %6777 = vmatmul.mubr.bf16.gmra.mxu0 %v3476
      %v6778 = vpop.f32.mrf.mxu0
      %v6779 = vadd.f32 %v6586, %v6778
      %v6780 = vpop.f32.mrf.mxu0
      %v6781 = vadd.f32 %v6588, %v6780
      %v6782 = vpop.f32.mrf.mxu0
      %v6783 = vadd.f32 %v6590, %v6782
      %v6784 = vpop.f32.mrf.mxu0
      %v6785 = vadd.f32 %v6592, %v6784
      %6786 = vmatprep.mubr.bf16.mxu0 %v3486
      %6787 = vmatmul.mubr.bf16.gmra.mxu0 %v3485
      %v6788 = vpop.f32.mrf.mxu0
      %v6789 = vadd.f32 %v6596, %v6788
      %v6790 = vpop.f32.mrf.mxu0
      %v6791 = vadd.f32 %v6598, %v6790
      %v6792 = vpop.f32.mrf.mxu0
      %v6793 = vadd.f32 %v6600, %v6792
      %v6794 = vpop.f32.mrf.mxu0
      %v6795 = vadd.f32 %v6602, %v6794
      %6796 = vmatprep.mubr.bf16.mxu0 %v3495
      %6797 = vmatmul.mubr.bf16.gmra.mxu0 %v3494
      %v6798 = vpop.f32.mrf.mxu0
      %v6799 = vadd.f32 %v6606, %v6798
      %v6800 = vpop.f32.mrf.mxu0
      %v6801 = vadd.f32 %v6608, %v6800
      %v6802 = vpop.f32.mrf.mxu0
      %v6803 = vadd.f32 %v6610, %v6802
      %v6804 = vpop.f32.mrf.mxu0
      %v6805 = vadd.f32 %v6612, %v6804
      %6806 = vmatprep.mubr.bf16.mxu0 %v3504
      %6807 = vmatmul.mubr.bf16.gmra.mxu0 %v3503
      %v6808 = vpop.f32.mrf.mxu0
      %v6809 = vadd.f32 %v6616, %v6808
      %v6810 = vpop.f32.mrf.mxu0
      %v6811 = vadd.f32 %v6618, %v6810
      %v6812 = vpop.f32.mrf.mxu0
      %v6813 = vadd.f32 %v6620, %v6812
      %v6814 = vpop.f32.mrf.mxu0
      %v6815 = vadd.f32 %v6622, %v6814
      %6816 = vmatprep.mubr.bf16.mxu0 %v3513
      %6817 = vmatmul.mubr.bf16.gmra.mxu0 %v3512
      %v6818 = vpop.f32.mrf.mxu0
      %v6819 = vadd.f32 %v6626, %v6818
      %v6820 = vpop.f32.mrf.mxu0
      %v6821 = vadd.f32 %v6628, %v6820
      %v6822 = vpop.f32.mrf.mxu0
      %v6823 = vadd.f32 %v6630, %v6822
      %v6824 = vpop.f32.mrf.mxu0
      %v6825 = vadd.f32 %v6632, %v6824
      %6826 = vmatprep.mubr.bf16.mxu0 %v3522
      %6827 = vmatmul.mubr.bf16.gmra.mxu0 %v3521
      %v6828 = vpop.f32.mrf.mxu0
      %v6829 = vadd.f32 %v6636, %v6828
      %v6830 = vpop.f32.mrf.mxu0
      %v6831 = vadd.f32 %v6638, %v6830
      %v6832 = vpop.f32.mrf.mxu0
      %v6833 = vadd.f32 %v6640, %v6832
      %v6834 = vpop.f32.mrf.mxu0
      %v6835 = vadd.f32 %v6642, %v6834
      %6836 = vmatprep.mubr.bf16.mxu0 %v3531
      %6837 = vmatmul.mubr.bf16.gmra.mxu0 %v3530
      %v6838 = vpop.f32.mrf.mxu0
      %v6839 = vadd.f32 %v6646, %v6838
      %v6840 = vpop.f32.mrf.mxu0
      %v6841 = vadd.f32 %v6648, %v6840
      %v6842 = vpop.f32.mrf.mxu0
      %v6843 = vadd.f32 %v6650, %v6842
      %v6844 = vpop.f32.mrf.mxu0
      %v6845 = vadd.f32 %v6652, %v6844
      %6846 = vmatprep.mubr.bf16.mxu0 %v3540
      %6847 = vmatmul.mubr.bf16.gmra.mxu0 %v3539
      %v6848 = vpop.f32.mrf.mxu0
      %v6849 = vadd.f32 %v6656, %v6848
      %v6850 = vpop.f32.mrf.mxu0
      %v6851 = vadd.f32 %v6658, %v6850
      %v6852 = vpop.f32.mrf.mxu0
      %v6853 = vadd.f32 %v6660, %v6852
      %v6854 = vpop.f32.mrf.mxu0
      %v6855 = vadd.f32 %v6662, %v6854
      %6856 = vmatprep.mubr.bf16.mxu0 %v3549
      %6857 = vmatmul.mubr.bf16.gmra.mxu0 %v3548
      %v6858 = vpop.f32.mrf.mxu0
      %v6859 = vadd.f32 %v6666, %v6858
      %v6860 = vpop.f32.mrf.mxu0
      %v6861 = vadd.f32 %v6668, %v6860
      %v6862 = vpop.f32.mrf.mxu0
      %v6863 = vadd.f32 %v6670, %v6862
      %v6864 = vpop.f32.mrf.mxu0
      %v6865 = vadd.f32 %v6672, %v6864
      %6866 = vmatprep.mubr.bf16.mxu0 %v3558
      %6867 = vmatmul.mubr.bf16.gmra.mxu0 %v3557
      %v6868 = vpop.f32.mrf.mxu0
      %v6869 = vadd.f32 %v6676, %v6868
      %v6870 = vpop.f32.mrf.mxu0
      %v6871 = vadd.f32 %v6678, %v6870
      %v6872 = vpop.f32.mrf.mxu0
      %v6873 = vadd.f32 %v6680, %v6872
      %v6874 = vpop.f32.mrf.mxu0
      %v6875 = vadd.f32 %v6682, %v6874
      %6876 = vmatprep.mubr.bf16.mxu0 %v3567
      %6877 = vmatmul.mubr.bf16.gmra.mxu0 %v3566
      %v6878 = vpop.f32.mrf.mxu0
      %v6879 = vadd.f32 %v6686, %v6878
      %v6880 = vpop.f32.mrf.mxu0
      %v6881 = vadd.f32 %v6688, %v6880
      %v6882 = vpop.f32.mrf.mxu0
      %v6883 = vadd.f32 %v6690, %v6882
      %v6884 = vpop.f32.mrf.mxu0
      %v6885 = vadd.f32 %v6692, %v6884
      %6886 = vmatprep.mubr.bf16.mxu0 %v3576
      %6887 = vmatmul.mubr.bf16.gmra.mxu0 %v3575
      %v6888 = vpop.f32.mrf.mxu0
      %v6889 = vadd.f32 %v6696, %v6888
      %v6890 = vpop.f32.mrf.mxu0
      %v6891 = vadd.f32 %v6698, %v6890
      %v6892 = vpop.f32.mrf.mxu0
      %v6893 = vadd.f32 %v6700, %v6892
      %v6894 = vpop.f32.mrf.mxu0
      %v6895 = vadd.f32 %v6702, %v6894
      %6896 = vmatprep.mubr.bf16.mxu0 %v3585
      %6897 = vmatmul.mubr.bf16.gmra.mxu0 %v3584
      %v6898 = vpop.f32.mrf.mxu0
      %v6899 = vadd.f32 %v6706, %v6898
      %v6900 = vpop.f32.mrf.mxu0
      %v6901 = vadd.f32 %v6708, %v6900
      %v6902 = vpop.f32.mrf.mxu0
      %v6903 = vadd.f32 %v6710, %v6902
      %v6904 = vpop.f32.mrf.mxu0
      %v6905 = vadd.f32 %v6712, %v6904
      %6906 = vmatprep.mubr.bf16.mxu0 %v3594
      %6907 = vmatmul.mubr.bf16.gmra.mxu0 %v3593
      %v6908 = vpop.f32.mrf.mxu0
      %v6909 = vadd.f32 %v6716, %v6908
      %v6910 = vpop.f32.mrf.mxu0
      %v6911 = vadd.f32 %v6718, %v6910
      %v6912 = vpop.f32.mrf.mxu0
      %v6913 = vadd.f32 %v6720, %v6912
      %v6914 = vpop.f32.mrf.mxu0
      %v6915 = vadd.f32 %v6722, %v6914
      %6916 = vdwg.mxu0
      %6917 = vmatprep.subr.bf16.mxu0 %v4891
      %6918 = vmatpush1.bf16.msra.mxu0 %v4890
      %6919 = vmatprep.subr.bf16.mxu0 %v4887
      %6920 = vmatpush1.bf16.msra.mxu0 %v4886
      %6921 = vmatprep.subr.bf16.mxu0 %v4883
      %6922 = vmatpush1.bf16.msra.mxu0 %v4882
      %6923 = vmatprep.subr.bf16.mxu0 %v4879
      %6924 = vmatpush1.bf16.msra.mxu0 %v4878
      %6925 = vmatprep.subr.bf16.mxu0 %v4875
      %6926 = vmatpush1.bf16.msra.mxu0 %v4874
      %6927 = vmatprep.subr.bf16.mxu0 %v4871
      %6928 = vmatpush1.bf16.msra.mxu0 %v4870
      %6929 = vmatprep.subr.bf16.mxu0 %v4867
      %6930 = vmatpush1.bf16.msra.mxu0 %v4866
      %6931 = vmatprep.subr.bf16.mxu0 %v4863
      %6932 = vmatpush1.bf16.msra.mxu0 %v4862
      %6933 = vmatprep.subr.bf16.mxu0 0
      %6934 = vmatpush2.bf16.msra.mxu0 0
      %6935 = vmatprep.subr.bf16.mxu0 0
      %6936 = vmatpush2.bf16.msra.mxu0 0
      %6937 = vmatprep.subr.bf16.mxu0 0
      %6938 = vmatpush2.bf16.msra.mxu0 0
      %6939 = vmatprep.subr.bf16.mxu0 0
      %6940 = vmatpush2.bf16.msra.mxu0 0
      %6941 = vmatprep.subr.bf16.mxu0 0
      %6942 = vmatpush2.bf16.msra.mxu0 0
      %6943 = vmatprep.subr.bf16.mxu0 0
      %6944 = vmatpush2.bf16.msra.mxu0 0
      %6945 = vmatprep.subr.bf16.mxu0 0
      %6946 = vmatpush2.bf16.msra.mxu0 0
      %6947 = vmatprep.subr.bf16.mxu0 0
      %6948 = vmatpush2.bf16.msra.mxu0 0
      %6949 = vmatprep.mubr.bf16.mxu0 0
      %6950 = vmatmul.mubr.bf16.gmra.mxu0 %v3460
      %v6951 = vpop.f32.mrf.mxu0
      %v6952 = vadd.f32 %v6759, %v6951
      %v6953 = vpop.f32.mrf.mxu0
      %v6954 = vadd.f32 %v6761, %v6953
      %v6955 = vpop.f32.mrf.mxu0
      %v6956 = vadd.f32 %v6763, %v6955
      %v6957 = vpop.f32.mrf.mxu0
      %v6958 = vadd.f32 %v6765, %v6957
      %6959 = vmatprep.mubr.bf16.mxu0 0
      %6960 = vmatmul.mubr.bf16.gmra.mxu0 %v3469
      %v6961 = vpop.f32.mrf.mxu0
      %v6962 = vadd.f32 %v6769, %v6961
      %v6963 = vpop.f32.mrf.mxu0
      %v6964 = vadd.f32 %v6771, %v6963
      %v6965 = vpop.f32.mrf.mxu0
      %v6966 = vadd.f32 %v6773, %v6965
      %v6967 = vpop.f32.mrf.mxu0
      %v6968 = vadd.f32 %v6775, %v6967
      %6969 = vmatprep.mubr.bf16.mxu0 0
      %6970 = vmatmul.mubr.bf16.gmra.mxu0 %v3478
      %v6971 = vpop.f32.mrf.mxu0
      %v6972 = vadd.f32 %v6779, %v6971
      %v6973 = vpop.f32.mrf.mxu0
      %v6974 = vadd.f32 %v6781, %v6973
      %v6975 = vpop.f32.mrf.mxu0
      %v6976 = vadd.f32 %v6783, %v6975
      %v6977 = vpop.f32.mrf.mxu0
      %v6978 = vadd.f32 %v6785, %v6977
      %6979 = vmatprep.mubr.bf16.mxu0 0
      %6980 = vmatmul.mubr.bf16.gmra.mxu0 %v3487
      %v6981 = vpop.f32.mrf.mxu0
      %v6982 = vadd.f32 %v6789, %v6981
      %v6983 = vpop.f32.mrf.mxu0
      %v6984 = vadd.f32 %v6791, %v6983
      %v6985 = vpop.f32.mrf.mxu0
      %v6986 = vadd.f32 %v6793, %v6985
      %v6987 = vpop.f32.mrf.mxu0
      %v6988 = vadd.f32 %v6795, %v6987
      %6989 = vmatprep.mubr.bf16.mxu0 0
      %6990 = vmatmul.mubr.bf16.gmra.mxu0 %v3496
      %v6991 = vpop.f32.mrf.mxu0
      %v6992 = vadd.f32 %v6799, %v6991
      %v6993 = vpop.f32.mrf.mxu0
      %v6994 = vadd.f32 %v6801, %v6993
      %v6995 = vpop.f32.mrf.mxu0
      %v6996 = vadd.f32 %v6803, %v6995
      %v6997 = vpop.f32.mrf.mxu0
      %v6998 = vadd.f32 %v6805, %v6997
      %6999 = vmatprep.mubr.bf16.mxu0 0
      %7000 = vmatmul.mubr.bf16.gmra.mxu0 %v3505
      %v7001 = vpop.f32.mrf.mxu0
      %v7002 = vadd.f32 %v6809, %v7001
      %v7003 = vpop.f32.mrf.mxu0
      %v7004 = vadd.f32 %v6811, %v7003
      %v7005 = vpop.f32.mrf.mxu0
      %v7006 = vadd.f32 %v6813, %v7005
      %v7007 = vpop.f32.mrf.mxu0
      %v7008 = vadd.f32 %v6815, %v7007
      %7009 = vmatprep.mubr.bf16.mxu0 0
      %7010 = vmatmul.mubr.bf16.gmra.mxu0 %v3514
      %v7011 = vpop.f32.mrf.mxu0
      %v7012 = vadd.f32 %v6819, %v7011
      %v7013 = vpop.f32.mrf.mxu0
      %v7014 = vadd.f32 %v6821, %v7013
      %v7015 = vpop.f32.mrf.mxu0
      %v7016 = vadd.f32 %v6823, %v7015
      %v7017 = vpop.f32.mrf.mxu0
      %v7018 = vadd.f32 %v6825, %v7017
      %7019 = vmatprep.mubr.bf16.mxu0 0
      %7020 = vmatmul.mubr.bf16.gmra.mxu0 %v3523
      %v7021 = vpop.f32.mrf.mxu0
      %v7022 = vadd.f32 %v6829, %v7021
      %v7023 = vpop.f32.mrf.mxu0
      %v7024 = vadd.f32 %v6831, %v7023
      %v7025 = vpop.f32.mrf.mxu0
      %v7026 = vadd.f32 %v6833, %v7025
      %v7027 = vpop.f32.mrf.mxu0
      %v7028 = vadd.f32 %v6835, %v7027
      %7029 = vmatprep.mubr.bf16.mxu0 0
      %7030 = vmatmul.mubr.bf16.gmra.mxu0 %v3532
      %v7031 = vpop.f32.mrf.mxu0
      %v7032 = vadd.f32 %v6839, %v7031
      %v7033 = vpop.f32.mrf.mxu0
      %v7034 = vadd.f32 %v6841, %v7033
      %v7035 = vpop.f32.mrf.mxu0
      %v7036 = vadd.f32 %v6843, %v7035
      %v7037 = vpop.f32.mrf.mxu0
      %v7038 = vadd.f32 %v6845, %v7037
      %7039 = vmatprep.mubr.bf16.mxu0 0
      %7040 = vmatmul.mubr.bf16.gmra.mxu0 %v3541
      %v7041 = vpop.f32.mrf.mxu0
      %v7042 = vadd.f32 %v6849, %v7041
      %v7043 = vpop.f32.mrf.mxu0
      %v7044 = vadd.f32 %v6851, %v7043
      %v7045 = vpop.f32.mrf.mxu0
      %v7046 = vadd.f32 %v6853, %v7045
      %v7047 = vpop.f32.mrf.mxu0
      %v7048 = vadd.f32 %v6855, %v7047
      %7049 = vmatprep.mubr.bf16.mxu0 0
      %7050 = vmatmul.mubr.bf16.gmra.mxu0 %v3550
      %v7051 = vpop.f32.mrf.mxu0
      %v7052 = vadd.f32 %v6859, %v7051
      %v7053 = vpop.f32.mrf.mxu0
      %v7054 = vadd.f32 %v6861, %v7053
      %v7055 = vpop.f32.mrf.mxu0
      %v7056 = vadd.f32 %v6863, %v7055
      %v7057 = vpop.f32.mrf.mxu0
      %v7058 = vadd.f32 %v6865, %v7057
      %7059 = vmatprep.mubr.bf16.mxu0 0
      %7060 = vmatmul.mubr.bf16.gmra.mxu0 %v3559
      %v7061 = vpop.f32.mrf.mxu0
      %v7062 = vadd.f32 %v6869, %v7061
      %v7063 = vpop.f32.mrf.mxu0
      %v7064 = vadd.f32 %v6871, %v7063
      %v7065 = vpop.f32.mrf.mxu0
      %v7066 = vadd.f32 %v6873, %v7065
      %v7067 = vpop.f32.mrf.mxu0
      %v7068 = vadd.f32 %v6875, %v7067
      %7069 = vmatprep.mubr.bf16.mxu0 0
      %7070 = vmatmul.mubr.bf16.gmra.mxu0 %v3568
      %v7071 = vpop.f32.mrf.mxu0
      %v7072 = vadd.f32 %v6879, %v7071
      %v7073 = vpop.f32.mrf.mxu0
      %v7074 = vadd.f32 %v6881, %v7073
      %v7075 = vpop.f32.mrf.mxu0
      %v7076 = vadd.f32 %v6883, %v7075
      %v7077 = vpop.f32.mrf.mxu0
      %v7078 = vadd.f32 %v6885, %v7077
      %7079 = vmatprep.mubr.bf16.mxu0 0
      %7080 = vmatmul.mubr.bf16.gmra.mxu0 %v3577
      %v7081 = vpop.f32.mrf.mxu0
      %v7082 = vadd.f32 %v6889, %v7081
      %v7083 = vpop.f32.mrf.mxu0
      %v7084 = vadd.f32 %v6891, %v7083
      %v7085 = vpop.f32.mrf.mxu0
      %v7086 = vadd.f32 %v6893, %v7085
      %v7087 = vpop.f32.mrf.mxu0
      %v7088 = vadd.f32 %v6895, %v7087
      %7089 = vmatprep.mubr.bf16.mxu0 0
      %7090 = vmatmul.mubr.bf16.gmra.mxu0 %v3586
      %v7091 = vpop.f32.mrf.mxu0
      %v7092 = vadd.f32 %v6899, %v7091
      %v7093 = vpop.f32.mrf.mxu0
      %v7094 = vadd.f32 %v6901, %v7093
      %v7095 = vpop.f32.mrf.mxu0
      %v7096 = vadd.f32 %v6903, %v7095
      %v7097 = vpop.f32.mrf.mxu0
      %v7098 = vadd.f32 %v6905, %v7097
      %7099 = vmatprep.mubr.bf16.mxu0 0
      %7100 = vmatmul.mubr.bf16.gmra.mxu0 %v3595
      %v7101 = vpop.f32.mrf.mxu0
      %v7102 = vadd.f32 %v6909, %v7101
      %v7103 = vpop.f32.mrf.mxu0
      %v7104 = vadd.f32 %v6911, %v7103
      %v7105 = vpop.f32.mrf.mxu0
      %v7106 = vadd.f32 %v6913, %v7105
      %v7107 = vpop.f32.mrf.mxu0
      %v7108 = vadd.f32 %v6915, %v7107
      %7109 = vdwg.mxu0
      %v7110 = vld [vmem:[#allocation2 + $0x10] sm:$0xf]
      %v7111 = vld [vmem:[#allocation2 + $0x34] sm:$0xf]
      %v7112 = vld [vmem:[#allocation2 + $0x58] sm:$0xf]
      %v7113 = vld [vmem:[#allocation2 + $0x7c] sm:$0xf]
      %v7114 = vld [vmem:[#allocation2 + $0xa0] sm:$0xf]
      %v7115 = vld [vmem:[#allocation2 + $0xc4] sm:$0xf]
      %v7116 = vld [vmem:[#allocation2 + $0xe8] sm:$0xf]
      %v7117 = vld [vmem:[#allocation2 + $0x10c] sm:$0xf]
      %v7118 = vld [vmem:[#allocation2 + $0x130] sm:$0xf]
      %v7119 = vld [vmem:[#allocation2 + $0x154] sm:$0xf]
      %v7120 = vld [vmem:[#allocation2 + $0x178] sm:$0xf]
      %v7121 = vld [vmem:[#allocation2 + $0x19c] sm:$0xf]
      %v7122 = vld [vmem:[#allocation2 + $0x1c0] sm:$0xf]
      %v7123 = vld [vmem:[#allocation2 + $0x1e4] sm:$0xf]
      %v7124 = vld [vmem:[#allocation2 + $0x208] sm:$0xf]
      %v7125 = vld [vmem:[#allocation2 + $0x22c] sm:$0xf]
      %v7126 = vld [vmem:[#allocation2 + $0x250] sm:$0xf]
      %v7127 = vld [vmem:[#allocation2 + $0x274] sm:$0xf]
      %v7128 = vld [vmem:[#allocation2 + $0x298] sm:$0xf]
      %v7129 = vld [vmem:[#allocation2 + $0x2bc] sm:$0xf]
      %v7130 = vld [vmem:[#allocation2 + $0x2e0] sm:$0xf]
      %v7131 = vld [vmem:[#allocation2 + $0x304] sm:$0xf]
      %v7132 = vld [vmem:[#allocation2 + $0x328] sm:$0xf]
      %v7133 = vld [vmem:[#allocation2 + $0x34c] sm:$0xf]
      %v7134 = vld [vmem:[#allocation2 + $0x370] sm:$0xf]
      %v7135 = vld [vmem:[#allocation2 + $0x394] sm:$0xf]
      %v7136 = vld [vmem:[#allocation2 + $0x3b8] sm:$0xf]
      %v7137 = vld [vmem:[#allocation2 + $0x3dc] sm:$0xf]
      %v7138 = vld [vmem:[#allocation2 + $0x400] sm:$0xf]
      %v7139 = vld [vmem:[#allocation2 + $0x424] sm:$0xf]
      %v7140 = vld [vmem:[#allocation2 + $0x448] sm:$0xf]
      %v7141 = vld [vmem:[#allocation2 + $0x46c] sm:$0xf]
      %v7174 = vunpack.c.l.b16 %v7110
      %v7175 = vunpack.c.l.b16 %v7111
      %v7176 = vunpack.c.l.b16 %v7112
      %v7177 = vunpack.c.l.b16 %v7113
      %v7178 = vunpack.c.l.b16 %v7114
      %v7179 = vunpack.c.l.b16 %v7115
      %v7180 = vunpack.c.l.b16 %v7116
      %v7181 = vunpack.c.l.b16 %v7117
      %v7182 = vunpack.c.l.b16 %v7118
      %v7183 = vunpack.c.l.b16 %v7119
      %v7184 = vunpack.c.l.b16 %v7120
      %v7185 = vunpack.c.l.b16 %v7121
      %v7186 = vunpack.c.l.b16 %v7122
      %v7187 = vunpack.c.l.b16 %v7123
      %v7188 = vunpack.c.l.b16 %v7124
      %v7189 = vunpack.c.l.b16 %v7125
      %v7190 = vunpack.c.l.b16 %v7126
      %v7191 = vunpack.c.l.b16 %v7127
      %v7192 = vunpack.c.l.b16 %v7128
      %v7193 = vunpack.c.l.b16 %v7129
      %v7194 = vunpack.c.l.b16 %v7130
      %v7195 = vunpack.c.l.b16 %v7131
      %v7196 = vunpack.c.l.b16 %v7132
      %v7197 = vunpack.c.l.b16 %v7133
      %v7198 = vunpack.c.l.b16 %v7134
      %v7199 = vunpack.c.l.b16 %v7135
      %v7200 = vunpack.c.l.b16 %v7136
      %v7201 = vunpack.c.l.b16 %v7137
      %v7202 = vunpack.c.l.b16 %v7138
      %v7203 = vunpack.c.l.b16 %v7139
      %v7204 = vunpack.c.l.b16 %v7140
      %v7205 = vunpack.c.l.b16 %v7141
      %v7206 = vpack.c.b16 %v7175, %v7174
      %v7207 = vpack.c.b16 %v7177, %v7176
      %v7208 = vpack.c.b16 %v7179, %v7178
      %v7209 = vpack.c.b16 %v7181, %v7180
      %v7210 = vpack.c.b16 %v7183, %v7182
      %v7211 = vpack.c.b16 %v7185, %v7184
      %v7212 = vpack.c.b16 %v7187, %v7186
      %v7213 = vpack.c.b16 %v7189, %v7188
      %v7214 = vpack.c.b16 %v7191, %v7190
      %v7215 = vpack.c.b16 %v7193, %v7192
      %v7216 = vpack.c.b16 %v7195, %v7194
      %v7217 = vpack.c.b16 %v7197, %v7196
      %v7218 = vpack.c.b16 %v7199, %v7198
      %v7219 = vpack.c.b16 %v7201, %v7200
      %v7220 = vpack.c.b16 %v7203, %v7202
      %v7221 = vpack.c.b16 %v7205, %v7204
      %v7238 = vunpack.c.l.bf16 %v7206
      %v7239 = vunpack.c.h.bf16 %v7206
      %v7240 = vunpack.c.l.bf16 %v7207
      %v7241 = vunpack.c.h.bf16 %v7207
      %v7242 = vunpack.c.l.bf16 %v7208
      %v7243 = vunpack.c.h.bf16 %v7208
      %v7244 = vunpack.c.l.bf16 %v7209
      %v7245 = vunpack.c.h.bf16 %v7209
      %v7246 = vunpack.c.l.bf16 %v7210
      %v7247 = vunpack.c.h.bf16 %v7210
      %v7248 = vunpack.c.l.bf16 %v7211
      %v7249 = vunpack.c.h.bf16 %v7211
      %v7250 = vunpack.c.l.bf16 %v7212
      %v7251 = vunpack.c.h.bf16 %v7212
      %v7252 = vunpack.c.l.bf16 %v7213
      %v7253 = vunpack.c.h.bf16 %v7213
      %v7254 = vunpack.c.l.bf16 %v7214
      %v7255 = vunpack.c.h.bf16 %v7214
      %v7256 = vunpack.c.l.bf16 %v7215
      %v7257 = vunpack.c.h.bf16 %v7215
      %v7258 = vunpack.c.l.bf16 %v7216
      %v7259 = vunpack.c.h.bf16 %v7216
      %v7260 = vunpack.c.l.bf16 %v7217
      %v7261 = vunpack.c.h.bf16 %v7217
      %v7262 = vunpack.c.l.bf16 %v7218
      %v7263 = vunpack.c.h.bf16 %v7218
      %v7264 = vunpack.c.l.bf16 %v7219
      %v7265 = vunpack.c.h.bf16 %v7219
      %v7266 = vunpack.c.l.bf16 %v7220
      %v7267 = vunpack.c.h.bf16 %v7220
      %v7268 = vunpack.c.l.bf16 %v7221
      %v7269 = vunpack.c.h.bf16 %v7221
      %v7270 = vadd.f32 %v5987, %v7238
      %v7271 = vadd.f32 %v5989, %v7238
      %v7272 = vadd.f32 %v6952, %v7238
      %v7273 = vadd.f32 %v6954, %v7238
      %v7274 = vadd.f32 %v5991, %v7239
      %v7275 = vadd.f32 %v5993, %v7239
      %v7276 = vadd.f32 %v6956, %v7239
      %v7277 = vadd.f32 %v6958, %v7239
      %v7278 = vadd.f32 %v5997, %v7240
      %v7279 = vadd.f32 %v5999, %v7240
      %v7280 = vadd.f32 %v6962, %v7240
      %v7281 = vadd.f32 %v6964, %v7240
      %v7282 = vadd.f32 %v6001, %v7241
      %v7283 = vadd.f32 %v6003, %v7241
      %v7284 = vadd.f32 %v6966, %v7241
      %v7285 = vadd.f32 %v6968, %v7241
      %v7286 = vadd.f32 %v6007, %v7242
      %v7287 = vadd.f32 %v6009, %v7242
      %v7288 = vadd.f32 %v6972, %v7242
      %v7289 = vadd.f32 %v6974, %v7242
      %v7290 = vadd.f32 %v6011, %v7243
      %v7291 = vadd.f32 %v6013, %v7243
      %v7292 = vadd.f32 %v6976, %v7243
      %v7293 = vadd.f32 %v6978, %v7243
      %v7294 = vadd.f32 %v6017, %v7244
      %v7295 = vadd.f32 %v6019, %v7244
      %v7296 = vadd.f32 %v6982, %v7244
      %v7297 = vadd.f32 %v6984, %v7244
      %v7298 = vadd.f32 %v6021, %v7245
      %v7299 = vadd.f32 %v6023, %v7245
      %v7300 = vadd.f32 %v6986, %v7245
      %v7301 = vadd.f32 %v6988, %v7245
      %v7302 = vadd.f32 %v6027, %v7246
      %v7303 = vadd.f32 %v6029, %v7246
      %v7304 = vadd.f32 %v6992, %v7246
      %v7305 = vadd.f32 %v6994, %v7246
      %v7306 = vadd.f32 %v6031, %v7247
      %v7307 = vadd.f32 %v6033, %v7247
      %v7308 = vadd.f32 %v6996, %v7247
      %v7309 = vadd.f32 %v6998, %v7247
      %v7310 = vadd.f32 %v6037, %v7248
      %v7311 = vadd.f32 %v6039, %v7248
      %v7312 = vadd.f32 %v7002, %v7248
      %v7313 = vadd.f32 %v7004, %v7248
      %v7314 = vadd.f32 %v6041, %v7249
      %v7315 = vadd.f32 %v6043, %v7249
      %v7316 = vadd.f32 %v7006, %v7249
      %v7317 = vadd.f32 %v7008, %v7249
      %v7318 = vadd.f32 %v6047, %v7250
      %v7319 = vadd.f32 %v6049, %v7250
      %v7320 = vadd.f32 %v7012, %v7250
      %v7321 = vadd.f32 %v7014, %v7250
      %v7322 = vadd.f32 %v6051, %v7251
      %v7323 = vadd.f32 %v6053, %v7251
      %v7324 = vadd.f32 %v7016, %v7251
      %v7325 = vadd.f32 %v7018, %v7251
      %v7326 = vadd.f32 %v6057, %v7252
      %v7327 = vadd.f32 %v6059, %v7252
      %v7328 = vadd.f32 %v7022, %v7252
      %v7329 = vadd.f32 %v7024, %v7252
      %v7330 = vadd.f32 %v6061, %v7253
      %v7331 = vadd.f32 %v6063, %v7253
      %v7332 = vadd.f32 %v7026, %v7253
      %v7333 = vadd.f32 %v7028, %v7253
      %v7334 = vadd.f32 %v6067, %v7254
      %v7335 = vadd.f32 %v6069, %v7254
      %v7336 = vadd.f32 %v7032, %v7254
      %v7337 = vadd.f32 %v7034, %v7254
      %v7338 = vadd.f32 %v6071, %v7255
      %v7339 = vadd.f32 %v6073, %v7255
      %v7340 = vadd.f32 %v7036, %v7255
      %v7341 = vadd.f32 %v7038, %v7255
      %v7342 = vadd.f32 %v6077, %v7256
      %v7343 = vadd.f32 %v6079, %v7256
      %v7344 = vadd.f32 %v7042, %v7256
      %v7345 = vadd.f32 %v7044, %v7256
      %v7346 = vadd.f32 %v6081, %v7257
      %v7347 = vadd.f32 %v6083, %v7257
      %v7348 = vadd.f32 %v7046, %v7257
      %v7349 = vadd.f32 %v7048, %v7257
      %v7350 = vadd.f32 %v6087, %v7258
      %v7351 = vadd.f32 %v6089, %v7258
      %v7352 = vadd.f32 %v7052, %v7258
      %v7353 = vadd.f32 %v7054, %v7258
      %v7354 = vadd.f32 %v6091, %v7259
      %v7355 = vadd.f32 %v6093, %v7259
      %v7356 = vadd.f32 %v7056, %v7259
      %v7357 = vadd.f32 %v7058, %v7259
      %v7358 = vadd.f32 %v6097, %v7260
      %v7359 = vadd.f32 %v6099, %v7260
      %v7360 = vadd.f32 %v7062, %v7260
      %v7361 = vadd.f32 %v7064, %v7260
      %v7362 = vadd.f32 %v6101, %v7261
      %v7363 = vadd.f32 %v6103, %v7261
      %v7364 = vadd.f32 %v7066, %v7261
      %v7365 = vadd.f32 %v7068, %v7261
      %v7366 = vadd.f32 %v6107, %v7262
      %v7367 = vadd.f32 %v6109, %v7262
      %v7368 = vadd.f32 %v7072, %v7262
      %v7369 = vadd.f32 %v7074, %v7262
      %v7370 = vadd.f32 %v6111, %v7263
      %v7371 = vadd.f32 %v6113, %v7263
      %v7372 = vadd.f32 %v7076, %v7263
      %v7373 = vadd.f32 %v7078, %v7263
      %v7374 = vadd.f32 %v6117, %v7264
      %v7375 = vadd.f32 %v6119, %v7264
      %v7376 = vadd.f32 %v7082, %v7264
      %v7377 = vadd.f32 %v7084, %v7264
      %v7378 = vadd.f32 %v6121, %v7265
      %v7379 = vadd.f32 %v6123, %v7265
      %v7380 = vadd.f32 %v7086, %v7265
      %v7381 = vadd.f32 %v7088, %v7265
      %v7382 = vadd.f32 %v6127, %v7266
      %v7383 = vadd.f32 %v6129, %v7266
      %v7384 = vadd.f32 %v7092, %v7266
      %v7385 = vadd.f32 %v7094, %v7266
      %v7386 = vadd.f32 %v6131, %v7267
      %v7387 = vadd.f32 %v6133, %v7267
      %v7388 = vadd.f32 %v7096, %v7267
      %v7389 = vadd.f32 %v7098, %v7267
      %v7390 = vadd.f32 %v6137, %v7268
      %v7391 = vadd.f32 %v6139, %v7268
      %v7392 = vadd.f32 %v7102, %v7268
      %v7393 = vadd.f32 %v7104, %v7268
      %v7394 = vadd.f32 %v6141, %v7269
      %v7395 = vadd.f32 %v6143, %v7269
      %v7396 = vadd.f32 %v7106, %v7269
      %v7397 = vadd.f32 %v7108, %v7269
      %7398 = vst [vmem:[%s252] sm:$0xff] %v7270
      %7399 = vst [vmem:[%s252 + $0x8] sm:$0xff] %v7271
      %7400 = vst [vmem:[%s252 + $0x10] sm:$0xff] %v7272
      %7401 = vst [vmem:[%s252 + $0x18] sm:$0xff] %v7273
      %7402 = vst [vmem:[%s252 + $0x20] sm:$0xff] %v7274
      %7403 = vst [vmem:[%s252 + $0x28] sm:$0xff] %v7275
      %7404 = vst [vmem:[%s252 + $0x30] sm:$0xff] %v7276
      %7405 = vst [vmem:[%s252 + $0x38] sm:$0xff] %v7277
      %7406 = vst [vmem:[%s252 + $0x40] sm:$0xff] %v7278
      %7407 = vst [vmem:[%s252 + $0x48] sm:$0xff] %v7279
      %7408 = vst [vmem:[%s252 + $0x50] sm:$0xff] %v7280
      %7409 = vst [vmem:[%s252 + $0x58] sm:$0xff] %v7281
      %7410 = vst [vmem:[%s252 + $0x60] sm:$0xff] %v7282
      %7411 = vst [vmem:[%s252 + $0x68] sm:$0xff] %v7283
      %7412 = vst [vmem:[%s252 + $0x70] sm:$0xff] %v7284
      %7413 = vst [vmem:[%s252 + $0x78] sm:$0xff] %v7285
      %7414 = vst [vmem:[%s252 + $0x80] sm:$0xff] %v7286
      %7415 = vst [vmem:[%s252 + $0x88] sm:$0xff] %v7287
      %7416 = vst [vmem:[%s252 + $0x90] sm:$0xff] %v7288
      %7417 = vst [vmem:[%s252 + $0x98] sm:$0xff] %v7289
      %7418 = vst [vmem:[%s252 + $0xa0] sm:$0xff] %v7290
      %7419 = vst [vmem:[%s252 + $0xa8] sm:$0xff] %v7291
      %7420 = vst [vmem:[%s252 + $0xb0] sm:$0xff] %v7292
      %7421 = vst [vmem:[%s252 + $0xb8] sm:$0xff] %v7293
      %7422 = vst [vmem:[%s252 + $0xc0] sm:$0xff] %v7294
      %7423 = vst [vmem:[%s252 + $0xc8] sm:$0xff] %v7295
      %7424 = vst [vmem:[%s252 + $0xd0] sm:$0xff] %v7296
      %7425 = vst [vmem:[%s252 + $0xd8] sm:$0xff] %v7297
      %7426 = vst [vmem:[%s252 + $0xe0] sm:$0xff] %v7298
      %7427 = vst [vmem:[%s252 + $0xe8] sm:$0xff] %v7299
      %7428 = vst [vmem:[%s252 + $0xf0] sm:$0xff] %v7300
      %7429 = vst [vmem:[%s252 + $0xf8] sm:$0xff] %v7301
      %7430 = vst [vmem:[%s252 + $0x100] sm:$0xff] %v7302
      %7431 = vst [vmem:[%s252 + $0x108] sm:$0xff] %v7303
      %7432 = vst [vmem:[%s252 + $0x110] sm:$0xff] %v7304
      %7433 = vst [vmem:[%s252 + $0x118] sm:$0xff] %v7305
      %7434 = vst [vmem:[%s252 + $0x120] sm:$0xff] %v7306
      %7435 = vst [vmem:[%s252 + $0x128] sm:$0xff] %v7307
      %7436 = vst [vmem:[%s252 + $0x130] sm:$0xff] %v7308
      %7437 = vst [vmem:[%s252 + $0x138] sm:$0xff] %v7309
      %7438 = vst [vmem:[%s252 + $0x140] sm:$0xff] %v7310
      %7439 = vst [vmem:[%s252 + $0x148] sm:$0xff] %v7311
      %7440 = vst [vmem:[%s252 + $0x150] sm:$0xff] %v7312
      %7441 = vst [vmem:[%s252 + $0x158] sm:$0xff] %v7313
      %7442 = vst [vmem:[%s252 + $0x160] sm:$0xff] %v7314
      %7443 = vst [vmem:[%s252 + $0x168] sm:$0xff] %v7315
      %7444 = vst [vmem:[%s252 + $0x170] sm:$0xff] %v7316
      %7445 = vst [vmem:[%s252 + $0x178] sm:$0xff] %v7317
      %7446 = vst [vmem:[%s252 + $0x180] sm:$0xff] %v7318
      %7447 = vst [vmem:[%s252 + $0x188] sm:$0xff] %v7319
      %7448 = vst [vmem:[%s252 + $0x190] sm:$0xff] %v7320
      %7449 = vst [vmem:[%s252 + $0x198] sm:$0xff] %v7321
      %7450 = vst [vmem:[%s252 + $0x1a0] sm:$0xff] %v7322
      %7451 = vst [vmem:[%s252 + $0x1a8] sm:$0xff] %v7323
      %7452 = vst [vmem:[%s252 + $0x1b0] sm:$0xff] %v7324
      %7453 = vst [vmem:[%s252 + $0x1b8] sm:$0xff] %v7325
      %7454 = vst [vmem:[%s252 + $0x1c0] sm:$0xff] %v7326
      %7455 = vst [vmem:[%s252 + $0x1c8] sm:$0xff] %v7327
      %7456 = vst [vmem:[%s252 + $0x1d0] sm:$0xff] %v7328
      %7457 = vst [vmem:[%s252 + $0x1d8] sm:$0xff] %v7329
      %7458 = vst [vmem:[%s252 + $0x1e0] sm:$0xff] %v7330
      %7459 = vst [vmem:[%s252 + $0x1e8] sm:$0xff] %v7331
      %7460 = vst [vmem:[%s252 + $0x1f0] sm:$0xff] %v7332
      %7461 = vst [vmem:[%s252 + $0x1f8] sm:$0xff] %v7333
      %7462 = vst [vmem:[%s252 + $0x200] sm:$0xff] %v7334
      %7463 = vst [vmem:[%s252 + $0x208] sm:$0xff] %v7335
      %7464 = vst [vmem:[%s252 + $0x210] sm:$0xff] %v7336
      %7465 = vst [vmem:[%s252 + $0x218] sm:$0xff] %v7337
      %7466 = vst [vmem:[%s252 + $0x220] sm:$0xff] %v7338
      %7467 = vst [vmem:[%s252 + $0x228] sm:$0xff] %v7339
      %7468 = vst [vmem:[%s252 + $0x230] sm:$0xff] %v7340
      %7469 = vst [vmem:[%s252 + $0x238] sm:$0xff] %v7341
      %7470 = vst [vmem:[%s252 + $0x240] sm:$0xff] %v7342
      %7471 = vst [vmem:[%s252 + $0x248] sm:$0xff] %v7343
      %7472 = vst [vmem:[%s252 + $0x250] sm:$0xff] %v7344
      %7473 = vst [vmem:[%s252 + $0x258] sm:$0xff] %v7345
      %7474 = vst [vmem:[%s252 + $0x260] sm:$0xff] %v7346
      %7475 = vst [vmem:[%s252 + $0x268] sm:$0xff] %v7347
      %7476 = vst [vmem:[%s252 + $0x270] sm:$0xff] %v7348
      %7477 = vst [vmem:[%s252 + $0x278] sm:$0xff] %v7349
      %7478 = vst [vmem:[%s252 + $0x280] sm:$0xff] %v7350
      %7479 = vst [vmem:[%s252 + $0x288] sm:$0xff] %v7351
      %7480 = vst [vmem:[%s252 + $0x290] sm:$0xff] %v7352
      %7481 = vst [vmem:[%s252 + $0x298] sm:$0xff] %v7353
      %7482 = vst [vmem:[%s252 + $0x2a0] sm:$0xff] %v7354
      %7483 = vst [vmem:[%s252 + $0x2a8] sm:$0xff] %v7355
      %7484 = vst [vmem:[%s252 + $0x2b0] sm:$0xff] %v7356
      %7485 = vst [vmem:[%s252 + $0x2b8] sm:$0xff] %v7357
      %7486 = vst [vmem:[%s252 + $0x2c0] sm:$0xff] %v7358
      %7487 = vst [vmem:[%s252 + $0x2c8] sm:$0xff] %v7359
      %7488 = vst [vmem:[%s252 + $0x2d0] sm:$0xff] %v7360
      %7489 = vst [vmem:[%s252 + $0x2d8] sm:$0xff] %v7361
      %7490 = vst [vmem:[%s252 + $0x2e0] sm:$0xff] %v7362
      %7491 = vst [vmem:[%s252 + $0x2e8] sm:$0xff] %v7363
      %7492 = vst [vmem:[%s252 + $0x2f0] sm:$0xff] %v7364
      %7493 = vst [vmem:[%s252 + $0x2f8] sm:$0xff] %v7365
      %7494 = vst [vmem:[%s252 + $0x300] sm:$0xff] %v7366
      %7495 = vst [vmem:[%s252 + $0x308] sm:$0xff] %v7367
      %7496 = vst [vmem:[%s252 + $0x310] sm:$0xff] %v7368
      %7497 = vst [vmem:[%s252 + $0x318] sm:$0xff] %v7369
      %7498 = vst [vmem:[%s252 + $0x320] sm:$0xff] %v7370
      %7499 = vst [vmem:[%s252 + $0x328] sm:$0xff] %v7371
      %7500 = vst [vmem:[%s252 + $0x330] sm:$0xff] %v7372
      %7501 = vst [vmem:[%s252 + $0x338] sm:$0xff] %v7373
      %7502 = vst [vmem:[%s252 + $0x340] sm:$0xff] %v7374
      %7503 = vst [vmem:[%s252 + $0x348] sm:$0xff] %v7375
      %7504 = vst [vmem:[%s252 + $0x350] sm:$0xff] %v7376
      %7505 = vst [vmem:[%s252 + $0x358] sm:$0xff] %v7377
      %7506 = vst [vmem:[%s252 + $0x360] sm:$0xff] %v7378
      %7507 = vst [vmem:[%s252 + $0x368] sm:$0xff] %v7379
      %7508 = vst [vmem:[%s252 + $0x370] sm:$0xff] %v7380
      %7509 = vst [vmem:[%s252 + $0x378] sm:$0xff] %v7381
      %7510 = vst [vmem:[%s252 + $0x380] sm:$0xff] %v7382
      %7511 = vst [vmem:[%s252 + $0x388] sm:$0xff] %v7383
      %7512 = vst [vmem:[%s252 + $0x390] sm:$0xff] %v7384
      %7513 = vst [vmem:[%s252 + $0x398] sm:$0xff] %v7385
      %7514 = vst [vmem:[%s252 + $0x3a0] sm:$0xff] %v7386
      %7515 = vst [vmem:[%s252 + $0x3a8] sm:$0xff] %v7387
      %7516 = vst [vmem:[%s252 + $0x3b0] sm:$0xff] %v7388
      %7517 = vst [vmem:[%s252 + $0x3b8] sm:$0xff] %v7389
      %7518 = vst [vmem:[%s252 + $0x3c0] sm:$0xff] %v7390
      %7519 = vst [vmem:[%s252 + $0x3c8] sm:$0xff] %v7391
      %7520 = vst [vmem:[%s252 + $0x3d0] sm:$0xff] %v7392
      %7521 = vst [vmem:[%s252 + $0x3d8] sm:$0xff] %v7393
      %7522 = vst [vmem:[%s252 + $0x3e0] sm:$0xff] %v7394
      %7523 = vst [vmem:[%s252 + $0x3e8] sm:$0xff] %v7395
      %7524 = vst [vmem:[%s252 + $0x3f0] sm:$0xff] %v7396
      %7525 = vst [vmem:[%s252 + $0x3f8] sm:$0xff] %v7397
      %s7526 = smul.u32 32, %s20
      %s7527 = smul.u32 4, %s21
      %p7528 = scmp.lt.s32.totalorder %s19, 1
      %s7529 = scalar_select %p7528, %s19, 1
      %p7530 = scmp.lt.s32.totalorder %s7526, 31
      %s7531 = scalar_select %p7530, %s7526, 31
      %p7532 = scmp.lt.s32.totalorder %s7527, 3
      %s7533 = scalar_select %p7532, %s7527, 3
      %s7534 = smul.addr %s7531, 4
      %s7535 = sadd.s32 %s7533, %s7534
      %s7536 = smul.addr %s7529, 128
      %s7537 = sadd.s32 %s7535, %s7536
      %s7538 = smul.addr %s7537, 8
      %s7539 = scalar_lea.vmem %s3, %s7538
      // Predicated region
      $region37: #{dc_up_block_2d.1} parent=31 // pred_check
        %p7540 = pneg %p133
      $region38: #{dc_up_block_2d.1} parent=31 // pred_check_branch
        %7542 = sbr.rel (%p7540) target = $region40
      $region39: #{dc_up_block_2d.1} parent=31 // pred_region
        %s7543 = smul.u32 32, %s20
        %s7544 = smul.u32 4, %s21
      $region40: #{dc_up_block_2d.1} parent=31 // pred_fallthru
        _
    $region32: #{dc_up_block_2d.1} parent=5 // pred_fallthru
      _
    %p7545 = scmp.le.s32.totalorder 2, %s9
    // Predicated region
    $region41: #{dc_up_block_2d.1} parent=5 // pred_check
      %p7546 = pneg %p7545
    $region42: #{dc_up_block_2d.1} parent=5 // pred_check_branch
      %7548 = sbr.rel (%p7546) target = $region44
    $region43: #{dc_up_block_2d.1} parent=5 // pred_region
      %s7549 = ssub.s32 %s9, 2
      // Predicated region
      $region45: #{dc_up_block_2d.1} parent=43 // pred_check
        %p7550 = pneg %p139
      $region46: #{dc_up_block_2d.1} parent=43 // pred_check_branch
        %7552 = sbr.rel (%p7550) target = $region48
      $region47: #{dc_up_block_2d.1} parent=43 // pred_region
        %s7553 = smul.u32 32, %s23
        %s7554 = smul.u32 4, %s24
        %p7555 = scmp.lt.s32.totalorder %s22, 1
        %s7556 = scalar_select %p7555, %s22, 1
        %p7557 = scmp.lt.s32.totalorder %s7553, 31
        %s7558 = scalar_select %p7557, %s7553, 31
        %p7559 = scmp.lt.s32.totalorder %s7554, 3
        %s7560 = scalar_select %p7559, %s7554, 3
        %s7561 = smul.addr %s7558, 4
        %s7562 = sadd.s32 %s7560, %s7561
        %s7563 = smul.addr %s7556, 128
        %s7564 = sadd.s32 %s7562, %s7563
        %s7565 = smul.addr %s7564, 8
        %s7566 = scalar_lea.vmem %s3, %s7565
      $region48: #{dc_up_block_2d.1} parent=43 // pred_fallthru
        _
    $region44: #{dc_up_block_2d.1} parent=5 // pred_fallthru
      _
  $region6: #{dc_up_block_2d.1} parent=0 // loop_footer
    %s13 = sadd.s32 1, %s9
  $region7: #{dc_up_block_2d.1} parent=0 // loop_footer_branch
    %8 = sbr.rel target = $region3
  $region8: #{dc_up_block_2d.1} parent=0 // loop_exit
    _

</llo_original>
